<compile_context>
chip_gen: v7x
topology: tpu7x:2x2x1
jax: 0.10.0
libtpu: 0.0.40
codegen_flags: <defaults>
</compile_context>

<pallas_src>
import functools

import jax
import jax.numpy as jnp
from jax.experimental import pallas as pl
from jax.experimental.pallas import tpu as pltpu


_VMEM_LIMIT = 48 << 20      # scoped-VMEM limit requested from the compiler
_VMEM_BUDGET = 40 << 20     # what our own tile arithmetic may consume
_A_TILE_CAP = 4 << 20       # bf16 A-tile byte cap
_MAX_TM = 2048


def _pad_to(n, m):
    return ((n + m - 1) // m) * m


def _pick_tm(m, kp):
    """Row tile for the matmul pass: large power of two, A tile <= ~4 MiB."""
    tm = _MAX_TM
    while tm > 128 and tm * kp * 2 > _A_TILE_CAP:
        tm //= 2
    if m <= tm:
        return _pad_to(m, 8)      # single full-height tile
    return tm


def _pick_tn(kp, n, tm):
    """Column tile.  Prefer tn=n so the weight matrix is fully VMEM resident."""
    def fits(tn):
        b = 2 * kp * tn * 2          # B, double buffered, bf16
        a = 2 * tm * kp * 2          # A, double buffered, bf16
        y = 2 * tm * tn * 2          # y, double buffered, bf16
        s = 2 * 8 * tn * 4           # stats, double buffered, f32
        acc = tm * tn * 4            # f32 accumulator scratch
        return a + b + y + s + acc <= _VMEM_BUDGET
    if fits(n):
        return n
    if n % 256 == 0 and fits(256):   # match the 256-wide MXU on v6e/v7x
        return 256
    if n % 128 == 0 and fits(128):
        return 128
    return n


def _bn_row_tile(rows, nf):
    """Row tile for the BN/LeakyReLU streaming pass (bf16 tile <= ~2 MiB)."""
    cap = max(8, (2 << 20) // (nf * 2))
    if rows <= cap:
        return rows
    t = 1
    while t * 2 <= cap:
        t *= 2
    while t > 8 and rows % t != 0:
        t //= 2
    return t


# ------------------------------ Pallas kernels ------------------------------

def _conv_stats_kernel(a_ref, b_ref, y_ref, stats_ref, acc_ref):
    """Full-K matmul tile + BatchNorm batch-statistics epilogue.

    a_ref: (TM, K) bf16, b_ref: (K, TN) bf16, acc_ref: (TM, TN) f32 scratch.
    y_ref: (TM, TN) bf16 conv output tile (bf16 halves the y HBM round trip).
    stats_ref: (8, TN) f32 partials — row 0 = column sum, row 1 = col sum sq.
    """
    acc_ref[...] = jnp.dot(a_ref[...], b_ref[...],
                           preferred_element_type=jnp.float32)
    y = acc_ref[...]
    y_ref[...] = y.astype(y_ref.dtype)
    s = jnp.sum(y, axis=0, keepdims=True)        # (1, TN)
    q = jnp.sum(y * y, axis=0, keepdims=True)    # (1, TN)
    row = jax.lax.broadcasted_iota(jnp.int32, (8, s.shape[1]), 0)
    stats_ref[...] = jnp.where(row == 0, s, jnp.where(row == 1, q, 0.0))


def _bn_leaky_kernel(y_ref, scale_ref, shift_ref, o_ref):
    z = y_ref[...].astype(jnp.float32) * scale_ref[...] + shift_ref[...]
    o_ref[...] = jnp.where(z > 0, z, 0.1 * z).astype(o_ref.dtype)


def _bn_leaky_res_kernel(y_ref, scale_ref, shift_ref, r_ref, o_ref):
    z = y_ref[...].astype(jnp.float32) * scale_ref[...] + shift_ref[...]
    z = jnp.where(z > 0, z, 0.1 * z) + r_ref[...].astype(jnp.float32)
    o_ref[...] = z.astype(o_ref.dtype)


# ------------------------------ Pallas wrappers -----------------------------

def pallas_conv_stats(a, b, tm):
    """a: (Mp, K) bf16, b: (K, N) bf16 -> y (Mp, N) bf16, col_sum, col_sq."""
    mp, kp = a.shape
    _, n = b.shape
    tn = _pick_tn(kp, n, tm)
    n_m, n_n = mp // tm, n // tn

    if n_n == 1:
        # Full B is VMEM resident (block index never changes -> one DMA).
        # Keep i as the leading parallel axis so v7x can shard its 2 TCs.
        grid = (n_m, n_n)
        a_map = lambda i, j: (i, 0)
        b_map = lambda i, j: (0, j)
        o_map = lambda i, j: (i, j)
    else:
        # j outer, i inner: each B tile is fetched exactly once and stays
        # resident across the inner i sweep; A streams (<= n_n re-reads).
        grid = (n_n, n_m)
        a_map = lambda j, i: (i, 0)
        b_map = lambda j, i: (0, j)
        o_map = lambda j, i: (i, j)

    y, stats = pl.pallas_call(
        _conv_stats_kernel,
        out_shape=(jax.ShapeDtypeStruct((mp, n), jnp.bfloat16),
                   jax.ShapeDtypeStruct((n_m * 8, n), jnp.float32)),
        grid_spec=pltpu.PrefetchScalarGridSpec(
            num_scalar_prefetch=0,
            grid=grid,
            in_specs=[pl.BlockSpec((tm, kp), a_map),
                      pl.BlockSpec((kp, tn), b_map)],
            out_specs=(pl.BlockSpec((tm, tn), o_map),
                       pl.BlockSpec((8, tn), o_map)),
            scratch_shapes=[pltpu.VMEM((tm, tn), jnp.float32)]),
        compiler_params=pltpu.CompilerParams(
            dimension_semantics=("parallel", "parallel"),
            vmem_limit_bytes=_VMEM_LIMIT),
    )(a, b)
    stats = stats.reshape(n_m, 8, n)
    return y, jnp.sum(stats[:, 0, :], axis=0), jnp.sum(stats[:, 1, :], axis=0)


def pallas_bn_leaky(y, scale, shift, residual=None):
    """leaky_relu_0.1(y * scale + shift) (+ residual), bf16 in / bf16 out."""
    mp, n = y.shape
    # Lane-dense folding for Cout < 128 layers: (mp, n) -> (mp/f, 128) view.
    f = 1
    if n < 128 and 128 % n == 0 and mp % ((128 // n) * 8) == 0:
        f = 128 // n
    nf = n * f
    rows = mp // f
    yv = y.reshape(rows, nf)
    sc = jnp.tile(scale.astype(jnp.float32), f).reshape(1, nf)
    sh = jnp.tile(shift.astype(jnp.float32), f).reshape(1, nf)

    tmb = _bn_row_tile(rows, nf)
    grid = (rows // tmb,)
    tile_spec = pl.BlockSpec((tmb, nf), lambda i: (i, 0))
    vec_spec = pl.BlockSpec((1, nf), lambda i: (0, 0))
    cp = pltpu.CompilerParams(dimension_semantics=("parallel",),
                              vmem_limit_bytes=_VMEM_LIMIT)
    out_shape = jax.ShapeDtypeStruct((rows, nf), jnp.bfloat16)

    if residual is None:
        out = pl.pallas_call(
            _bn_leaky_kernel, out_shape=out_shape,
            grid_spec=pltpu.PrefetchScalarGridSpec(
                num_scalar_prefetch=0, grid=grid,
                in_specs=[tile_spec, vec_spec, vec_spec],
                out_specs=tile_spec),
            compiler_params=cp,
        )(yv, sc, sh)
    else:
        rv = residual.reshape(rows, nf)
        out = pl.pallas_call(
            _bn_leaky_res_kernel, out_shape=out_shape,
            grid_spec=pltpu.PrefetchScalarGridSpec(
                num_scalar_prefetch=0, grid=grid,
                in_specs=[tile_spec, vec_spec, vec_spec, tile_spec],
                out_specs=tile_spec),
            compiler_params=cp,
        )(yv, sc, sh, rv)
    return out.reshape(mp, n)


# -------------------------------- Glue (JAX) --------------------------------

def im2col(x, kh, kw, stride, padding):
    """x: NHWC bf16 -> (N*Ho*Wo, kh*kw*C) patches, PyTorch conv indexing."""
    n, h, w, c = x.shape
    ho = (h + 2 * padding - kh) // stride + 1
    wo = (w + 2 * padding - kw) // stride + 1
    if kh == 1 and kw == 1 and padding == 0:
        return x[:, ::stride, ::stride, :].reshape(n * ho * wo, c), ho, wo
    xp = jnp.pad(x, ((0, 0), (padding, padding), (padding, padding), (0, 0)))
    cols = []
    for i in range(kh):
        for j in range(kw):
            cols.append(xp[:, i:i + stride * ho:stride, j:j + stride * wo:stride, :])
    patches = jnp.concatenate(cols, axis=-1)   # (n, ho, wo, kh*kw*c), (i, j, c) order
    return patches.reshape(n * ho * wo, kh * kw * c), ho, wo


@functools.partial(jax.jit, static_argnames=("kh", "kw", "stride", "padding"))
def conv_bn_leaky(x, b_mat, gamma, beta, residual=None, *, kh, kw, stride, padding):
    """BasicCNNBlock: Conv2d(no bias) -> BatchNorm2d(train) -> LeakyReLU(0.1).
    x: NHWC bf16, b_mat: (kh*kw*cin, cout) bf16. Optionally fuses the skip add."""
    n = x.shape[0]
    k_dim, cout = b_mat.shape
    a, ho, wo = im2col(x, kh, kw, stride, padding)
    m = n * ho * wo

    kp = _pad_to(k_dim, 32)                       # only the stem conv (K=27) pads
    b = b_mat
    if kp != k_dim:
        a = jnp.pad(a, ((0, 0), (0, kp - k_dim)))
        b = jnp.pad(b, ((0, kp - k_dim), (0, 0)))
    tm = _pick_tm(m, kp)
    mp = _pad_to(m, tm)
    if mp != m:
        a = jnp.pad(a, ((0, mp - m), (0, 0)))     # zero rows: BN sums unaffected

    y, col_sum, col_sq = pallas_conv_stats(a, b, tm)   # conv + BN stats, one pass
    mean = col_sum / m
    var = jnp.maximum(col_sq / m - mean * mean, 0.0)   # biased variance (training)
    scale = gamma * jax.lax.rsqrt(var + 1e-5)
    shift = beta - mean * scale

    r = None
    if residual is not None:
        r = residual.reshape(m, cout)
        if mp != m:
            r = jnp.pad(r, ((0, mp - m), (0, 0)))
    z = pallas_bn_leaky(y, scale, shift, r)            # BN affine + LeakyReLU (+ skip)
    if mp != m:
        z = z[:m]
    return z.reshape(n, ho, wo, cout)


# --------------------------- Parameter initialization -----------------------

CFG = [[3, 32, 3, 1, 0], [32, 64, 3, 2, 1], [64, 128, 3, 2, 2],
       [128, 256, 3, 2, 8], [256, 512, 3, 2, 8], [512, 1024, 3, 2, 4]]


def _init_conv(key, cin, cout, k):
    kw_, kg, kb = jax.random.split(key, 3)
    fan_in = cin * k * k
    w = jax.random.normal(kw_, (cout, cin, k, k), jnp.float32) / jnp.sqrt(
        jnp.float32(fan_in))
    # Pre-reshape to the (kh*kw*cin, cout) matmul layout and pre-cast to bf16
    # so the hot path never transposes / casts weights.
    b_mat = jnp.transpose(w, (2, 3, 1, 0)).reshape(k * k * cin, cout).astype(
        jnp.bfloat16)
    gamma = 1.0 + 0.1 * jax.random.normal(kg, (cout,), jnp.float32)
    beta = 0.1 * jax.random.normal(kb, (cout,), jnp.float32)
    return {"b": b_mat, "gamma": gamma, "beta": beta, "k": k}


def init_darknet53(key):
    layers = []
    for (cin, cout, k, stride, rep) in CFG:
        key, sub = jax.random.split(key)
        layers.append({"type": "conv", "p": _init_conv(sub, cin, cout, k),
                       "stride": stride, "padding": 1})
        if rep != 0:
            convs = []
            for _ in range(rep):
                key, s1, s2 = jax.random.split(key, 3)
                convs.append((_init_conv(s1, cout, cout // 2, 1),
                              _init_conv(s2, cout // 2, cout, 3)))
            layers.append({"type": "res", "convs": convs, "repeat": rep})
    return layers


# ------------------------------- Forward pass -------------------------------

def darknet53_forward(x_nchw, layers):
    # Accepts NCHW (PyTorch convention), computes in NHWC bf16, returns NCHW f32.
    x = jnp.transpose(x_nchw, (0, 2, 3, 1)).astype(jnp.bfloat16)
    outputs = []
    for layer in layers:
        if layer["type"] == "conv":
            p = layer["p"]
            x = conv_bn_leaky(x, p["b"], p["gamma"], p["beta"],
                              kh=p["k"], kw=p["k"],
                              stride=layer["stride"], padding=layer["padding"])
        else:
            # ResidualBlock: the whole Repeat*2 conv chain, then a SINGLE
            # residual add at the end (exactly as the PyTorch reference).
            convs = layer["convs"]
            y = x
            for idx, (p1, p2) in enumerate(convs):
                y = conv_bn_leaky(y, p1["b"], p1["gamma"], p1["beta"],
                                  kh=1, kw=1, stride=1, padding=0)
                res = x if idx == len(convs) - 1 else None
                y = conv_bn_leaky(y, p2["b"], p2["gamma"], p2["beta"], res,
                                  kh=3, kw=3, stride=1, padding=1)
            x = y
            if layer["repeat"] in (8, 4):   # mirrors `num_repeats in [8, 8, 4]`
                outputs.append(jnp.transpose(x.astype(jnp.float32), (0, 3, 1, 2)))
    return outputs


if __name__ == "__main__":
    key = jax.random.PRNGKey(0)
    pkey, xkey = jax.random.split(key)
    layers = init_darknet53(pkey)
    x = jax.random.normal(xkey, (2, 3, 32, 32), jnp.float32)  # NCHW like PyTorch

    outs = darknet53_forward(x, layers)
    outs = jax.block_until_ready(outs)

    expected = [(2, 256, 4, 4), (2, 512, 2, 2), (2, 1024, 1, 1)]
    assert [tuple(o.shape) for o in outs] == expected, \
        [tuple(o.shape) for o in outs]
    assert all(bool(jnp.all(jnp.isfinite(o))) for o in outs)
    print("KERNEL_OK")
</pallas_src>

<mosaic_0001>
module attributes {stable_mosaic.version = 11 : i64} {
  func.func @_conv_stats_kernel(%arg0: i32, %arg1: i32, %arg2: memref<2048x32xbf16, #tpu.memory_space<vmem>>, %arg3: memref<32x32xbf16, #tpu.memory_space<vmem>>, %arg4: memref<2048x32xbf16, #tpu.memory_space<vmem>>, %arg5: memref<8x32xf32, #tpu.memory_space<vmem>>, %arg6: memref<2048x32xf32, #tpu.memory_space<vmem>>) attributes {dimension_semantics = [#tpu.dimension_semantics<parallel>, #tpu.dimension_semantics<parallel>], iteration_bounds = array<i64: 1, 1>, scalar_prefetch = 0 : i64, scratch_operands = 1 : i64, tpu.core_type = #tpu.core_type<tc>, window_params = [{transform_indices = @transform_0, window_bounds = array<i64: 2048, 32>}, {transform_indices = @transform_1, window_bounds = array<i64: 32, 32>}, {transform_indices = @transform_2, window_bounds = array<i64: 2048, 32>}, {transform_indices = @transform_3, window_bounds = array<i64: 8, 32>}]} {
    %c0 = arith.constant 0 : index
    %c0_0 = arith.constant 0 : index
    %0 = vector.load %arg2[%c0, %c0_0] : memref<2048x32xbf16, #tpu.memory_space<vmem>>, vector<2048x32xbf16>
    %c0_1 = arith.constant 0 : index
    %c0_2 = arith.constant 0 : index
    %1 = vector.load %arg3[%c0_1, %c0_2] : memref<32x32xbf16, #tpu.memory_space<vmem>>, vector<32x32xbf16>
    %cst = arith.constant dense<0.000000e+00> : vector<2048x32xf32>
    %2 = tpu.matmul %0, %1, %cst {dimension_numbers = #tpu.dot_dimension_numbers<[1], [0], [0], [1], [0, 0, 1, 1], [], []>} : vector<2048x32xbf16>, vector<32x32xbf16>, vector<2048x32xf32> -> vector<2048x32xf32>
    %c0_3 = arith.constant 0 : index
    %c0_4 = arith.constant 0 : index
    %3 = vector.load %arg6[%c0_3, %c0_4] : memref<2048x32xf32, #tpu.memory_space<vmem>>, vector<2048x32xf32>
    tpu.vector_store %arg6[%c0_3, %c0_4], %2 {strides = array<i32>} : memref<2048x32xf32, #tpu.memory_space<vmem>>, vector<2048x32xf32>,
    %c0_5 = arith.constant 0 : index
    %c0_6 = arith.constant 0 : index
    %4 = vector.load %arg6[%c0_5, %c0_6] : memref<2048x32xf32, #tpu.memory_space<vmem>>, vector<2048x32xf32>
    %5 = arith.truncf %4 : vector<2048x32xf32> to vector<2048x32xbf16>
    %c0_7 = arith.constant 0 : index
    %c0_8 = arith.constant 0 : index
    %6 = vector.load %arg4[%c0_7, %c0_8] : memref<2048x32xbf16, #tpu.memory_space<vmem>>, vector<2048x32xbf16>
    tpu.vector_store %arg4[%c0_7, %c0_8], %5 {strides = array<i32>} : memref<2048x32xbf16, #tpu.memory_space<vmem>>, vector<2048x32xbf16>,
    %cst_9 = arith.constant dense<0.000000e+00> : vector<32xf32>
    %7 = vector.multi_reduction <add>, %4, %cst_9 [0] : vector<2048x32xf32> to vector<32xf32>
    %8 = vector.shape_cast %7 : vector<32xf32> to vector<1x32xf32>
    %9 = arith.mulf %4, %4 : vector<2048x32xf32>
    %cst_10 = arith.constant dense<0.000000e+00> : vector<32xf32>
    %10 = vector.multi_reduction <add>, %9, %cst_10 [0] : vector<2048x32xf32> to vector<32xf32>
    %11 = vector.shape_cast %10 : vector<32xf32> to vector<1x32xf32>
    %12 = tpu.iota {dimensions = array<i32: 0>} : vector<8x32xi32>
    %c0_i32 = arith.constant 0 : i32
    %13 = vector.broadcast %c0_i32 : i32 to vector<8x32xi32>
    %14 = arith.cmpi eq, %12, %13 : vector<8x32xi32>
    %c1_i32 = arith.constant 1 : i32
    %15 = vector.broadcast %c1_i32 : i32 to vector<8x32xi32>
    %16 = arith.cmpi eq, %12, %15 : vector<8x32xi32>
    %cst_11 = arith.constant 0.000000e+00 : f32
    %17 = vector.shape_cast %11 : vector<1x32xf32> to vector<1x32xf32>
    %18 = vector.broadcast %17 : vector<1x32xf32> to vector<8x32xf32>
    %19 = vector.broadcast %cst_11 : f32 to vector<8x32xf32>
    %20 = arith.select %16, %18, %19 : vector<8x32xi1>, vector<8x32xf32>
    %21 = vector.shape_cast %8 : vector<1x32xf32> to vector<1x32xf32>
    %22 = vector.broadcast %21 : vector<1x32xf32> to vector<8x32xf32>
    %23 = arith.select %14, %22, %20 : vector<8x32xi1>, vector<8x32xf32>
    %c0_12 = arith.constant 0 : index
    %c0_13 = arith.constant 0 : index
    %24 = vector.load %arg5[%c0_12, %c0_13] : memref<8x32xf32, #tpu.memory_space<vmem>>, vector<8x32xf32>
    tpu.vector_store %arg5[%c0_12, %c0_13], %23 {strides = array<i32>} : memref<8x32xf32, #tpu.memory_space<vmem>>, vector<8x32xf32>,
    return
  }
  func.func @transform_0(%arg0: i32, %arg1: i32) -> (i32, i32) {
    %c0_i32 = arith.constant 0 : i32
    %c0_i32_0 = arith.constant 0 : i32
    return %arg0, %c0_i32 : i32, i32
  }
  func.func @transform_1(%arg0: i32, %arg1: i32) -> (i32, i32) {
    %c0_i32 = arith.constant 0 : i32
    %c0_i32_0 = arith.constant 0 : i32
    return %c0_i32, %arg1 : i32, i32
  }
  func.func @transform_2(%arg0: i32, %arg1: i32) -> (i32, i32) {
    %c0_i32 = arith.constant 0 : i32
    return %arg0, %arg1 : i32, i32
  }
  func.func @transform_3(%arg0: i32, %arg1: i32) -> (i32, i32) {
    %c0_i32 = arith.constant 0 : i32
    return %arg0, %arg1 : i32, i32
  }
}

module attributes {stable_mosaic.version = 11 : i64} {
  func.func @_bn_leaky_kernel(%arg0: i32, %arg1: memref<512x128xbf16, #tpu.memory_space<vmem>>, %arg2: memref<1x128xf32, #tpu.memory_space<vmem>>, %arg3: memref<1x128xf32, #tpu.memory_space<vmem>>, %arg4: memref<512x128xbf16, #tpu.memory_space<vmem>>) attributes {dimension_semantics = [#tpu.dimension_semantics<parallel>], iteration_bounds = array<i64: 1>, scalar_prefetch = 0 : i64, scratch_operands = 0 : i64, tpu.core_type = #tpu.core_type<tc>, window_params = [{transform_indices = @transform_0, window_bounds = array<i64: 512, 128>}, {pipeline_mode = #tpu.pipeline_mode<synchronous>, transform_indices = @transform_1, window_bounds = array<i64: 1, 128>}, {pipeline_mode = #tpu.pipeline_mode<synchronous>, transform_indices = @transform_2, window_bounds = array<i64: 1, 128>}, {transform_indices = @transform_3, window_bounds = array<i64: 512, 128>}]} {
    %c0 = arith.constant 0 : index
    %c0_0 = arith.constant 0 : index
    %0 = vector.load %arg1[%c0, %c0_0] : memref<512x128xbf16, #tpu.memory_space<vmem>>, vector<512x128xbf16>
    %1 = arith.extf %0 : vector<512x128xbf16> to vector<512x128xf32>
    %c0_1 = arith.constant 0 : index
    %c0_2 = arith.constant 0 : index
    %2 = vector.load %arg2[%c0_1, %c0_2] : memref<1x128xf32, #tpu.memory_space<vmem>>, vector<1x128xf32>
    %3 = vector.broadcast %2 : vector<1x128xf32> to vector<512x128xf32>
    %4 = arith.mulf %1, %3 : vector<512x128xf32>
    %c0_3 = arith.constant 0 : index
    %c0_4 = arith.constant 0 : index
    %5 = vector.load %arg3[%c0_3, %c0_4] : memref<1x128xf32, #tpu.memory_space<vmem>>, vector<1x128xf32>
    %6 = vector.broadcast %5 : vector<1x128xf32> to vector<512x128xf32>
    %7 = arith.addf %4, %6 : vector<512x128xf32>
    %cst = arith.constant 0.000000e+00 : f32
    %8 = vector.broadcast %cst : f32 to vector<512x128xf32>
    %9 = arith.cmpf ogt, %7, %8 : vector<512x128xf32>
    %cst_5 = arith.constant 1.000000e-01 : f32
    %10 = vector.broadcast %cst_5 : f32 to vector<512x128xf32>
    %11 = arith.mulf %10, %7 : vector<512x128xf32>
    %12 = arith.select %9, %7, %11 : vector<512x128xi1>, vector<512x128xf32>
    %13 = arith.truncf %12 : vector<512x128xf32> to vector<512x128xbf16>
    %c0_6 = arith.constant 0 : index
    %c0_7 = arith.constant 0 : index
    %14 = vector.load %arg4[%c0_6, %c0_7] : memref<512x128xbf16, #tpu.memory_space<vmem>>, vector<512x128xbf16>
    tpu.vector_store %arg4[%c0_6, %c0_7], %13 {strides = array<i32>} : memref<512x128xbf16, #tpu.memory_space<vmem>>, vector<512x128xbf16>,
    return
  }
  func.func @transform_0(%arg0: i32) -> (i32, i32) {
    %c0_i32 = arith.constant 0 : i32
    %c0_i32_0 = arith.constant 0 : i32
    return %arg0, %c0_i32 : i32, i32
  }
  func.func @transform_1(%arg0: i32) -> (i32, i32) {
    %c0_i32 = arith.constant 0 : i32
    %c0_i32_0 = arith.constant 0 : i32
    %c0_i32_1 = arith.constant 0 : i32
    return %c0_i32, %c0_i32_0 : i32, i32
  }
  func.func @transform_2(%arg0: i32) -> (i32, i32) {
    %c0_i32 = arith.constant 0 : i32
    %c0_i32_0 = arith.constant 0 : i32
    %c0_i32_1 = arith.constant 0 : i32
    return %c0_i32, %c0_i32_0 : i32, i32
  }
  func.func @transform_3(%arg0: i32) -> (i32, i32) {
    %c0_i32 = arith.constant 0 : i32
    %c0_i32_0 = arith.constant 0 : i32
    return %arg0, %c0_i32 : i32, i32
  }
}

</mosaic_0001>

<llo_original>
// kernel: tile.18
$region0: #{tile.18}
  #allocation0 [shape = 's32[1]{0}', space=sflag, size = 0x4, scoped, tag = 'scoped memory for tile.18']
  %s0 = inlined_call_operand.vmem [shape: f32[32], index: 0, kind: input, shape index: {}]
  %s1 = inlined_call_operand.vmem [shape: f32[4,32], index: 1, kind: output, shape index: {}]
  // Predicated region
  $region2: #{tile.18} parent=0 // pred_check
    _
  $region3: #{tile.18} parent=0 // pred_check_branch
    %3 = sbr.rel (0) target = $region5
  $region4: #{tile.18} parent=0 // pred_region
    _
  $region5: #{tile.18} parent=0 // pred_fallthru
    _
  %v4 = vld [vmem:[%s0] ss:$0 sm:$0xff]
  %5 = vst [vmem:[%s1] sm:$0xf] %v4

// kernel: tile.19
$region0: #{tile.19}
  %s0 = inlined_call_operand.vmem [shape: f32[4,32], index: 0, kind: input, shape index: {}]
  %s1 = inlined_call_operand.vmem [shape: f32[1,128], index: 1, kind: output, shape index: {}]
  $region1: #{tile.19} parent=0
    #allocation0 [shape = 'u8[4096]{0}', space=vmem, size = 0x1000, scoped, tag = 'scoped mem for output reshape']
    #allocation1 [shape = 'u8[4096]{0}', space=vmem, size = 0x1000, scoped, tag = 'scoped mem for input reshape']
    %s3 = sshllo.u32 0, 4
    %v4 = vld [vmem:[%s0] sm:%s3]
    %5 = vst [vmem:[#allocation1] sm:%s3] %v4
    %v6 = vld [vmem:[#allocation1] sm:$0x1]
    %vm7 = vcmask 261120
    %8 = vst.msk [vmem:[#allocation0] sm:$0x1] %vm7, %v6
    %s9 = scalar_lea.vmem [#allocation1], 3
    %v10 = vld [vmem:[%s9] sm:$0x1]
    %11 = vrot.lane.b32.xlu0 %v10, 96
    %v12 = vpop.permute.xlu0 %11
    %vm13 = vcmask 1048320
    %14 = vst.msk [vmem:[#allocation0] sm:$0x1] %vm13, %v12
    %s15 = scalar_lea.vmem [#allocation1], 2
    %v16 = vld [vmem:[%s15] sm:$0x1]
    %17 = vrot.lane.b32.xlu0 %v16, 64
    %v18 = vpop.permute.xlu0 %17
    %vm19 = vcmask 785920
    %20 = vst.msk [vmem:[#allocation0] sm:$0x1] %vm19, %v18
    %s21 = scalar_lea.vmem [#allocation1], 1
    %v22 = vld [vmem:[%s21] sm:$0x1]
    %23 = vrot.lane.b32.xlu0 %v22, 32
    %v24 = vpop.permute.xlu0 %23
    %vm25 = vcmask 523520
    %26 = vst.msk [vmem:[#allocation0] sm:$0x1] %vm25, %v24
    %s28 = sshllo.u32 0, 1
    %v30 = vld [vmem:[#allocation0] sm:%s28]
    %s31 = sshllo.u32 0, 1
    %32 = vst [vmem:[%s1] sm:%s31] %v30

// kernel: conv_bn_leaky.3
$region0: #{conv_bn_leaky.3}
  #allocation0 [shape = 'u32[]', space=smem, size = 0x4, offset = 0x4, fixed_abs, tag = 'smem constant byte address 0x4 - core index']
  #allocation1 [shape = 'u32[144,128]{1,0:T(1,128)}', space=vmem, size = 0x12000, scoped, tag = 'internal scratch']
  %s0 = inlined_call_operand.vmem [shape: bf16[512,128], index: 0, kind: input, shape index: {}]
  %s1 = inlined_call_operand.vmem [shape: f32[1,128], index: 1, kind: input, shape index: {}]
  %s2 = inlined_call_operand.vmem [shape: f32[1,128], index: 2, kind: input, shape index: {}]
  %s3 = inlined_call_operand.vmem [shape: bf16[512,128], index: 3, kind: output, shape index: {}]
  %s4 = sld [smem:[#allocation0]]
  $region22: #{conv_bn_leaky.3} parent=0
    _
  %s6 = ssub.s32 1, %s4
  %s7 = scalar_select 0, %s6, %s4
  // Predicated region
  $region2: #{conv_bn_leaky.3} parent=0 // pred_check
    _
  $region3: #{conv_bn_leaky.3} parent=0 // pred_check_branch
    %9 = sbr.rel (0) target = $region5
  $region4: #{conv_bn_leaky.3} parent=0 // pred_region
    _
  $region5: #{conv_bn_leaky.3} parent=0 // pred_fallthru
    _
  // Predicated region
  $region6: #{conv_bn_leaky.3} parent=0 // pred_check
    _
  $region7: #{conv_bn_leaky.3} parent=0 // pred_check_branch
    %11 = sbr.rel (0) target = $region9
  $region8: #{conv_bn_leaky.3} parent=0 // pred_region
    _
  $region9: #{conv_bn_leaky.3} parent=0 // pred_fallthru
    _
  // Predicated region
  $region10: #{conv_bn_leaky.3} parent=0 // pred_check
    _
  $region11: #{conv_bn_leaky.3} parent=0 // pred_check_branch
    %13 = sbr.rel (0) target = $region13
  $region12: #{conv_bn_leaky.3} parent=0 // pred_region
    _
  $region13: #{conv_bn_leaky.3} parent=0 // pred_fallthru
    _
  %v14 = vld [vmem:[%s0] sm:$0xf]
  %v15 = vld [vmem:[%s0 + $0x4] sm:$0xf]
  %v16 = vld [vmem:[%s0 + $0x8] sm:$0xf]
  %v17 = vld [vmem:[%s0 + $0xc] sm:$0xf]
  %v18 = vld [vmem:[%s0 + $0x10] sm:$0xf]
  %v19 = vld [vmem:[%s0 + $0x14] sm:$0xf]
  %v20 = vld [vmem:[%s0 + $0x18] sm:$0xf]
  %v21 = vld [vmem:[%s0 + $0x1c] sm:$0xf]
  %v22 = vld [vmem:[%s0 + $0x20] sm:$0xf]
  %v23 = vld [vmem:[%s0 + $0x24] sm:$0xf]
  %v24 = vld [vmem:[%s0 + $0x28] sm:$0xf]
  %v25 = vld [vmem:[%s0 + $0x2c] sm:$0xf]
  %v26 = vld [vmem:[%s0 + $0x30] sm:$0xf]
  %v27 = vld [vmem:[%s0 + $0x34] sm:$0xf]
  %v28 = vld [vmem:[%s0 + $0x38] sm:$0xf]
  %v29 = vld [vmem:[%s0 + $0x3c] sm:$0xf]
  %v30 = vld [vmem:[%s0 + $0x40] sm:$0xf]
  %v31 = vld [vmem:[%s0 + $0x44] sm:$0xf]
  %v32 = vld [vmem:[%s0 + $0x48] sm:$0xf]
  %v33 = vld [vmem:[%s0 + $0x4c] sm:$0xf]
  %v34 = vld [vmem:[%s0 + $0x50] sm:$0xf]
  %v35 = vld [vmem:[%s0 + $0x54] sm:$0xf]
  %v36 = vld [vmem:[%s0 + $0x58] sm:$0xf]
  %v37 = vld [vmem:[%s0 + $0x5c] sm:$0xf]
  %v38 = vld [vmem:[%s0 + $0x60] sm:$0xf]
  %v39 = vld [vmem:[%s0 + $0x64] sm:$0xf]
  %v40 = vld [vmem:[%s0 + $0x68] sm:$0xf]
  %v41 = vld [vmem:[%s0 + $0x6c] sm:$0xf]
  %v42 = vld [vmem:[%s0 + $0x70] sm:$0xf]
  %v43 = vld [vmem:[%s0 + $0x74] sm:$0xf]
  %v44 = vld [vmem:[%s0 + $0x78] sm:$0xf]
  %v45 = vld [vmem:[%s0 + $0x7c] sm:$0xf]
  %v46 = vld [vmem:[%s0 + $0x80] sm:$0xf]
  %v47 = vld [vmem:[%s0 + $0x84] sm:$0xf]
  %v48 = vld [vmem:[%s0 + $0x88] sm:$0xf]
  %v49 = vld [vmem:[%s0 + $0x8c] sm:$0xf]
  %v50 = vld [vmem:[%s0 + $0x90] sm:$0xf]
  %v51 = vld [vmem:[%s0 + $0x94] sm:$0xf]
  %v52 = vld [vmem:[%s0 + $0x98] sm:$0xf]
  %v53 = vld [vmem:[%s0 + $0x9c] sm:$0xf]
  %v54 = vld [vmem:[%s0 + $0xa0] sm:$0xf]
  %v55 = vld [vmem:[%s0 + $0xa4] sm:$0xf]
  %v56 = vld [vmem:[%s0 + $0xa8] sm:$0xf]
  %v57 = vld [vmem:[%s0 + $0xac] sm:$0xf]
  %v58 = vld [vmem:[%s0 + $0xb0] sm:$0xf]
  %v59 = vld [vmem:[%s0 + $0xb4] sm:$0xf]
  %v60 = vld [vmem:[%s0 + $0xb8] sm:$0xf]
  %v61 = vld [vmem:[%s0 + $0xbc] sm:$0xf]
  %v62 = vld [vmem:[%s0 + $0xc0] sm:$0xf]
  %v63 = vld [vmem:[%s0 + $0xc4] sm:$0xf]
  %v64 = vld [vmem:[%s0 + $0xc8] sm:$0xf]
  %v65 = vld [vmem:[%s0 + $0xcc] sm:$0xf]
  %v66 = vld [vmem:[%s0 + $0xd0] sm:$0xf]
  %v67 = vld [vmem:[%s0 + $0xd4] sm:$0xf]
  %v68 = vld [vmem:[%s0 + $0xd8] sm:$0xf]
  %v69 = vld [vmem:[%s0 + $0xdc] sm:$0xf]
  %v70 = vld [vmem:[%s0 + $0xe0] sm:$0xf]
  %v71 = vld [vmem:[%s0 + $0xe4] sm:$0xf]
  %v72 = vld [vmem:[%s0 + $0xe8] sm:$0xf]
  %v73 = vld [vmem:[%s0 + $0xec] sm:$0xf]
  %v74 = vld [vmem:[%s0 + $0xf0] sm:$0xf]
  %v75 = vld [vmem:[%s0 + $0xf4] sm:$0xf]
  %v76 = vld [vmem:[%s0 + $0xf8] sm:$0xf]
  %v77 = vld [vmem:[%s0 + $0xfc] sm:$0xf]
  %v78 = vunpack.c.l.bf16 %v14
  %v79 = vunpack.c.l.bf16 %v15
  %v80 = vunpack.c.l.bf16 %v16
  %v81 = vunpack.c.l.bf16 %v17
  %v82 = vunpack.c.l.bf16 %v18
  %v83 = vunpack.c.l.bf16 %v19
  %v84 = vunpack.c.l.bf16 %v20
  %v85 = vunpack.c.l.bf16 %v21
  %v86 = vunpack.c.l.bf16 %v22
  %v87 = vunpack.c.l.bf16 %v23
  %v88 = vunpack.c.l.bf16 %v24
  %v89 = vunpack.c.l.bf16 %v25
  %v90 = vunpack.c.l.bf16 %v26
  %v91 = vunpack.c.l.bf16 %v27
  %v92 = vunpack.c.l.bf16 %v28
  %v93 = vunpack.c.l.bf16 %v29
  %v94 = vunpack.c.l.bf16 %v30
  %v95 = vunpack.c.l.bf16 %v31
  %v96 = vunpack.c.l.bf16 %v32
  %v97 = vunpack.c.l.bf16 %v33
  %v98 = vunpack.c.l.bf16 %v34
  %v99 = vunpack.c.l.bf16 %v35
  %v100 = vunpack.c.l.bf16 %v36
  %v101 = vunpack.c.l.bf16 %v37
  %v102 = vunpack.c.l.bf16 %v38
  %v103 = vunpack.c.l.bf16 %v39
  %v104 = vunpack.c.l.bf16 %v40
  %v105 = vunpack.c.l.bf16 %v41
  %v106 = vunpack.c.l.bf16 %v42
  %v107 = vunpack.c.l.bf16 %v43
  %v108 = vunpack.c.l.bf16 %v44
  %v109 = vunpack.c.l.bf16 %v45
  %v110 = vunpack.c.l.bf16 %v46
  %v111 = vunpack.c.l.bf16 %v47
  %v112 = vunpack.c.l.bf16 %v48
  %v113 = vunpack.c.l.bf16 %v49
  %v114 = vunpack.c.l.bf16 %v50
  %v115 = vunpack.c.l.bf16 %v51
  %v116 = vunpack.c.l.bf16 %v52
  %v117 = vunpack.c.l.bf16 %v53
  %v118 = vunpack.c.l.bf16 %v54
  %v119 = vunpack.c.l.bf16 %v55
  %v120 = vunpack.c.l.bf16 %v56
  %v121 = vunpack.c.l.bf16 %v57
  %v122 = vunpack.c.l.bf16 %v58
  %v123 = vunpack.c.l.bf16 %v59
  %v124 = vunpack.c.l.bf16 %v60
  %v125 = vunpack.c.l.bf16 %v61
  %v126 = vunpack.c.l.bf16 %v62
  %v127 = vunpack.c.l.bf16 %v63
  %v128 = vunpack.c.l.bf16 %v64
  %v129 = vunpack.c.l.bf16 %v65
  %v130 = vunpack.c.l.bf16 %v66
  %v131 = vunpack.c.l.bf16 %v67
  %v132 = vunpack.c.l.bf16 %v68
  %v133 = vunpack.c.l.bf16 %v69
  %v134 = vunpack.c.l.bf16 %v70
  %v135 = vunpack.c.l.bf16 %v71
  %v136 = vunpack.c.l.bf16 %v72
  %v137 = vunpack.c.l.bf16 %v73
  %v138 = vunpack.c.l.bf16 %v74
  %v139 = vunpack.c.l.bf16 %v75
  %v140 = vunpack.c.l.bf16 %v76
  %v141 = vunpack.c.l.bf16 %v77
  %v142 = vld [vmem:[%s1] sm:$0x1]
  %v144 = vlaneseq
  %v145 = vshrl.u32 %v144, 7
  %v146 = vsub.s32 0, %v145
  %v147 = vrot.slane %v142, %v146
  %v149 = vmul.f32 %v78, %v147
  %v150 = vmul.f32 %v79, %v147
  %v151 = vmul.f32 %v80, %v147
  %v152 = vmul.f32 %v81, %v147
  %v153 = vmul.f32 %v82, %v147
  %v154 = vmul.f32 %v83, %v147
  %v155 = vmul.f32 %v84, %v147
  %v156 = vmul.f32 %v85, %v147
  %v157 = vmul.f32 %v86, %v147
  %v158 = vmul.f32 %v87, %v147
  %v159 = vmul.f32 %v88, %v147
  %v160 = vmul.f32 %v89, %v147
  %v161 = vmul.f32 %v90, %v147
  %v162 = vmul.f32 %v91, %v147
  %v163 = vmul.f32 %v92, %v147
  %v164 = vmul.f32 %v93, %v147
  %v165 = vmul.f32 %v94, %v147
  %v166 = vmul.f32 %v95, %v147
  %v167 = vmul.f32 %v96, %v147
  %v168 = vmul.f32 %v97, %v147
  %v169 = vmul.f32 %v98, %v147
  %v170 = vmul.f32 %v99, %v147
  %v171 = vmul.f32 %v100, %v147
  %v172 = vmul.f32 %v101, %v147
  %v173 = vmul.f32 %v102, %v147
  %v174 = vmul.f32 %v103, %v147
  %v175 = vmul.f32 %v104, %v147
  %v176 = vmul.f32 %v105, %v147
  %v177 = vmul.f32 %v106, %v147
  %v178 = vmul.f32 %v107, %v147
  %v179 = vmul.f32 %v108, %v147
  %v180 = vmul.f32 %v109, %v147
  %v181 = vmul.f32 %v110, %v147
  %v182 = vmul.f32 %v111, %v147
  %v183 = vmul.f32 %v112, %v147
  %v184 = vmul.f32 %v113, %v147
  %v185 = vmul.f32 %v114, %v147
  %v186 = vmul.f32 %v115, %v147
  %v187 = vmul.f32 %v116, %v147
  %v188 = vmul.f32 %v117, %v147
  %v189 = vmul.f32 %v118, %v147
  %v190 = vmul.f32 %v119, %v147
  %v191 = vmul.f32 %v120, %v147
  %v192 = vmul.f32 %v121, %v147
  %v193 = vmul.f32 %v122, %v147
  %v194 = vmul.f32 %v123, %v147
  %v195 = vmul.f32 %v124, %v147
  %v196 = vmul.f32 %v125, %v147
  %v197 = vmul.f32 %v126, %v147
  %v198 = vmul.f32 %v127, %v147
  %v199 = vmul.f32 %v128, %v147
  %v200 = vmul.f32 %v129, %v147
  %v201 = vmul.f32 %v130, %v147
  %v202 = vmul.f32 %v131, %v147
  %v203 = vmul.f32 %v132, %v147
  %v204 = vmul.f32 %v133, %v147
  %v205 = vmul.f32 %v134, %v147
  %v206 = vmul.f32 %v135, %v147
  %v207 = vmul.f32 %v136, %v147
  %v208 = vmul.f32 %v137, %v147
  %v209 = vmul.f32 %v138, %v147
  %v210 = vmul.f32 %v139, %v147
  %v211 = vmul.f32 %v140, %v147
  %v212 = vmul.f32 %v141, %v147
  %v213 = vld [vmem:[%s2] sm:$0x1]
  %v215 = vlaneseq
  %v216 = vshrl.u32 %v215, 7
  %v217 = vsub.s32 0, %v216
  %v218 = vrot.slane %v213, %v217
  %v220 = vadd.f32 %v149, %v218
  %v221 = vadd.f32 %v150, %v218
  %v222 = vadd.f32 %v151, %v218
  %v223 = vadd.f32 %v152, %v218
  %v224 = vadd.f32 %v153, %v218
  %v225 = vadd.f32 %v154, %v218
  %v226 = vadd.f32 %v155, %v218
  %v227 = vadd.f32 %v156, %v218
  %v228 = vadd.f32 %v157, %v218
  %v229 = vadd.f32 %v158, %v218
  %v230 = vadd.f32 %v159, %v218
  %v231 = vadd.f32 %v160, %v218
  %v232 = vadd.f32 %v161, %v218
  %v233 = vadd.f32 %v162, %v218
  %v234 = vadd.f32 %v163, %v218
  %v235 = vadd.f32 %v164, %v218
  %v236 = vadd.f32 %v165, %v218
  %v237 = vadd.f32 %v166, %v218
  %v238 = vadd.f32 %v167, %v218
  %v239 = vadd.f32 %v168, %v218
  %v240 = vadd.f32 %v169, %v218
  %v241 = vadd.f32 %v170, %v218
  %v242 = vadd.f32 %v171, %v218
  %v243 = vadd.f32 %v172, %v218
  %v244 = vadd.f32 %v173, %v218
  %v245 = vadd.f32 %v174, %v218
  %v246 = vadd.f32 %v175, %v218
  %v247 = vadd.f32 %v176, %v218
  %v248 = vadd.f32 %v177, %v218
  %v249 = vadd.f32 %v178, %v218
  %v250 = vadd.f32 %v179, %v218
  %v251 = vadd.f32 %v180, %v218
  %v252 = vadd.f32 %v181, %v218
  %v253 = vadd.f32 %v182, %v218
  %v254 = vadd.f32 %v183, %v218
  %v255 = vadd.f32 %v184, %v218
  %v256 = vadd.f32 %v185, %v218
  %v257 = vadd.f32 %v186, %v218
  %v258 = vadd.f32 %v187, %v218
  %v259 = vadd.f32 %v188, %v218
  %v260 = vadd.f32 %v189, %v218
  %v261 = vadd.f32 %v190, %v218
  %v262 = vadd.f32 %v191, %v218
  %v263 = vadd.f32 %v192, %v218
  %v264 = vadd.f32 %v193, %v218
  %v265 = vadd.f32 %v194, %v218
  %v266 = vadd.f32 %v195, %v218
  %v267 = vadd.f32 %v196, %v218
  %v268 = vadd.f32 %v197, %v218
  %v269 = vadd.f32 %v198, %v218
  %v270 = vadd.f32 %v199, %v218
  %v271 = vadd.f32 %v200, %v218
  %v272 = vadd.f32 %v201, %v218
  %v273 = vadd.f32 %v202, %v218
  %v274 = vadd.f32 %v203, %v218
  %v275 = vadd.f32 %v204, %v218
  %v276 = vadd.f32 %v205, %v218
  %v277 = vadd.f32 %v206, %v218
  %v278 = vadd.f32 %v207, %v218
  %v279 = vadd.f32 %v208, %v218
  %v280 = vadd.f32 %v209, %v218
  %v281 = vadd.f32 %v210, %v218
  %v282 = vadd.f32 %v211, %v218
  %v283 = vadd.f32 %v212, %v218
  %vm284 = vcmp.gt.f32.partialorder %v220, 0.0
  %vm285 = vcmp.gt.f32.partialorder %v221, 0.0
  %vm286 = vcmp.gt.f32.partialorder %v222, 0.0
  %vm287 = vcmp.gt.f32.partialorder %v223, 0.0
  %vm288 = vcmp.gt.f32.partialorder %v224, 0.0
  %vm289 = vcmp.gt.f32.partialorder %v225, 0.0
  %vm290 = vcmp.gt.f32.partialorder %v226, 0.0
  %vm291 = vcmp.gt.f32.partialorder %v227, 0.0
  %vm292 = vcmp.gt.f32.partialorder %v228, 0.0
  %vm293 = vcmp.gt.f32.partialorder %v229, 0.0
  %vm294 = vcmp.gt.f32.partialorder %v230, 0.0
  %vm295 = vcmp.gt.f32.partialorder %v231, 0.0
  %vm296 = vcmp.gt.f32.partialorder %v232, 0.0
  %vm297 = vcmp.gt.f32.partialorder %v233, 0.0
  %vm298 = vcmp.gt.f32.partialorder %v234, 0.0
  %vm299 = vcmp.gt.f32.partialorder %v235, 0.0
  %vm300 = vcmp.gt.f32.partialorder %v236, 0.0
  %vm301 = vcmp.gt.f32.partialorder %v237, 0.0
  %vm302 = vcmp.gt.f32.partialorder %v238, 0.0
  %vm303 = vcmp.gt.f32.partialorder %v239, 0.0
  %vm304 = vcmp.gt.f32.partialorder %v240, 0.0
  %vm305 = vcmp.gt.f32.partialorder %v241, 0.0
  %vm306 = vcmp.gt.f32.partialorder %v242, 0.0
  %vm307 = vcmp.gt.f32.partialorder %v243, 0.0
  %vm308 = vcmp.gt.f32.partialorder %v244, 0.0
  %vm309 = vcmp.gt.f32.partialorder %v245, 0.0
  %vm310 = vcmp.gt.f32.partialorder %v246, 0.0
  %vm311 = vcmp.gt.f32.partialorder %v247, 0.0
  %vm312 = vcmp.gt.f32.partialorder %v248, 0.0
  %vm313 = vcmp.gt.f32.partialorder %v249, 0.0
  %vm314 = vcmp.gt.f32.partialorder %v250, 0.0
  %vm315 = vcmp.gt.f32.partialorder %v251, 0.0
  %vm316 = vcmp.gt.f32.partialorder %v252, 0.0
  %vm317 = vcmp.gt.f32.partialorder %v253, 0.0
  %vm318 = vcmp.gt.f32.partialorder %v254, 0.0
  %vm319 = vcmp.gt.f32.partialorder %v255, 0.0
  %vm320 = vcmp.gt.f32.partialorder %v256, 0.0
  %vm321 = vcmp.gt.f32.partialorder %v257, 0.0
  %vm322 = vcmp.gt.f32.partialorder %v258, 0.0
  %vm323 = vcmp.gt.f32.partialorder %v259, 0.0
  %vm324 = vcmp.gt.f32.partialorder %v260, 0.0
  %vm325 = vcmp.gt.f32.partialorder %v261, 0.0
  %vm326 = vcmp.gt.f32.partialorder %v262, 0.0
  %vm327 = vcmp.gt.f32.partialorder %v263, 0.0
  %vm328 = vcmp.gt.f32.partialorder %v264, 0.0
  %vm329 = vcmp.gt.f32.partialorder %v265, 0.0
  %vm330 = vcmp.gt.f32.partialorder %v266, 0.0
  %vm331 = vcmp.gt.f32.partialorder %v267, 0.0
  %vm332 = vcmp.gt.f32.partialorder %v268, 0.0
  %vm333 = vcmp.gt.f32.partialorder %v269, 0.0
  %vm334 = vcmp.gt.f32.partialorder %v270, 0.0
  %vm335 = vcmp.gt.f32.partialorder %v271, 0.0
  %vm336 = vcmp.gt.f32.partialorder %v272, 0.0
  %vm337 = vcmp.gt.f32.partialorder %v273, 0.0
  %vm338 = vcmp.gt.f32.partialorder %v274, 0.0
  %vm339 = vcmp.gt.f32.partialorder %v275, 0.0
  %vm340 = vcmp.gt.f32.partialorder %v276, 0.0
  %vm341 = vcmp.gt.f32.partialorder %v277, 0.0
  %vm342 = vcmp.gt.f32.partialorder %v278, 0.0
  %vm343 = vcmp.gt.f32.partialorder %v279, 0.0
  %vm344 = vcmp.gt.f32.partialorder %v280, 0.0
  %vm345 = vcmp.gt.f32.partialorder %v281, 0.0
  %vm346 = vcmp.gt.f32.partialorder %v282, 0.0
  %vm347 = vcmp.gt.f32.partialorder %v283, 0.0
  %v348 = vmul.f32 %v220, 0.1
  %v349 = vmul.f32 %v221, 0.1
  %v350 = vmul.f32 %v222, 0.1
  %v351 = vmul.f32 %v223, 0.1
  %v352 = vmul.f32 %v224, 0.1
  %v353 = vmul.f32 %v225, 0.1
  %v354 = vmul.f32 %v226, 0.1
  %v355 = vmul.f32 %v227, 0.1
  %v356 = vmul.f32 %v228, 0.1
  %v357 = vmul.f32 %v229, 0.1
  %v358 = vmul.f32 %v230, 0.1
  %v359 = vmul.f32 %v231, 0.1
  %v360 = vmul.f32 %v232, 0.1
  %v361 = vmul.f32 %v233, 0.1
  %v362 = vmul.f32 %v234, 0.1
  %v363 = vmul.f32 %v235, 0.1
  %v364 = vmul.f32 %v236, 0.1
  %v365 = vmul.f32 %v237, 0.1
  %v366 = vmul.f32 %v238, 0.1
  %v367 = vmul.f32 %v239, 0.1
  %v368 = vmul.f32 %v240, 0.1
  %v369 = vmul.f32 %v241, 0.1
  %v370 = vmul.f32 %v242, 0.1
  %v371 = vmul.f32 %v243, 0.1
  %v372 = vmul.f32 %v244, 0.1
  %v373 = vmul.f32 %v245, 0.1
  %v374 = vmul.f32 %v246, 0.1
  %v375 = vmul.f32 %v247, 0.1
  %v376 = vmul.f32 %v248, 0.1
  %v377 = vmul.f32 %v249, 0.1
  %v378 = vmul.f32 %v250, 0.1
  %v379 = vmul.f32 %v251, 0.1
  %v380 = vmul.f32 %v252, 0.1
  %v381 = vmul.f32 %v253, 0.1
  %v382 = vmul.f32 %v254, 0.1
  %v383 = vmul.f32 %v255, 0.1
  %v384 = vmul.f32 %v256, 0.1
  %v385 = vmul.f32 %v257, 0.1
  %v386 = vmul.f32 %v258, 0.1
  %v387 = vmul.f32 %v259, 0.1
  %v388 = vmul.f32 %v260, 0.1
  %v389 = vmul.f32 %v261, 0.1
  %v390 = vmul.f32 %v262, 0.1
  %v391 = vmul.f32 %v263, 0.1
  %v392 = vmul.f32 %v264, 0.1
  %v393 = vmul.f32 %v265, 0.1
  %v394 = vmul.f32 %v266, 0.1
  %v395 = vmul.f32 %v267, 0.1
  %v396 = vmul.f32 %v268, 0.1
  %v397 = vmul.f32 %v269, 0.1
  %v398 = vmul.f32 %v270, 0.1
  %v399 = vmul.f32 %v271, 0.1
  %v400 = vmul.f32 %v272, 0.1
  %v401 = vmul.f32 %v273, 0.1
  %v402 = vmul.f32 %v274, 0.1
  %v403 = vmul.f32 %v275, 0.1
  %v404 = vmul.f32 %v276, 0.1
  %v405 = vmul.f32 %v277, 0.1
  %v406 = vmul.f32 %v278, 0.1
  %v407 = vmul.f32 %v279, 0.1
  %v408 = vmul.f32 %v280, 0.1
  %v409 = vmul.f32 %v281, 0.1
  %v410 = vmul.f32 %v282, 0.1
  %v411 = vmul.f32 %v283, 0.1
  %v412 = vsel %vm284, %v220, %v348
  %v413 = vsel %vm285, %v221, %v349
  %v414 = vsel %vm286, %v222, %v350
  %v415 = vsel %vm287, %v223, %v351
  %v416 = vsel %vm288, %v224, %v352
  %v417 = vsel %vm289, %v225, %v353
  %v418 = vsel %vm290, %v226, %v354
  %v419 = vsel %vm291, %v227, %v355
  %v420 = vsel %vm292, %v228, %v356
  %v421 = vsel %vm293, %v229, %v357
  %v422 = vsel %vm294, %v230, %v358
  %v423 = vsel %vm295, %v231, %v359
  %v424 = vsel %vm296, %v232, %v360
  %v425 = vsel %vm297, %v233, %v361
  %v426 = vsel %vm298, %v234, %v362
  %v427 = vsel %vm299, %v235, %v363
  %v428 = vsel %vm300, %v236, %v364
  %v429 = vsel %vm301, %v237, %v365
  %v430 = vsel %vm302, %v238, %v366
  %v431 = vsel %vm303, %v239, %v367
  %v432 = vsel %vm304, %v240, %v368
  %v433 = vsel %vm305, %v241, %v369
  %v434 = vsel %vm306, %v242, %v370
  %v435 = vsel %vm307, %v243, %v371
  %v436 = vsel %vm308, %v244, %v372
  %v437 = vsel %vm309, %v245, %v373
  %v438 = vsel %vm310, %v246, %v374
  %v439 = vsel %vm311, %v247, %v375
  %v440 = vsel %vm312, %v248, %v376
  %v441 = vsel %vm313, %v249, %v377
  %v442 = vsel %vm314, %v250, %v378
  %v443 = vsel %vm315, %v251, %v379
  %v444 = vsel %vm316, %v252, %v380
  %v445 = vsel %vm317, %v253, %v381
  %v446 = vsel %vm318, %v254, %v382
  %v447 = vsel %vm319, %v255, %v383
  %v448 = vsel %vm320, %v256, %v384
  %v449 = vsel %vm321, %v257, %v385
  %v450 = vsel %vm322, %v258, %v386
  %v451 = vsel %vm323, %v259, %v387
  %v452 = vsel %vm324, %v260, %v388
  %v453 = vsel %vm325, %v261, %v389
  %v454 = vsel %vm326, %v262, %v390
  %v455 = vsel %vm327, %v263, %v391
  %v456 = vsel %vm328, %v264, %v392
  %v457 = vsel %vm329, %v265, %v393
  %v458 = vsel %vm330, %v266, %v394
  %v459 = vsel %vm331, %v267, %v395
  %v460 = vsel %vm332, %v268, %v396
  %v461 = vsel %vm333, %v269, %v397
  %v462 = vsel %vm334, %v270, %v398
  %v463 = vsel %vm335, %v271, %v399
  %v464 = vsel %vm336, %v272, %v400
  %v465 = vsel %vm337, %v273, %v401
  %v466 = vsel %vm338, %v274, %v402
  %v467 = vsel %vm339, %v275, %v403
  %v468 = vsel %vm340, %v276, %v404
  %v469 = vsel %vm341, %v277, %v405
  %v470 = vsel %vm342, %v278, %v406
  %v471 = vsel %vm343, %v279, %v407
  %v472 = vsel %vm344, %v280, %v408
  %v473 = vsel %vm345, %v281, %v409
  %v474 = vsel %vm346, %v282, %v410
  %v475 = vsel %vm347, %v283, %v411
  %v476 = vpack.c.bf16 %v413, %v412
  %v477 = vpack.c.bf16 %v415, %v414
  %v478 = vpack.c.bf16 %v417, %v416
  %v479 = vpack.c.bf16 %v419, %v418
  %v480 = vpack.c.bf16 %v421, %v420
  %v481 = vpack.c.bf16 %v423, %v422
  %v482 = vpack.c.bf16 %v425, %v424
  %v483 = vpack.c.bf16 %v427, %v426
  %v484 = vpack.c.bf16 %v429, %v428
  %v485 = vpack.c.bf16 %v431, %v430
  %v486 = vpack.c.bf16 %v433, %v432
  %v487 = vpack.c.bf16 %v435, %v434
  %v488 = vpack.c.bf16 %v437, %v436
  %v489 = vpack.c.bf16 %v439, %v438
  %v490 = vpack.c.bf16 %v441, %v440
  %v491 = vpack.c.bf16 %v443, %v442
  %v492 = vpack.c.bf16 %v445, %v444
  %v493 = vpack.c.bf16 %v447, %v446
  %v494 = vpack.c.bf16 %v449, %v448
  %v495 = vpack.c.bf16 %v451, %v450
  %v496 = vpack.c.bf16 %v453, %v452
  %v497 = vpack.c.bf16 %v455, %v454
  %v498 = vpack.c.bf16 %v457, %v456
  %v499 = vpack.c.bf16 %v459, %v458
  %v500 = vpack.c.bf16 %v461, %v460
  %v501 = vpack.c.bf16 %v463, %v462
  %v502 = vpack.c.bf16 %v465, %v464
  %v503 = vpack.c.bf16 %v467, %v466
  %v504 = vpack.c.bf16 %v469, %v468
  %v505 = vpack.c.bf16 %v471, %v470
  %v506 = vpack.c.bf16 %v473, %v472
  %v507 = vpack.c.bf16 %v475, %v474
  %v540 = vunpack.c.l.b16 %v476
  %v541 = vunpack.c.h.b16 %v476
  %v542 = vunpack.c.l.b16 %v477
  %v543 = vunpack.c.h.b16 %v477
  %v544 = vunpack.c.l.b16 %v478
  %v545 = vunpack.c.h.b16 %v478
  %v546 = vunpack.c.l.b16 %v479
  %v547 = vunpack.c.h.b16 %v479
  %v548 = vunpack.c.l.b16 %v480
  %v549 = vunpack.c.h.b16 %v480
  %v550 = vunpack.c.l.b16 %v481
  %v551 = vunpack.c.h.b16 %v481
  %v552 = vunpack.c.l.b16 %v482
  %v553 = vunpack.c.h.b16 %v482
  %v554 = vunpack.c.l.b16 %v483
  %v555 = vunpack.c.h.b16 %v483
  %v556 = vunpack.c.l.b16 %v484
  %v557 = vunpack.c.h.b16 %v484
  %v558 = vunpack.c.l.b16 %v485
  %v559 = vunpack.c.h.b16 %v485
  %v560 = vunpack.c.l.b16 %v486
  %v561 = vunpack.c.h.b16 %v486
  %v562 = vunpack.c.l.b16 %v487
  %v563 = vunpack.c.h.b16 %v487
  %v564 = vunpack.c.l.b16 %v488
  %v565 = vunpack.c.h.b16 %v488
  %v566 = vunpack.c.l.b16 %v489
  %v567 = vunpack.c.h.b16 %v489
  %v568 = vunpack.c.l.b16 %v490
  %v569 = vunpack.c.h.b16 %v490
  %v570 = vunpack.c.l.b16 %v491
  %v571 = vunpack.c.h.b16 %v491
  %v572 = vunpack.c.l.b16 %v492
  %v573 = vunpack.c.h.b16 %v492
  %v574 = vunpack.c.l.b16 %v493
  %v575 = vunpack.c.h.b16 %v493
  %v576 = vunpack.c.l.b16 %v494
  %v577 = vunpack.c.h.b16 %v494
  %v578 = vunpack.c.l.b16 %v495
  %v579 = vunpack.c.h.b16 %v495
  %v580 = vunpack.c.l.b16 %v496
  %v581 = vunpack.c.h.b16 %v496
  %v582 = vunpack.c.l.b16 %v497
  %v583 = vunpack.c.h.b16 %v497
  %v584 = vunpack.c.l.b16 %v498
  %v585 = vunpack.c.h.b16 %v498
  %v586 = vunpack.c.l.b16 %v499
  %v587 = vunpack.c.h.b16 %v499
  %v588 = vunpack.c.l.b16 %v500
  %v589 = vunpack.c.h.b16 %v500
  %v590 = vunpack.c.l.b16 %v501
  %v591 = vunpack.c.h.b16 %v501
  %v592 = vunpack.c.l.b16 %v502
  %v593 = vunpack.c.h.b16 %v502
  %v594 = vunpack.c.l.b16 %v503
  %v595 = vunpack.c.h.b16 %v503
  %v596 = vunpack.c.l.b16 %v504
  %v597 = vunpack.c.h.b16 %v504
  %v598 = vunpack.c.l.b16 %v505
  %v599 = vunpack.c.h.b16 %v505
  %v600 = vunpack.c.l.b16 %v506
  %v601 = vunpack.c.h.b16 %v506
  %v602 = vunpack.c.l.b16 %v507
  %v603 = vunpack.c.h.b16 %v507
  %v604 = vpack.c.b16 %v540, %v540
  %v605 = vpack.c.b16 %v541, %v541
  %v606 = vpack.c.b16 %v542, %v542
  %v607 = vpack.c.b16 %v543, %v543
  %v608 = vpack.c.b16 %v544, %v544
  %v609 = vpack.c.b16 %v545, %v545
  %v610 = vpack.c.b16 %v546, %v546
  %v611 = vpack.c.b16 %v547, %v547
  %v612 = vpack.c.b16 %v548, %v548
  %v613 = vpack.c.b16 %v549, %v549
  %v614 = vpack.c.b16 %v550, %v550
  %v615 = vpack.c.b16 %v551, %v551
  %v616 = vpack.c.b16 %v552, %v552
  %v617 = vpack.c.b16 %v553, %v553
  %v618 = vpack.c.b16 %v554, %v554
  %v619 = vpack.c.b16 %v555, %v555
  %v620 = vpack.c.b16 %v556, %v556
  %v621 = vpack.c.b16 %v557, %v557
  %v622 = vpack.c.b16 %v558, %v558
  %v623 = vpack.c.b16 %v559, %v559
  %v624 = vpack.c.b16 %v560, %v560
  %v625 = vpack.c.b16 %v561, %v561
  %v626 = vpack.c.b16 %v562, %v562
  %v627 = vpack.c.b16 %v563, %v563
  %v628 = vpack.c.b16 %v564, %v564
  %v629 = vpack.c.b16 %v565, %v565
  %v630 = vpack.c.b16 %v566, %v566
  %v631 = vpack.c.b16 %v567, %v567
  %v632 = vpack.c.b16 %v568, %v568
  %v633 = vpack.c.b16 %v569, %v569
  %v634 = vpack.c.b16 %v570, %v570
  %v635 = vpack.c.b16 %v571, %v571
  %v636 = vpack.c.b16 %v572, %v572
  %v637 = vpack.c.b16 %v573, %v573
  %v638 = vpack.c.b16 %v574, %v574
  %v639 = vpack.c.b16 %v575, %v575
  %v640 = vpack.c.b16 %v576, %v576
  %v641 = vpack.c.b16 %v577, %v577
  %v642 = vpack.c.b16 %v578, %v578
  %v643 = vpack.c.b16 %v579, %v579
  %v644 = vpack.c.b16 %v580, %v580
  %v645 = vpack.c.b16 %v581, %v581
  %v646 = vpack.c.b16 %v582, %v582
  %v647 = vpack.c.b16 %v583, %v583
  %v648 = vpack.c.b16 %v584, %v584
  %v649 = vpack.c.b16 %v585, %v585
  %v650 = vpack.c.b16 %v586, %v586
  %v651 = vpack.c.b16 %v587, %v587
  %v652 = vpack.c.b16 %v588, %v588
  %v653 = vpack.c.b16 %v589, %v589
  %v654 = vpack.c.b16 %v590, %v590
  %v655 = vpack.c.b16 %v591, %v591
  %v656 = vpack.c.b16 %v592, %v592
  %v657 = vpack.c.b16 %v593, %v593
  %v658 = vpack.c.b16 %v594, %v594
  %v659 = vpack.c.b16 %v595, %v595
  %v660 = vpack.c.b16 %v596, %v596
  %v661 = vpack.c.b16 %v597, %v597
  %v662 = vpack.c.b16 %v598, %v598
  %v663 = vpack.c.b16 %v599, %v599
  %v664 = vpack.c.b16 %v600, %v600
  %v665 = vpack.c.b16 %v601, %v601
  %v666 = vpack.c.b16 %v602, %v602
  %v667 = vpack.c.b16 %v603, %v603
  %732 = vst [vmem:[%s3] sm:$0xf] %v604
  %733 = vst [vmem:[%s3 + $0x4] sm:$0xf] %v605
  %734 = vst [vmem:[%s3 + $0x8] sm:$0xf] %v606
  %735 = vst [vmem:[%s3 + $0xc] sm:$0xf] %v607
  %736 = vst [vmem:[%s3 + $0x10] sm:$0xf] %v608
  %737 = vst [vmem:[%s3 + $0x14] sm:$0xf] %v609
  %738 = vst [vmem:[%s3 + $0x18] sm:$0xf] %v610
  %739 = vst [vmem:[%s3 + $0x1c] sm:$0xf] %v611
  %740 = vst [vmem:[%s3 + $0x20] sm:$0xf] %v612
  %741 = vst [vmem:[%s3 + $0x24] sm:$0xf] %v613
  %742 = vst [vmem:[%s3 + $0x28] sm:$0xf] %v614
  %743 = vst [vmem:[%s3 + $0x2c] sm:$0xf] %v615
  %744 = vst [vmem:[%s3 + $0x30] sm:$0xf] %v616
  %745 = vst [vmem:[%s3 + $0x34] sm:$0xf] %v617
  %746 = vst [vmem:[%s3 + $0x38] sm:$0xf] %v618
  %747 = vst [vmem:[%s3 + $0x3c] sm:$0xf] %v619
  %748 = vst [vmem:[%s3 + $0x40] sm:$0xf] %v620
  %749 = vst [vmem:[%s3 + $0x44] sm:$0xf] %v621
  %750 = vst [vmem:[%s3 + $0x48] sm:$0xf] %v622
  %751 = vst [vmem:[%s3 + $0x4c] sm:$0xf] %v623
  %752 = vst [vmem:[%s3 + $0x50] sm:$0xf] %v624
  %753 = vst [vmem:[%s3 + $0x54] sm:$0xf] %v625
  %754 = vst [vmem:[%s3 + $0x58] sm:$0xf] %v626
  %755 = vst [vmem:[%s3 + $0x5c] sm:$0xf] %v627
  %756 = vst [vmem:[%s3 + $0x60] sm:$0xf] %v628
  %757 = vst [vmem:[%s3 + $0x64] sm:$0xf] %v629
  %758 = vst [vmem:[%s3 + $0x68] sm:$0xf] %v630
  %759 = vst [vmem:[%s3 + $0x6c] sm:$0xf] %v631
  %760 = vst [vmem:[%s3 + $0x70] sm:$0xf] %v632
  %761 = vst [vmem:[%s3 + $0x74] sm:$0xf] %v633
  %762 = vst [vmem:[%s3 + $0x78] sm:$0xf] %v634
  %763 = vst [vmem:[%s3 + $0x7c] sm:$0xf] %v635
  %764 = vst [vmem:[%s3 + $0x80] sm:$0xf] %v636
  %765 = vst [vmem:[%s3 + $0x84] sm:$0xf] %v637
  %766 = vst [vmem:[%s3 + $0x88] sm:$0xf] %v638
  %767 = vst [vmem:[%s3 + $0x8c] sm:$0xf] %v639
  %768 = vst [vmem:[%s3 + $0x90] sm:$0xf] %v640
  %769 = vst [vmem:[%s3 + $0x94] sm:$0xf] %v641
  %770 = vst [vmem:[%s3 + $0x98] sm:$0xf] %v642
  %771 = vst [vmem:[%s3 + $0x9c] sm:$0xf] %v643
  %772 = vst [vmem:[%s3 + $0xa0] sm:$0xf] %v644
  %773 = vst [vmem:[%s3 + $0xa4] sm:$0xf] %v645
  %774 = vst [vmem:[%s3 + $0xa8] sm:$0xf] %v646
  %775 = vst [vmem:[%s3 + $0xac] sm:$0xf] %v647
  %776 = vst [vmem:[%s3 + $0xb0] sm:$0xf] %v648
  %777 = vst [vmem:[%s3 + $0xb4] sm:$0xf] %v649
  %778 = vst [vmem:[%s3 + $0xb8] sm:$0xf] %v650
  %779 = vst [vmem:[%s3 + $0xbc] sm:$0xf] %v651
  %780 = vst [vmem:[%s3 + $0xc0] sm:$0xf] %v652
  %781 = vst [vmem:[%s3 + $0xc4] sm:$0xf] %v653
  %782 = vst [vmem:[%s3 + $0xc8] sm:$0xf] %v654
  %783 = vst [vmem:[%s3 + $0xcc] sm:$0xf] %v655
  %784 = vst [vmem:[%s3 + $0xd0] sm:$0xf] %v656
  %785 = vst [vmem:[%s3 + $0xd4] sm:$0xf] %v657
  %786 = vst [vmem:[%s3 + $0xd8] sm:$0xf] %v658
  %787 = vst [vmem:[%s3 + $0xdc] sm:$0xf] %v659
  %788 = vst [vmem:[%s3 + $0xe0] sm:$0xf] %v660
  %789 = vst [vmem:[%s3 + $0xe4] sm:$0xf] %v661
  %790 = vst [vmem:[%s3 + $0xe8] sm:$0xf] %v662
  %791 = vst [vmem:[%s3 + $0xec] sm:$0xf] %v663
  %792 = vst [vmem:[%s3 + $0xf0] sm:$0xf] %v664
  %793 = vst [vmem:[%s3 + $0xf4] sm:$0xf] %v665
  %794 = vst [vmem:[%s3 + $0xf8] sm:$0xf] %v666
  %795 = vst [vmem:[%s3 + $0xfc] sm:$0xf] %v667
  // Predicated region
  $region14: #{conv_bn_leaky.3} parent=0 // pred_check
    _
  $region15: #{conv_bn_leaky.3} parent=0 // pred_check_branch
    %797 = sbr.rel (0) target = $region17
  $region16: #{conv_bn_leaky.3} parent=0 // pred_region
    _
  $region17: #{conv_bn_leaky.3} parent=0 // pred_fallthru
    _
  // Predicated region
  $region18: #{conv_bn_leaky.3} parent=0 // pred_check
    _
  $region19: #{conv_bn_leaky.3} parent=0 // pred_check_branch
    %799 = sbr.rel (0) target = $region21
  $region20: #{conv_bn_leaky.3} parent=0 // pred_region
    _
  $region21: #{conv_bn_leaky.3} parent=0 // pred_fallthru
    _

// kernel: conv_bn_leaky.2
$region0: #{conv_bn_leaky.2}
  #allocation0 [shape = 'u32[]', space=smem, size = 0x4, offset = 0x4, fixed_abs, tag = 'smem constant byte address 0x4 - core index']
  #allocation1 [shape = 'u32[144,128]{1,0:T(1,128)}', space=vmem, size = 0x12000, scoped, tag = 'internal scratch']
  #allocation2 [shape = 'f32[2048,32]{1,0:T(8,128)}', space=vmem, size = 0x100000, scoped, tag = 'scratch operand']
  %s0 = inlined_call_operand.vmem [shape: bf16[2048,32], index: 0, kind: input, shape index: {}]
  %s1 = inlined_call_operand.vmem [shape: bf16[32,32], index: 1, kind: input, shape index: {}]
  %s2 = inlined_call_operand.vmem [shape: bf16[2048,32], index: 2, kind: output, shape index: {0}]
  %s3 = inlined_call_operand.vmem [shape: f32[8,32], index: 3, kind: output, shape index: {1}]
  %4 = xla_tuple %s2, %s3
  %s5 = sld [smem:[#allocation0]]
  $region26: #{conv_bn_leaky.2} parent=0
    _
  %s7 = ssub.s32 1, %s5
  %s8 = scalar_select 0, %s7, %s5
  // Predicated region
  $region2: #{conv_bn_leaky.2} parent=0 // pred_check
    _
  $region3: #{conv_bn_leaky.2} parent=0 // pred_check_branch
    %10 = sbr.rel (0) target = $region5
  $region4: #{conv_bn_leaky.2} parent=0 // pred_region
    _
  $region5: #{conv_bn_leaky.2} parent=0 // pred_fallthru
    _
  // Predicated region
  $region6: #{conv_bn_leaky.2} parent=0 // pred_check
    _
  $region7: #{conv_bn_leaky.2} parent=0 // pred_check_branch
    %12 = sbr.rel (0) target = $region9
  $region8: #{conv_bn_leaky.2} parent=0 // pred_region
    _
  $region9: #{conv_bn_leaky.2} parent=0 // pred_fallthru
    _
  %v14 = vld [vmem:[%s0] sm:$0xf]
  %v15 = vld [vmem:[%s0 + $0x4] sm:$0xf]
  %v16 = vld [vmem:[%s0 + $0x8] sm:$0xf]
  %v17 = vld [vmem:[%s0 + $0xc] sm:$0xf]
  %v18 = vld [vmem:[%s0 + $0x10] sm:$0xf]
  %v19 = vld [vmem:[%s0 + $0x14] sm:$0xf]
  %v20 = vld [vmem:[%s0 + $0x18] sm:$0xf]
  %v21 = vld [vmem:[%s0 + $0x1c] sm:$0xf]
  %v22 = vld [vmem:[%s0 + $0x20] sm:$0xf]
  %v23 = vld [vmem:[%s0 + $0x24] sm:$0xf]
  %v24 = vld [vmem:[%s0 + $0x28] sm:$0xf]
  %v25 = vld [vmem:[%s0 + $0x2c] sm:$0xf]
  %v26 = vld [vmem:[%s0 + $0x30] sm:$0xf]
  %v27 = vld [vmem:[%s0 + $0x34] sm:$0xf]
  %v28 = vld [vmem:[%s0 + $0x38] sm:$0xf]
  %v29 = vld [vmem:[%s0 + $0x3c] sm:$0xf]
  %v30 = vld [vmem:[%s0 + $0x40] sm:$0xf]
  %v31 = vld [vmem:[%s0 + $0x44] sm:$0xf]
  %v32 = vld [vmem:[%s0 + $0x48] sm:$0xf]
  %v33 = vld [vmem:[%s0 + $0x4c] sm:$0xf]
  %v34 = vld [vmem:[%s0 + $0x50] sm:$0xf]
  %v35 = vld [vmem:[%s0 + $0x54] sm:$0xf]
  %v36 = vld [vmem:[%s0 + $0x58] sm:$0xf]
  %v37 = vld [vmem:[%s0 + $0x5c] sm:$0xf]
  %v38 = vld [vmem:[%s0 + $0x60] sm:$0xf]
  %v39 = vld [vmem:[%s0 + $0x64] sm:$0xf]
  %v40 = vld [vmem:[%s0 + $0x68] sm:$0xf]
  %v41 = vld [vmem:[%s0 + $0x6c] sm:$0xf]
  %v42 = vld [vmem:[%s0 + $0x70] sm:$0xf]
  %v43 = vld [vmem:[%s0 + $0x74] sm:$0xf]
  %v44 = vld [vmem:[%s0 + $0x78] sm:$0xf]
  %v45 = vld [vmem:[%s0 + $0x7c] sm:$0xf]
  %v46 = vld [vmem:[%s0 + $0x80] sm:$0xf]
  %v47 = vld [vmem:[%s0 + $0x84] sm:$0xf]
  %v48 = vld [vmem:[%s0 + $0x88] sm:$0xf]
  %v49 = vld [vmem:[%s0 + $0x8c] sm:$0xf]
  %v50 = vld [vmem:[%s0 + $0x90] sm:$0xf]
  %v51 = vld [vmem:[%s0 + $0x94] sm:$0xf]
  %v52 = vld [vmem:[%s0 + $0x98] sm:$0xf]
  %v53 = vld [vmem:[%s0 + $0x9c] sm:$0xf]
  %v54 = vld [vmem:[%s0 + $0xa0] sm:$0xf]
  %v55 = vld [vmem:[%s0 + $0xa4] sm:$0xf]
  %v56 = vld [vmem:[%s0 + $0xa8] sm:$0xf]
  %v57 = vld [vmem:[%s0 + $0xac] sm:$0xf]
  %v58 = vld [vmem:[%s0 + $0xb0] sm:$0xf]
  %v59 = vld [vmem:[%s0 + $0xb4] sm:$0xf]
  %v60 = vld [vmem:[%s0 + $0xb8] sm:$0xf]
  %v61 = vld [vmem:[%s0 + $0xbc] sm:$0xf]
  %v62 = vld [vmem:[%s0 + $0xc0] sm:$0xf]
  %v63 = vld [vmem:[%s0 + $0xc4] sm:$0xf]
  %v64 = vld [vmem:[%s0 + $0xc8] sm:$0xf]
  %v65 = vld [vmem:[%s0 + $0xcc] sm:$0xf]
  %v66 = vld [vmem:[%s0 + $0xd0] sm:$0xf]
  %v67 = vld [vmem:[%s0 + $0xd4] sm:$0xf]
  %v68 = vld [vmem:[%s0 + $0xd8] sm:$0xf]
  %v69 = vld [vmem:[%s0 + $0xdc] sm:$0xf]
  %v70 = vld [vmem:[%s0 + $0xe0] sm:$0xf]
  %v71 = vld [vmem:[%s0 + $0xe4] sm:$0xf]
  %v72 = vld [vmem:[%s0 + $0xe8] sm:$0xf]
  %v73 = vld [vmem:[%s0 + $0xec] sm:$0xf]
  %v74 = vld [vmem:[%s0 + $0xf0] sm:$0xf]
  %v75 = vld [vmem:[%s0 + $0xf4] sm:$0xf]
  %v76 = vld [vmem:[%s0 + $0xf8] sm:$0xf]
  %v77 = vld [vmem:[%s0 + $0xfc] sm:$0xf]
  %v78 = vld [vmem:[%s0 + $0x100] sm:$0xf]
  %v79 = vld [vmem:[%s0 + $0x104] sm:$0xf]
  %v80 = vld [vmem:[%s0 + $0x108] sm:$0xf]
  %v81 = vld [vmem:[%s0 + $0x10c] sm:$0xf]
  %v82 = vld [vmem:[%s0 + $0x110] sm:$0xf]
  %v83 = vld [vmem:[%s0 + $0x114] sm:$0xf]
  %v84 = vld [vmem:[%s0 + $0x118] sm:$0xf]
  %v85 = vld [vmem:[%s0 + $0x11c] sm:$0xf]
  %v86 = vld [vmem:[%s0 + $0x120] sm:$0xf]
  %v87 = vld [vmem:[%s0 + $0x124] sm:$0xf]
  %v88 = vld [vmem:[%s0 + $0x128] sm:$0xf]
  %v89 = vld [vmem:[%s0 + $0x12c] sm:$0xf]
  %v90 = vld [vmem:[%s0 + $0x130] sm:$0xf]
  %v91 = vld [vmem:[%s0 + $0x134] sm:$0xf]
  %v92 = vld [vmem:[%s0 + $0x138] sm:$0xf]
  %v93 = vld [vmem:[%s0 + $0x13c] sm:$0xf]
  %v94 = vld [vmem:[%s0 + $0x140] sm:$0xf]
  %v95 = vld [vmem:[%s0 + $0x144] sm:$0xf]
  %v96 = vld [vmem:[%s0 + $0x148] sm:$0xf]
  %v97 = vld [vmem:[%s0 + $0x14c] sm:$0xf]
  %v98 = vld [vmem:[%s0 + $0x150] sm:$0xf]
  %v99 = vld [vmem:[%s0 + $0x154] sm:$0xf]
  %v100 = vld [vmem:[%s0 + $0x158] sm:$0xf]
  %v101 = vld [vmem:[%s0 + $0x15c] sm:$0xf]
  %v102 = vld [vmem:[%s0 + $0x160] sm:$0xf]
  %v103 = vld [vmem:[%s0 + $0x164] sm:$0xf]
  %v104 = vld [vmem:[%s0 + $0x168] sm:$0xf]
  %v105 = vld [vmem:[%s0 + $0x16c] sm:$0xf]
  %v106 = vld [vmem:[%s0 + $0x170] sm:$0xf]
  %v107 = vld [vmem:[%s0 + $0x174] sm:$0xf]
  %v108 = vld [vmem:[%s0 + $0x178] sm:$0xf]
  %v109 = vld [vmem:[%s0 + $0x17c] sm:$0xf]
  %v110 = vld [vmem:[%s0 + $0x180] sm:$0xf]
  %v111 = vld [vmem:[%s0 + $0x184] sm:$0xf]
  %v112 = vld [vmem:[%s0 + $0x188] sm:$0xf]
  %v113 = vld [vmem:[%s0 + $0x18c] sm:$0xf]
  %v114 = vld [vmem:[%s0 + $0x190] sm:$0xf]
  %v115 = vld [vmem:[%s0 + $0x194] sm:$0xf]
  %v116 = vld [vmem:[%s0 + $0x198] sm:$0xf]
  %v117 = vld [vmem:[%s0 + $0x19c] sm:$0xf]
  %v118 = vld [vmem:[%s0 + $0x1a0] sm:$0xf]
  %v119 = vld [vmem:[%s0 + $0x1a4] sm:$0xf]
  %v120 = vld [vmem:[%s0 + $0x1a8] sm:$0xf]
  %v121 = vld [vmem:[%s0 + $0x1ac] sm:$0xf]
  %v122 = vld [vmem:[%s0 + $0x1b0] sm:$0xf]
  %v123 = vld [vmem:[%s0 + $0x1b4] sm:$0xf]
  %v124 = vld [vmem:[%s0 + $0x1b8] sm:$0xf]
  %v125 = vld [vmem:[%s0 + $0x1bc] sm:$0xf]
  %v126 = vld [vmem:[%s0 + $0x1c0] sm:$0xf]
  %v127 = vld [vmem:[%s0 + $0x1c4] sm:$0xf]
  %v128 = vld [vmem:[%s0 + $0x1c8] sm:$0xf]
  %v129 = vld [vmem:[%s0 + $0x1cc] sm:$0xf]
  %v130 = vld [vmem:[%s0 + $0x1d0] sm:$0xf]
  %v131 = vld [vmem:[%s0 + $0x1d4] sm:$0xf]
  %v132 = vld [vmem:[%s0 + $0x1d8] sm:$0xf]
  %v133 = vld [vmem:[%s0 + $0x1dc] sm:$0xf]
  %v134 = vld [vmem:[%s0 + $0x1e0] sm:$0xf]
  %v135 = vld [vmem:[%s0 + $0x1e4] sm:$0xf]
  %v136 = vld [vmem:[%s0 + $0x1e8] sm:$0xf]
  %v137 = vld [vmem:[%s0 + $0x1ec] sm:$0xf]
  %v138 = vld [vmem:[%s0 + $0x1f0] sm:$0xf]
  %v139 = vld [vmem:[%s0 + $0x1f4] sm:$0xf]
  %v140 = vld [vmem:[%s0 + $0x1f8] sm:$0xf]
  %v141 = vld [vmem:[%s0 + $0x1fc] sm:$0xf]
  %v142 = vld [vmem:[%s0 + $0x200] sm:$0xf]
  %v143 = vld [vmem:[%s0 + $0x204] sm:$0xf]
  %v144 = vld [vmem:[%s0 + $0x208] sm:$0xf]
  %v145 = vld [vmem:[%s0 + $0x20c] sm:$0xf]
  %v146 = vld [vmem:[%s0 + $0x210] sm:$0xf]
  %v147 = vld [vmem:[%s0 + $0x214] sm:$0xf]
  %v148 = vld [vmem:[%s0 + $0x218] sm:$0xf]
  %v149 = vld [vmem:[%s0 + $0x21c] sm:$0xf]
  %v150 = vld [vmem:[%s0 + $0x220] sm:$0xf]
  %v151 = vld [vmem:[%s0 + $0x224] sm:$0xf]
  %v152 = vld [vmem:[%s0 + $0x228] sm:$0xf]
  %v153 = vld [vmem:[%s0 + $0x22c] sm:$0xf]
  %v154 = vld [vmem:[%s0 + $0x230] sm:$0xf]
  %v155 = vld [vmem:[%s0 + $0x234] sm:$0xf]
  %v156 = vld [vmem:[%s0 + $0x238] sm:$0xf]
  %v157 = vld [vmem:[%s0 + $0x23c] sm:$0xf]
  %v158 = vld [vmem:[%s0 + $0x240] sm:$0xf]
  %v159 = vld [vmem:[%s0 + $0x244] sm:$0xf]
  %v160 = vld [vmem:[%s0 + $0x248] sm:$0xf]
  %v161 = vld [vmem:[%s0 + $0x24c] sm:$0xf]
  %v162 = vld [vmem:[%s0 + $0x250] sm:$0xf]
  %v163 = vld [vmem:[%s0 + $0x254] sm:$0xf]
  %v164 = vld [vmem:[%s0 + $0x258] sm:$0xf]
  %v165 = vld [vmem:[%s0 + $0x25c] sm:$0xf]
  %v166 = vld [vmem:[%s0 + $0x260] sm:$0xf]
  %v167 = vld [vmem:[%s0 + $0x264] sm:$0xf]
  %v168 = vld [vmem:[%s0 + $0x268] sm:$0xf]
  %v169 = vld [vmem:[%s0 + $0x26c] sm:$0xf]
  %v170 = vld [vmem:[%s0 + $0x270] sm:$0xf]
  %v171 = vld [vmem:[%s0 + $0x274] sm:$0xf]
  %v172 = vld [vmem:[%s0 + $0x278] sm:$0xf]
  %v173 = vld [vmem:[%s0 + $0x27c] sm:$0xf]
  %v174 = vld [vmem:[%s0 + $0x280] sm:$0xf]
  %v175 = vld [vmem:[%s0 + $0x284] sm:$0xf]
  %v176 = vld [vmem:[%s0 + $0x288] sm:$0xf]
  %v177 = vld [vmem:[%s0 + $0x28c] sm:$0xf]
  %v178 = vld [vmem:[%s0 + $0x290] sm:$0xf]
  %v179 = vld [vmem:[%s0 + $0x294] sm:$0xf]
  %v180 = vld [vmem:[%s0 + $0x298] sm:$0xf]
  %v181 = vld [vmem:[%s0 + $0x29c] sm:$0xf]
  %v182 = vld [vmem:[%s0 + $0x2a0] sm:$0xf]
  %v183 = vld [vmem:[%s0 + $0x2a4] sm:$0xf]
  %v184 = vld [vmem:[%s0 + $0x2a8] sm:$0xf]
  %v185 = vld [vmem:[%s0 + $0x2ac] sm:$0xf]
  %v186 = vld [vmem:[%s0 + $0x2b0] sm:$0xf]
  %v187 = vld [vmem:[%s0 + $0x2b4] sm:$0xf]
  %v188 = vld [vmem:[%s0 + $0x2b8] sm:$0xf]
  %v189 = vld [vmem:[%s0 + $0x2bc] sm:$0xf]
  %v190 = vld [vmem:[%s0 + $0x2c0] sm:$0xf]
  %v191 = vld [vmem:[%s0 + $0x2c4] sm:$0xf]
  %v192 = vld [vmem:[%s0 + $0x2c8] sm:$0xf]
  %v193 = vld [vmem:[%s0 + $0x2cc] sm:$0xf]
  %v194 = vld [vmem:[%s0 + $0x2d0] sm:$0xf]
  %v195 = vld [vmem:[%s0 + $0x2d4] sm:$0xf]
  %v196 = vld [vmem:[%s0 + $0x2d8] sm:$0xf]
  %v197 = vld [vmem:[%s0 + $0x2dc] sm:$0xf]
  %v198 = vld [vmem:[%s0 + $0x2e0] sm:$0xf]
  %v199 = vld [vmem:[%s0 + $0x2e4] sm:$0xf]
  %v200 = vld [vmem:[%s0 + $0x2e8] sm:$0xf]
  %v201 = vld [vmem:[%s0 + $0x2ec] sm:$0xf]
  %v202 = vld [vmem:[%s0 + $0x2f0] sm:$0xf]
  %v203 = vld [vmem:[%s0 + $0x2f4] sm:$0xf]
  %v204 = vld [vmem:[%s0 + $0x2f8] sm:$0xf]
  %v205 = vld [vmem:[%s0 + $0x2fc] sm:$0xf]
  %v206 = vld [vmem:[%s0 + $0x300] sm:$0xf]
  %v207 = vld [vmem:[%s0 + $0x304] sm:$0xf]
  %v208 = vld [vmem:[%s0 + $0x308] sm:$0xf]
  %v209 = vld [vmem:[%s0 + $0x30c] sm:$0xf]
  %v210 = vld [vmem:[%s0 + $0x310] sm:$0xf]
  %v211 = vld [vmem:[%s0 + $0x314] sm:$0xf]
  %v212 = vld [vmem:[%s0 + $0x318] sm:$0xf]
  %v213 = vld [vmem:[%s0 + $0x31c] sm:$0xf]
  %v214 = vld [vmem:[%s0 + $0x320] sm:$0xf]
  %v215 = vld [vmem:[%s0 + $0x324] sm:$0xf]
  %v216 = vld [vmem:[%s0 + $0x328] sm:$0xf]
  %v217 = vld [vmem:[%s0 + $0x32c] sm:$0xf]
  %v218 = vld [vmem:[%s0 + $0x330] sm:$0xf]
  %v219 = vld [vmem:[%s0 + $0x334] sm:$0xf]
  %v220 = vld [vmem:[%s0 + $0x338] sm:$0xf]
  %v221 = vld [vmem:[%s0 + $0x33c] sm:$0xf]
  %v222 = vld [vmem:[%s0 + $0x340] sm:$0xf]
  %v223 = vld [vmem:[%s0 + $0x344] sm:$0xf]
  %v224 = vld [vmem:[%s0 + $0x348] sm:$0xf]
  %v225 = vld [vmem:[%s0 + $0x34c] sm:$0xf]
  %v226 = vld [vmem:[%s0 + $0x350] sm:$0xf]
  %v227 = vld [vmem:[%s0 + $0x354] sm:$0xf]
  %v228 = vld [vmem:[%s0 + $0x358] sm:$0xf]
  %v229 = vld [vmem:[%s0 + $0x35c] sm:$0xf]
  %v230 = vld [vmem:[%s0 + $0x360] sm:$0xf]
  %v231 = vld [vmem:[%s0 + $0x364] sm:$0xf]
  %v232 = vld [vmem:[%s0 + $0x368] sm:$0xf]
  %v233 = vld [vmem:[%s0 + $0x36c] sm:$0xf]
  %v234 = vld [vmem:[%s0 + $0x370] sm:$0xf]
  %v235 = vld [vmem:[%s0 + $0x374] sm:$0xf]
  %v236 = vld [vmem:[%s0 + $0x378] sm:$0xf]
  %v237 = vld [vmem:[%s0 + $0x37c] sm:$0xf]
  %v238 = vld [vmem:[%s0 + $0x380] sm:$0xf]
  %v239 = vld [vmem:[%s0 + $0x384] sm:$0xf]
  %v240 = vld [vmem:[%s0 + $0x388] sm:$0xf]
  %v241 = vld [vmem:[%s0 + $0x38c] sm:$0xf]
  %v242 = vld [vmem:[%s0 + $0x390] sm:$0xf]
  %v243 = vld [vmem:[%s0 + $0x394] sm:$0xf]
  %v244 = vld [vmem:[%s0 + $0x398] sm:$0xf]
  %v245 = vld [vmem:[%s0 + $0x39c] sm:$0xf]
  %v246 = vld [vmem:[%s0 + $0x3a0] sm:$0xf]
  %v247 = vld [vmem:[%s0 + $0x3a4] sm:$0xf]
  %v248 = vld [vmem:[%s0 + $0x3a8] sm:$0xf]
  %v249 = vld [vmem:[%s0 + $0x3ac] sm:$0xf]
  %v250 = vld [vmem:[%s0 + $0x3b0] sm:$0xf]
  %v251 = vld [vmem:[%s0 + $0x3b4] sm:$0xf]
  %v252 = vld [vmem:[%s0 + $0x3b8] sm:$0xf]
  %v253 = vld [vmem:[%s0 + $0x3bc] sm:$0xf]
  %v254 = vld [vmem:[%s0 + $0x3c0] sm:$0xf]
  %v255 = vld [vmem:[%s0 + $0x3c4] sm:$0xf]
  %v256 = vld [vmem:[%s0 + $0x3c8] sm:$0xf]
  %v257 = vld [vmem:[%s0 + $0x3cc] sm:$0xf]
  %v258 = vld [vmem:[%s0 + $0x3d0] sm:$0xf]
  %v259 = vld [vmem:[%s0 + $0x3d4] sm:$0xf]
  %v260 = vld [vmem:[%s0 + $0x3d8] sm:$0xf]
  %v261 = vld [vmem:[%s0 + $0x3dc] sm:$0xf]
  %v262 = vld [vmem:[%s0 + $0x3e0] sm:$0xf]
  %v263 = vld [vmem:[%s0 + $0x3e4] sm:$0xf]
  %v264 = vld [vmem:[%s0 + $0x3e8] sm:$0xf]
  %v265 = vld [vmem:[%s0 + $0x3ec] sm:$0xf]
  %v266 = vld [vmem:[%s0 + $0x3f0] sm:$0xf]
  %v267 = vld [vmem:[%s0 + $0x3f4] sm:$0xf]
  %v268 = vld [vmem:[%s0 + $0x3f8] sm:$0xf]
  %v269 = vld [vmem:[%s0 + $0x3fc] sm:$0xf]
  %v270 = vld [vmem:[%s1] sm:$0xf]
  %v271 = vld [vmem:[%s1 + $0x4] sm:$0xf]
  %v272 = vld [vmem:[%s1 + $0x8] sm:$0xf]
  %v273 = vld [vmem:[%s1 + $0xc] sm:$0xf]
  %v530 = vunpack.c.l.b16 %v14
  %v531 = vunpack.c.l.b16 %v15
  %v532 = vunpack.c.l.b16 %v16
  %v533 = vunpack.c.l.b16 %v17
  %v534 = vunpack.c.l.b16 %v18
  %v535 = vunpack.c.l.b16 %v19
  %v536 = vunpack.c.l.b16 %v20
  %v537 = vunpack.c.l.b16 %v21
  %v538 = vunpack.c.l.b16 %v22
  %v539 = vunpack.c.l.b16 %v23
  %v540 = vunpack.c.l.b16 %v24
  %v541 = vunpack.c.l.b16 %v25
  %v542 = vunpack.c.l.b16 %v26
  %v543 = vunpack.c.l.b16 %v27
  %v544 = vunpack.c.l.b16 %v28
  %v545 = vunpack.c.l.b16 %v29
  %v546 = vunpack.c.l.b16 %v30
  %v547 = vunpack.c.l.b16 %v31
  %v548 = vunpack.c.l.b16 %v32
  %v549 = vunpack.c.l.b16 %v33
  %v550 = vunpack.c.l.b16 %v34
  %v551 = vunpack.c.l.b16 %v35
  %v552 = vunpack.c.l.b16 %v36
  %v553 = vunpack.c.l.b16 %v37
  %v554 = vunpack.c.l.b16 %v38
  %v555 = vunpack.c.l.b16 %v39
  %v556 = vunpack.c.l.b16 %v40
  %v557 = vunpack.c.l.b16 %v41
  %v558 = vunpack.c.l.b16 %v42
  %v559 = vunpack.c.l.b16 %v43
  %v560 = vunpack.c.l.b16 %v44
  %v561 = vunpack.c.l.b16 %v45
  %v562 = vunpack.c.l.b16 %v46
  %v563 = vunpack.c.l.b16 %v47
  %v564 = vunpack.c.l.b16 %v48
  %v565 = vunpack.c.l.b16 %v49
  %v566 = vunpack.c.l.b16 %v50
  %v567 = vunpack.c.l.b16 %v51
  %v568 = vunpack.c.l.b16 %v52
  %v569 = vunpack.c.l.b16 %v53
  %v570 = vunpack.c.l.b16 %v54
  %v571 = vunpack.c.l.b16 %v55
  %v572 = vunpack.c.l.b16 %v56
  %v573 = vunpack.c.l.b16 %v57
  %v574 = vunpack.c.l.b16 %v58
  %v575 = vunpack.c.l.b16 %v59
  %v576 = vunpack.c.l.b16 %v60
  %v577 = vunpack.c.l.b16 %v61
  %v578 = vunpack.c.l.b16 %v62
  %v579 = vunpack.c.l.b16 %v63
  %v580 = vunpack.c.l.b16 %v64
  %v581 = vunpack.c.l.b16 %v65
  %v582 = vunpack.c.l.b16 %v66
  %v583 = vunpack.c.l.b16 %v67
  %v584 = vunpack.c.l.b16 %v68
  %v585 = vunpack.c.l.b16 %v69
  %v586 = vunpack.c.l.b16 %v70
  %v587 = vunpack.c.l.b16 %v71
  %v588 = vunpack.c.l.b16 %v72
  %v589 = vunpack.c.l.b16 %v73
  %v590 = vunpack.c.l.b16 %v74
  %v591 = vunpack.c.l.b16 %v75
  %v592 = vunpack.c.l.b16 %v76
  %v593 = vunpack.c.l.b16 %v77
  %v594 = vunpack.c.l.b16 %v78
  %v595 = vunpack.c.l.b16 %v79
  %v596 = vunpack.c.l.b16 %v80
  %v597 = vunpack.c.l.b16 %v81
  %v598 = vunpack.c.l.b16 %v82
  %v599 = vunpack.c.l.b16 %v83
  %v600 = vunpack.c.l.b16 %v84
  %v601 = vunpack.c.l.b16 %v85
  %v602 = vunpack.c.l.b16 %v86
  %v603 = vunpack.c.l.b16 %v87
  %v604 = vunpack.c.l.b16 %v88
  %v605 = vunpack.c.l.b16 %v89
  %v606 = vunpack.c.l.b16 %v90
  %v607 = vunpack.c.l.b16 %v91
  %v608 = vunpack.c.l.b16 %v92
  %v609 = vunpack.c.l.b16 %v93
  %v610 = vunpack.c.l.b16 %v94
  %v611 = vunpack.c.l.b16 %v95
  %v612 = vunpack.c.l.b16 %v96
  %v613 = vunpack.c.l.b16 %v97
  %v614 = vunpack.c.l.b16 %v98
  %v615 = vunpack.c.l.b16 %v99
  %v616 = vunpack.c.l.b16 %v100
  %v617 = vunpack.c.l.b16 %v101
  %v618 = vunpack.c.l.b16 %v102
  %v619 = vunpack.c.l.b16 %v103
  %v620 = vunpack.c.l.b16 %v104
  %v621 = vunpack.c.l.b16 %v105
  %v622 = vunpack.c.l.b16 %v106
  %v623 = vunpack.c.l.b16 %v107
  %v624 = vunpack.c.l.b16 %v108
  %v625 = vunpack.c.l.b16 %v109
  %v626 = vunpack.c.l.b16 %v110
  %v627 = vunpack.c.l.b16 %v111
  %v628 = vunpack.c.l.b16 %v112
  %v629 = vunpack.c.l.b16 %v113
  %v630 = vunpack.c.l.b16 %v114
  %v631 = vunpack.c.l.b16 %v115
  %v632 = vunpack.c.l.b16 %v116
  %v633 = vunpack.c.l.b16 %v117
  %v634 = vunpack.c.l.b16 %v118
  %v635 = vunpack.c.l.b16 %v119
  %v636 = vunpack.c.l.b16 %v120
  %v637 = vunpack.c.l.b16 %v121
  %v638 = vunpack.c.l.b16 %v122
  %v639 = vunpack.c.l.b16 %v123
  %v640 = vunpack.c.l.b16 %v124
  %v641 = vunpack.c.l.b16 %v125
  %v642 = vunpack.c.l.b16 %v126
  %v643 = vunpack.c.l.b16 %v127
  %v644 = vunpack.c.l.b16 %v128
  %v645 = vunpack.c.l.b16 %v129
  %v646 = vunpack.c.l.b16 %v130
  %v647 = vunpack.c.l.b16 %v131
  %v648 = vunpack.c.l.b16 %v132
  %v649 = vunpack.c.l.b16 %v133
  %v650 = vunpack.c.l.b16 %v134
  %v651 = vunpack.c.l.b16 %v135
  %v652 = vunpack.c.l.b16 %v136
  %v653 = vunpack.c.l.b16 %v137
  %v654 = vunpack.c.l.b16 %v138
  %v655 = vunpack.c.l.b16 %v139
  %v656 = vunpack.c.l.b16 %v140
  %v657 = vunpack.c.l.b16 %v141
  %v658 = vunpack.c.l.b16 %v142
  %v659 = vunpack.c.l.b16 %v143
  %v660 = vunpack.c.l.b16 %v144
  %v661 = vunpack.c.l.b16 %v145
  %v662 = vunpack.c.l.b16 %v146
  %v663 = vunpack.c.l.b16 %v147
  %v664 = vunpack.c.l.b16 %v148
  %v665 = vunpack.c.l.b16 %v149
  %v666 = vunpack.c.l.b16 %v150
  %v667 = vunpack.c.l.b16 %v151
  %v668 = vunpack.c.l.b16 %v152
  %v669 = vunpack.c.l.b16 %v153
  %v670 = vunpack.c.l.b16 %v154
  %v671 = vunpack.c.l.b16 %v155
  %v672 = vunpack.c.l.b16 %v156
  %v673 = vunpack.c.l.b16 %v157
  %v674 = vunpack.c.l.b16 %v158
  %v675 = vunpack.c.l.b16 %v159
  %v676 = vunpack.c.l.b16 %v160
  %v677 = vunpack.c.l.b16 %v161
  %v678 = vunpack.c.l.b16 %v162
  %v679 = vunpack.c.l.b16 %v163
  %v680 = vunpack.c.l.b16 %v164
  %v681 = vunpack.c.l.b16 %v165
  %v682 = vunpack.c.l.b16 %v166
  %v683 = vunpack.c.l.b16 %v167
  %v684 = vunpack.c.l.b16 %v168
  %v685 = vunpack.c.l.b16 %v169
  %v686 = vunpack.c.l.b16 %v170
  %v687 = vunpack.c.l.b16 %v171
  %v688 = vunpack.c.l.b16 %v172
  %v689 = vunpack.c.l.b16 %v173
  %v690 = vunpack.c.l.b16 %v174
  %v691 = vunpack.c.l.b16 %v175
  %v692 = vunpack.c.l.b16 %v176
  %v693 = vunpack.c.l.b16 %v177
  %v694 = vunpack.c.l.b16 %v178
  %v695 = vunpack.c.l.b16 %v179
  %v696 = vunpack.c.l.b16 %v180
  %v697 = vunpack.c.l.b16 %v181
  %v698 = vunpack.c.l.b16 %v182
  %v699 = vunpack.c.l.b16 %v183
  %v700 = vunpack.c.l.b16 %v184
  %v701 = vunpack.c.l.b16 %v185
  %v702 = vunpack.c.l.b16 %v186
  %v703 = vunpack.c.l.b16 %v187
  %v704 = vunpack.c.l.b16 %v188
  %v705 = vunpack.c.l.b16 %v189
  %v706 = vunpack.c.l.b16 %v190
  %v707 = vunpack.c.l.b16 %v191
  %v708 = vunpack.c.l.b16 %v192
  %v709 = vunpack.c.l.b16 %v193
  %v710 = vunpack.c.l.b16 %v194
  %v711 = vunpack.c.l.b16 %v195
  %v712 = vunpack.c.l.b16 %v196
  %v713 = vunpack.c.l.b16 %v197
  %v714 = vunpack.c.l.b16 %v198
  %v715 = vunpack.c.l.b16 %v199
  %v716 = vunpack.c.l.b16 %v200
  %v717 = vunpack.c.l.b16 %v201
  %v718 = vunpack.c.l.b16 %v202
  %v719 = vunpack.c.l.b16 %v203
  %v720 = vunpack.c.l.b16 %v204
  %v721 = vunpack.c.l.b16 %v205
  %v722 = vunpack.c.l.b16 %v206
  %v723 = vunpack.c.l.b16 %v207
  %v724 = vunpack.c.l.b16 %v208
  %v725 = vunpack.c.l.b16 %v209
  %v726 = vunpack.c.l.b16 %v210
  %v727 = vunpack.c.l.b16 %v211
  %v728 = vunpack.c.l.b16 %v212
  %v729 = vunpack.c.l.b16 %v213
  %v730 = vunpack.c.l.b16 %v214
  %v731 = vunpack.c.l.b16 %v215
  %v732 = vunpack.c.l.b16 %v216
  %v733 = vunpack.c.l.b16 %v217
  %v734 = vunpack.c.l.b16 %v218
  %v735 = vunpack.c.l.b16 %v219
  %v736 = vunpack.c.l.b16 %v220
  %v737 = vunpack.c.l.b16 %v221
  %v738 = vunpack.c.l.b16 %v222
  %v739 = vunpack.c.l.b16 %v223
  %v740 = vunpack.c.l.b16 %v224
  %v741 = vunpack.c.l.b16 %v225
  %v742 = vunpack.c.l.b16 %v226
  %v743 = vunpack.c.l.b16 %v227
  %v744 = vunpack.c.l.b16 %v228
  %v745 = vunpack.c.l.b16 %v229
  %v746 = vunpack.c.l.b16 %v230
  %v747 = vunpack.c.l.b16 %v231
  %v748 = vunpack.c.l.b16 %v232
  %v749 = vunpack.c.l.b16 %v233
  %v750 = vunpack.c.l.b16 %v234
  %v751 = vunpack.c.l.b16 %v235
  %v752 = vunpack.c.l.b16 %v236
  %v753 = vunpack.c.l.b16 %v237
  %v754 = vunpack.c.l.b16 %v238
  %v755 = vunpack.c.l.b16 %v239
  %v756 = vunpack.c.l.b16 %v240
  %v757 = vunpack.c.l.b16 %v241
  %v758 = vunpack.c.l.b16 %v242
  %v759 = vunpack.c.l.b16 %v243
  %v760 = vunpack.c.l.b16 %v244
  %v761 = vunpack.c.l.b16 %v245
  %v762 = vunpack.c.l.b16 %v246
  %v763 = vunpack.c.l.b16 %v247
  %v764 = vunpack.c.l.b16 %v248
  %v765 = vunpack.c.l.b16 %v249
  %v766 = vunpack.c.l.b16 %v250
  %v767 = vunpack.c.l.b16 %v251
  %v768 = vunpack.c.l.b16 %v252
  %v769 = vunpack.c.l.b16 %v253
  %v770 = vunpack.c.l.b16 %v254
  %v771 = vunpack.c.l.b16 %v255
  %v772 = vunpack.c.l.b16 %v256
  %v773 = vunpack.c.l.b16 %v257
  %v774 = vunpack.c.l.b16 %v258
  %v775 = vunpack.c.l.b16 %v259
  %v776 = vunpack.c.l.b16 %v260
  %v777 = vunpack.c.l.b16 %v261
  %v778 = vunpack.c.l.b16 %v262
  %v779 = vunpack.c.l.b16 %v263
  %v780 = vunpack.c.l.b16 %v264
  %v781 = vunpack.c.l.b16 %v265
  %v782 = vunpack.c.l.b16 %v266
  %v783 = vunpack.c.l.b16 %v267
  %v784 = vunpack.c.l.b16 %v268
  %v785 = vunpack.c.l.b16 %v269
  %v786 = vpack.c.b16 %v531, %v530
  %v787 = vpack.c.b16 %v533, %v532
  %v788 = vpack.c.b16 %v535, %v534
  %v789 = vpack.c.b16 %v537, %v536
  %v790 = vpack.c.b16 %v539, %v538
  %v791 = vpack.c.b16 %v541, %v540
  %v792 = vpack.c.b16 %v543, %v542
  %v793 = vpack.c.b16 %v545, %v544
  %v794 = vpack.c.b16 %v547, %v546
  %v795 = vpack.c.b16 %v549, %v548
  %v796 = vpack.c.b16 %v551, %v550
  %v797 = vpack.c.b16 %v553, %v552
  %v798 = vpack.c.b16 %v555, %v554
  %v799 = vpack.c.b16 %v557, %v556
  %v800 = vpack.c.b16 %v559, %v558
  %v801 = vpack.c.b16 %v561, %v560
  %v802 = vpack.c.b16 %v563, %v562
  %v803 = vpack.c.b16 %v565, %v564
  %v804 = vpack.c.b16 %v567, %v566
  %v805 = vpack.c.b16 %v569, %v568
  %v806 = vpack.c.b16 %v571, %v570
  %v807 = vpack.c.b16 %v573, %v572
  %v808 = vpack.c.b16 %v575, %v574
  %v809 = vpack.c.b16 %v577, %v576
  %v810 = vpack.c.b16 %v579, %v578
  %v811 = vpack.c.b16 %v581, %v580
  %v812 = vpack.c.b16 %v583, %v582
  %v813 = vpack.c.b16 %v585, %v584
  %v814 = vpack.c.b16 %v587, %v586
  %v815 = vpack.c.b16 %v589, %v588
  %v816 = vpack.c.b16 %v591, %v590
  %v817 = vpack.c.b16 %v593, %v592
  %v818 = vpack.c.b16 %v595, %v594
  %v819 = vpack.c.b16 %v597, %v596
  %v820 = vpack.c.b16 %v599, %v598
  %v821 = vpack.c.b16 %v601, %v600
  %v822 = vpack.c.b16 %v603, %v602
  %v823 = vpack.c.b16 %v605, %v604
  %v824 = vpack.c.b16 %v607, %v606
  %v825 = vpack.c.b16 %v609, %v608
  %v826 = vpack.c.b16 %v611, %v610
  %v827 = vpack.c.b16 %v613, %v612
  %v828 = vpack.c.b16 %v615, %v614
  %v829 = vpack.c.b16 %v617, %v616
  %v830 = vpack.c.b16 %v619, %v618
  %v831 = vpack.c.b16 %v621, %v620
  %v832 = vpack.c.b16 %v623, %v622
  %v833 = vpack.c.b16 %v625, %v624
  %v834 = vpack.c.b16 %v627, %v626
  %v835 = vpack.c.b16 %v629, %v628
  %v836 = vpack.c.b16 %v631, %v630
  %v837 = vpack.c.b16 %v633, %v632
  %v838 = vpack.c.b16 %v635, %v634
  %v839 = vpack.c.b16 %v637, %v636
  %v840 = vpack.c.b16 %v639, %v638
  %v841 = vpack.c.b16 %v641, %v640
  %v842 = vpack.c.b16 %v643, %v642
  %v843 = vpack.c.b16 %v645, %v644
  %v844 = vpack.c.b16 %v647, %v646
  %v845 = vpack.c.b16 %v649, %v648
  %v846 = vpack.c.b16 %v651, %v650
  %v847 = vpack.c.b16 %v653, %v652
  %v848 = vpack.c.b16 %v655, %v654
  %v849 = vpack.c.b16 %v657, %v656
  %v850 = vpack.c.b16 %v659, %v658
  %v851 = vpack.c.b16 %v661, %v660
  %v852 = vpack.c.b16 %v663, %v662
  %v853 = vpack.c.b16 %v665, %v664
  %v854 = vpack.c.b16 %v667, %v666
  %v855 = vpack.c.b16 %v669, %v668
  %v856 = vpack.c.b16 %v671, %v670
  %v857 = vpack.c.b16 %v673, %v672
  %v858 = vpack.c.b16 %v675, %v674
  %v859 = vpack.c.b16 %v677, %v676
  %v860 = vpack.c.b16 %v679, %v678
  %v861 = vpack.c.b16 %v681, %v680
  %v862 = vpack.c.b16 %v683, %v682
  %v863 = vpack.c.b16 %v685, %v684
  %v864 = vpack.c.b16 %v687, %v686
  %v865 = vpack.c.b16 %v689, %v688
  %v866 = vpack.c.b16 %v691, %v690
  %v867 = vpack.c.b16 %v693, %v692
  %v868 = vpack.c.b16 %v695, %v694
  %v869 = vpack.c.b16 %v697, %v696
  %v870 = vpack.c.b16 %v699, %v698
  %v871 = vpack.c.b16 %v701, %v700
  %v872 = vpack.c.b16 %v703, %v702
  %v873 = vpack.c.b16 %v705, %v704
  %v874 = vpack.c.b16 %v707, %v706
  %v875 = vpack.c.b16 %v709, %v708
  %v876 = vpack.c.b16 %v711, %v710
  %v877 = vpack.c.b16 %v713, %v712
  %v878 = vpack.c.b16 %v715, %v714
  %v879 = vpack.c.b16 %v717, %v716
  %v880 = vpack.c.b16 %v719, %v718
  %v881 = vpack.c.b16 %v721, %v720
  %v882 = vpack.c.b16 %v723, %v722
  %v883 = vpack.c.b16 %v725, %v724
  %v884 = vpack.c.b16 %v727, %v726
  %v885 = vpack.c.b16 %v729, %v728
  %v886 = vpack.c.b16 %v731, %v730
  %v887 = vpack.c.b16 %v733, %v732
  %v888 = vpack.c.b16 %v735, %v734
  %v889 = vpack.c.b16 %v737, %v736
  %v890 = vpack.c.b16 %v739, %v738
  %v891 = vpack.c.b16 %v741, %v740
  %v892 = vpack.c.b16 %v743, %v742
  %v893 = vpack.c.b16 %v745, %v744
  %v894 = vpack.c.b16 %v747, %v746
  %v895 = vpack.c.b16 %v749, %v748
  %v896 = vpack.c.b16 %v751, %v750
  %v897 = vpack.c.b16 %v753, %v752
  %v898 = vpack.c.b16 %v755, %v754
  %v899 = vpack.c.b16 %v757, %v756
  %v900 = vpack.c.b16 %v759, %v758
  %v901 = vpack.c.b16 %v761, %v760
  %v902 = vpack.c.b16 %v763, %v762
  %v903 = vpack.c.b16 %v765, %v764
  %v904 = vpack.c.b16 %v767, %v766
  %v905 = vpack.c.b16 %v769, %v768
  %v906 = vpack.c.b16 %v771, %v770
  %v907 = vpack.c.b16 %v773, %v772
  %v908 = vpack.c.b16 %v775, %v774
  %v909 = vpack.c.b16 %v777, %v776
  %v910 = vpack.c.b16 %v779, %v778
  %v911 = vpack.c.b16 %v781, %v780
  %v912 = vpack.c.b16 %v783, %v782
  %v913 = vpack.c.b16 %v785, %v784
  %v918 = vunpack.c.l.b16 %v270
  %v919 = vunpack.c.l.b16 %v271
  %v920 = vunpack.c.l.b16 %v272
  %v921 = vunpack.c.l.b16 %v273
  %v922 = vpack.c.b16 %v919, %v918
  %v923 = vpack.c.b16 %v921, %v920
  %vm926 = vcmask 261120
  %v928 = vsel %vm926, %v786, 0
  %v931 = vsel %vm926, %v787, 0
  %v934 = vsel %vm926, %v788, 0
  %v937 = vsel %vm926, %v789, 0
  %v940 = vsel %vm926, %v790, 0
  %v943 = vsel %vm926, %v791, 0
  %v946 = vsel %vm926, %v792, 0
  %v949 = vsel %vm926, %v793, 0
  %v952 = vsel %vm926, %v794, 0
  %v955 = vsel %vm926, %v795, 0
  %v958 = vsel %vm926, %v796, 0
  %v961 = vsel %vm926, %v797, 0
  %v964 = vsel %vm926, %v798, 0
  %v967 = vsel %vm926, %v799, 0
  %v970 = vsel %vm926, %v800, 0
  %v973 = vsel %vm926, %v801, 0
  %v976 = vsel %vm926, %v802, 0
  %v979 = vsel %vm926, %v803, 0
  %v982 = vsel %vm926, %v804, 0
  %v985 = vsel %vm926, %v805, 0
  %v988 = vsel %vm926, %v806, 0
  %v991 = vsel %vm926, %v807, 0
  %v994 = vsel %vm926, %v808, 0
  %v997 = vsel %vm926, %v809, 0
  %v1000 = vsel %vm926, %v810, 0
  %v1003 = vsel %vm926, %v811, 0
  %v1006 = vsel %vm926, %v812, 0
  %v1009 = vsel %vm926, %v813, 0
  %v1012 = vsel %vm926, %v814, 0
  %v1015 = vsel %vm926, %v815, 0
  %v1018 = vsel %vm926, %v816, 0
  %v1021 = vsel %vm926, %v817, 0
  %v1024 = vsel %vm926, %v818, 0
  %v1027 = vsel %vm926, %v819, 0
  %v1030 = vsel %vm926, %v820, 0
  %v1033 = vsel %vm926, %v821, 0
  %v1036 = vsel %vm926, %v822, 0
  %v1039 = vsel %vm926, %v823, 0
  %v1042 = vsel %vm926, %v824, 0
  %v1045 = vsel %vm926, %v825, 0
  %v1048 = vsel %vm926, %v826, 0
  %v1051 = vsel %vm926, %v827, 0
  %v1054 = vsel %vm926, %v828, 0
  %v1057 = vsel %vm926, %v829, 0
  %v1060 = vsel %vm926, %v830, 0
  %v1063 = vsel %vm926, %v831, 0
  %v1066 = vsel %vm926, %v832, 0
  %v1069 = vsel %vm926, %v833, 0
  %v1072 = vsel %vm926, %v834, 0
  %v1075 = vsel %vm926, %v835, 0
  %v1078 = vsel %vm926, %v836, 0
  %v1081 = vsel %vm926, %v837, 0
  %v1084 = vsel %vm926, %v838, 0
  %v1087 = vsel %vm926, %v839, 0
  %v1090 = vsel %vm926, %v840, 0
  %v1093 = vsel %vm926, %v841, 0
  %v1096 = vsel %vm926, %v842, 0
  %v1099 = vsel %vm926, %v843, 0
  %v1102 = vsel %vm926, %v844, 0
  %v1105 = vsel %vm926, %v845, 0
  %v1108 = vsel %vm926, %v846, 0
  %v1111 = vsel %vm926, %v847, 0
  %v1114 = vsel %vm926, %v848, 0
  %v1117 = vsel %vm926, %v849, 0
  %v1120 = vsel %vm926, %v850, 0
  %v1123 = vsel %vm926, %v851, 0
  %v1126 = vsel %vm926, %v852, 0
  %v1129 = vsel %vm926, %v853, 0
  %v1132 = vsel %vm926, %v854, 0
  %v1135 = vsel %vm926, %v855, 0
  %v1138 = vsel %vm926, %v856, 0
  %v1141 = vsel %vm926, %v857, 0
  %v1144 = vsel %vm926, %v858, 0
  %v1147 = vsel %vm926, %v859, 0
  %v1150 = vsel %vm926, %v860, 0
  %v1153 = vsel %vm926, %v861, 0
  %v1156 = vsel %vm926, %v862, 0
  %v1159 = vsel %vm926, %v863, 0
  %v1162 = vsel %vm926, %v864, 0
  %v1165 = vsel %vm926, %v865, 0
  %v1168 = vsel %vm926, %v866, 0
  %v1171 = vsel %vm926, %v867, 0
  %v1174 = vsel %vm926, %v868, 0
  %v1177 = vsel %vm926, %v869, 0
  %v1180 = vsel %vm926, %v870, 0
  %v1183 = vsel %vm926, %v871, 0
  %v1186 = vsel %vm926, %v872, 0
  %v1189 = vsel %vm926, %v873, 0
  %v1192 = vsel %vm926, %v874, 0
  %v1195 = vsel %vm926, %v875, 0
  %v1198 = vsel %vm926, %v876, 0
  %v1201 = vsel %vm926, %v877, 0
  %v1204 = vsel %vm926, %v878, 0
  %v1207 = vsel %vm926, %v879, 0
  %v1210 = vsel %vm926, %v880, 0
  %v1213 = vsel %vm926, %v881, 0
  %v1216 = vsel %vm926, %v882, 0
  %v1219 = vsel %vm926, %v883, 0
  %v1222 = vsel %vm926, %v884, 0
  %v1225 = vsel %vm926, %v885, 0
  %v1228 = vsel %vm926, %v886, 0
  %v1231 = vsel %vm926, %v887, 0
  %v1234 = vsel %vm926, %v888, 0
  %v1237 = vsel %vm926, %v889, 0
  %v1240 = vsel %vm926, %v890, 0
  %v1243 = vsel %vm926, %v891, 0
  %v1246 = vsel %vm926, %v892, 0
  %v1249 = vsel %vm926, %v893, 0
  %v1252 = vsel %vm926, %v894, 0
  %v1255 = vsel %vm926, %v895, 0
  %v1258 = vsel %vm926, %v896, 0
  %v1261 = vsel %vm926, %v897, 0
  %v1264 = vsel %vm926, %v898, 0
  %v1267 = vsel %vm926, %v899, 0
  %v1270 = vsel %vm926, %v900, 0
  %v1273 = vsel %vm926, %v901, 0
  %v1276 = vsel %vm926, %v902, 0
  %v1279 = vsel %vm926, %v903, 0
  %v1282 = vsel %vm926, %v904, 0
  %v1285 = vsel %vm926, %v905, 0
  %v1288 = vsel %vm926, %v906, 0
  %v1291 = vsel %vm926, %v907, 0
  %v1294 = vsel %vm926, %v908, 0
  %v1297 = vsel %vm926, %v909, 0
  %v1300 = vsel %vm926, %v910, 0
  %v1303 = vsel %vm926, %v911, 0
  %v1306 = vsel %vm926, %v912, 0
  %v1309 = vsel %vm926, %v913, 0
  %1311 = vmatprep.subr.bf16.mxu0 0
  %1312 = vmatpush1.bf16.msra.mxu0 %v922
  %1313 = vmatprep.subr.bf16.mxu0 0
  %1314 = vmatpush1.bf16.msra.mxu0 %v923
  %1315 = vmatprep.subr.bf16.mxu0 0
  %1316 = vmatpush1.bf16.msra.mxu0 0
  %1317 = vmatprep.subr.bf16.mxu0 0
  %1318 = vmatpush1.bf16.msra.mxu0 0
  %1319 = vmatprep.subr.bf16.mxu0 0
  %1320 = vmatpush1.bf16.msra.mxu0 0
  %1321 = vmatprep.subr.bf16.mxu0 0
  %1322 = vmatpush1.bf16.msra.mxu0 0
  %1323 = vmatprep.subr.bf16.mxu0 0
  %1324 = vmatpush1.bf16.msra.mxu0 0
  %1325 = vmatprep.subr.bf16.mxu0 0
  %1326 = vmatpush1.bf16.msra.mxu0 0
  %1327 = vmatprep.subr.bf16.mxu0 0
  %1328 = vmatpush1.bf16.msra.mxu0 0
  %1329 = vmatprep.subr.bf16.mxu0 0
  %1330 = vmatpush1.bf16.msra.mxu0 0
  %1331 = vmatprep.subr.bf16.mxu0 0
  %1332 = vmatpush1.bf16.msra.mxu0 0
  %1333 = vmatprep.subr.bf16.mxu0 0
  %1334 = vmatpush1.bf16.msra.mxu0 0
  %1335 = vmatprep.subr.bf16.mxu0 0
  %1336 = vmatpush1.bf16.msra.mxu0 0
  %1337 = vmatprep.subr.bf16.mxu0 0
  %1338 = vmatpush1.bf16.msra.mxu0 0
  %1339 = vmatprep.subr.bf16.mxu0 0
  %1340 = vmatpush1.bf16.msra.mxu0 0
  %1341 = vmatprep.subr.bf16.mxu0 0
  %1342 = vmatpush1.bf16.msra.mxu0 0
  %1343 = vmatprep.mubr.bf16.mxu0 0
  %1344 = vmatmul.mubr.bf16.gmra.mrb[0].mxu0 %v928
  %v1345 = vpop.f32.mrb[0].mxu0
  %v1346 = vadd.f32 0.0, %v1345
  %v1347 = vpop.f32.mrb[0].mxu0
  %v1348 = vpop.f32.mrb[0].mxu0
  %v1349 = vadd.f32 0.0, %v1348
  %v1350 = vpop.f32.mrb[0].mxu0
  %1351 = vmatprep.mubr.bf16.mxu0 0
  %1352 = vmatmul.mubr.bf16.gmra.mrb[0].mxu0 %v931
  %v1353 = vpop.f32.mrb[0].mxu0
  %v1354 = vadd.f32 0.0, %v1353
  %v1355 = vpop.f32.mrb[0].mxu0
  %v1356 = vpop.f32.mrb[0].mxu0
  %v1357 = vadd.f32 0.0, %v1356
  %v1358 = vpop.f32.mrb[0].mxu0
  %1359 = vmatprep.mubr.bf16.mxu0 0
  %1360 = vmatmul.mubr.bf16.gmra.mrb[0].mxu0 %v934
  %v1361 = vpop.f32.mrb[0].mxu0
  %v1362 = vadd.f32 0.0, %v1361
  %v1363 = vpop.f32.mrb[0].mxu0
  %v1364 = vpop.f32.mrb[0].mxu0
  %v1365 = vadd.f32 0.0, %v1364
  %v1366 = vpop.f32.mrb[0].mxu0
  %1367 = vmatprep.mubr.bf16.mxu0 0
  %1368 = vmatmul.mubr.bf16.gmra.mrb[0].mxu0 %v937
  %v1369 = vpop.f32.mrb[0].mxu0
  %v1370 = vadd.f32 0.0, %v1369
  %v1371 = vpop.f32.mrb[0].mxu0
  %v1372 = vpop.f32.mrb[0].mxu0
  %v1373 = vadd.f32 0.0, %v1372
  %v1374 = vpop.f32.mrb[0].mxu0
  %1375 = vmatprep.mubr.bf16.mxu0 0
  %1376 = vmatmul.mubr.bf16.gmra.mrb[0].mxu0 %v940
  %v1377 = vpop.f32.mrb[0].mxu0
  %v1378 = vadd.f32 0.0, %v1377
  %v1379 = vpop.f32.mrb[0].mxu0
  %v1380 = vpop.f32.mrb[0].mxu0
  %v1381 = vadd.f32 0.0, %v1380
  %v1382 = vpop.f32.mrb[0].mxu0
  %1383 = vmatprep.mubr.bf16.mxu0 0
  %1384 = vmatmul.mubr.bf16.gmra.mrb[0].mxu0 %v943
  %v1385 = vpop.f32.mrb[0].mxu0
  %v1386 = vadd.f32 0.0, %v1385
  %v1387 = vpop.f32.mrb[0].mxu0
  %v1388 = vpop.f32.mrb[0].mxu0
  %v1389 = vadd.f32 0.0, %v1388
  %v1390 = vpop.f32.mrb[0].mxu0
  %1391 = vmatprep.mubr.bf16.mxu0 0
  %1392 = vmatmul.mubr.bf16.gmra.mrb[0].mxu0 %v946
  %v1393 = vpop.f32.mrb[0].mxu0
  %v1394 = vadd.f32 0.0, %v1393
  %v1395 = vpop.f32.mrb[0].mxu0
  %v1396 = vpop.f32.mrb[0].mxu0
  %v1397 = vadd.f32 0.0, %v1396
  %v1398 = vpop.f32.mrb[0].mxu0
  %1399 = vmatprep.mubr.bf16.mxu0 0
  %1400 = vmatmul.mubr.bf16.gmra.mrb[0].mxu0 %v949
  %v1401 = vpop.f32.mrb[0].mxu0
  %v1402 = vadd.f32 0.0, %v1401
  %v1403 = vpop.f32.mrb[0].mxu0
  %v1404 = vpop.f32.mrb[0].mxu0
  %v1405 = vadd.f32 0.0, %v1404
  %v1406 = vpop.f32.mrb[0].mxu0
  %1407 = vmatprep.mubr.bf16.mxu0 0
  %1408 = vmatmul.mubr.bf16.gmra.mrb[0].mxu0 %v952
  %v1409 = vpop.f32.mrb[0].mxu0
  %v1410 = vadd.f32 0.0, %v1409
  %v1411 = vpop.f32.mrb[0].mxu0
  %v1412 = vpop.f32.mrb[0].mxu0
  %v1413 = vadd.f32 0.0, %v1412
  %v1414 = vpop.f32.mrb[0].mxu0
  %1415 = vmatprep.mubr.bf16.mxu0 0
  %1416 = vmatmul.mubr.bf16.gmra.mrb[0].mxu0 %v955
  %v1417 = vpop.f32.mrb[0].mxu0
  %v1418 = vadd.f32 0.0, %v1417
  %v1419 = vpop.f32.mrb[0].mxu0
  %v1420 = vpop.f32.mrb[0].mxu0
  %v1421 = vadd.f32 0.0, %v1420
  %v1422 = vpop.f32.mrb[0].mxu0
  %1423 = vmatprep.mubr.bf16.mxu0 0
  %1424 = vmatmul.mubr.bf16.gmra.mrb[0].mxu0 %v958
  %v1425 = vpop.f32.mrb[0].mxu0
  %v1426 = vadd.f32 0.0, %v1425
  %v1427 = vpop.f32.mrb[0].mxu0
  %v1428 = vpop.f32.mrb[0].mxu0
  %v1429 = vadd.f32 0.0, %v1428
  %v1430 = vpop.f32.mrb[0].mxu0
  %1431 = vmatprep.mubr.bf16.mxu0 0
  %1432 = vmatmul.mubr.bf16.gmra.mrb[0].mxu0 %v961
  %v1433 = vpop.f32.mrb[0].mxu0
  %v1434 = vadd.f32 0.0, %v1433
  %v1435 = vpop.f32.mrb[0].mxu0
  %v1436 = vpop.f32.mrb[0].mxu0
  %v1437 = vadd.f32 0.0, %v1436
  %v1438 = vpop.f32.mrb[0].mxu0
  %1439 = vmatprep.mubr.bf16.mxu0 0
  %1440 = vmatmul.mubr.bf16.gmra.mrb[0].mxu0 %v964
  %v1441 = vpop.f32.mrb[0].mxu0
  %v1442 = vadd.f32 0.0, %v1441
  %v1443 = vpop.f32.mrb[0].mxu0
  %v1444 = vpop.f32.mrb[0].mxu0
  %v1445 = vadd.f32 0.0, %v1444
  %v1446 = vpop.f32.mrb[0].mxu0
  %1447 = vmatprep.mubr.bf16.mxu0 0
  %1448 = vmatmul.mubr.bf16.gmra.mrb[0].mxu0 %v967
  %v1449 = vpop.f32.mrb[0].mxu0
  %v1450 = vadd.f32 0.0, %v1449
  %v1451 = vpop.f32.mrb[0].mxu0
  %v1452 = vpop.f32.mrb[0].mxu0
  %v1453 = vadd.f32 0.0, %v1452
  %v1454 = vpop.f32.mrb[0].mxu0
  %1455 = vmatprep.mubr.bf16.mxu0 0
  %1456 = vmatmul.mubr.bf16.gmra.mrb[0].mxu0 %v970
  %v1457 = vpop.f32.mrb[0].mxu0
  %v1458 = vadd.f32 0.0, %v1457
  %v1459 = vpop.f32.mrb[0].mxu0
  %v1460 = vpop.f32.mrb[0].mxu0
  %v1461 = vadd.f32 0.0, %v1460
  %v1462 = vpop.f32.mrb[0].mxu0
  %1463 = vmatprep.mubr.bf16.mxu0 0
  %1464 = vmatmul.mubr.bf16.gmra.mrb[0].mxu0 %v973
  %v1465 = vpop.f32.mrb[0].mxu0
  %v1466 = vadd.f32 0.0, %v1465
  %v1467 = vpop.f32.mrb[0].mxu0
  %v1468 = vpop.f32.mrb[0].mxu0
  %v1469 = vadd.f32 0.0, %v1468
  %v1470 = vpop.f32.mrb[0].mxu0
  %1471 = vmatprep.mubr.bf16.mxu0 0
  %1472 = vmatmul.mubr.bf16.gmra.mrb[0].mxu0 %v976
  %v1473 = vpop.f32.mrb[0].mxu0
  %v1474 = vadd.f32 0.0, %v1473
  %v1475 = vpop.f32.mrb[0].mxu0
  %v1476 = vpop.f32.mrb[0].mxu0
  %v1477 = vadd.f32 0.0, %v1476
  %v1478 = vpop.f32.mrb[0].mxu0
  %1479 = vmatprep.mubr.bf16.mxu0 0
  %1480 = vmatmul.mubr.bf16.gmra.mrb[0].mxu0 %v979
  %v1481 = vpop.f32.mrb[0].mxu0
  %v1482 = vadd.f32 0.0, %v1481
  %v1483 = vpop.f32.mrb[0].mxu0
  %v1484 = vpop.f32.mrb[0].mxu0
  %v1485 = vadd.f32 0.0, %v1484
  %v1486 = vpop.f32.mrb[0].mxu0
  %1487 = vmatprep.mubr.bf16.mxu0 0
  %1488 = vmatmul.mubr.bf16.gmra.mrb[0].mxu0 %v982
  %v1489 = vpop.f32.mrb[0].mxu0
  %v1490 = vadd.f32 0.0, %v1489
  %v1491 = vpop.f32.mrb[0].mxu0
  %v1492 = vpop.f32.mrb[0].mxu0
  %v1493 = vadd.f32 0.0, %v1492
  %v1494 = vpop.f32.mrb[0].mxu0
  %1495 = vmatprep.mubr.bf16.mxu0 0
  %1496 = vmatmul.mubr.bf16.gmra.mrb[0].mxu0 %v985
  %v1497 = vpop.f32.mrb[0].mxu0
  %v1498 = vadd.f32 0.0, %v1497
  %v1499 = vpop.f32.mrb[0].mxu0
  %v1500 = vpop.f32.mrb[0].mxu0
  %v1501 = vadd.f32 0.0, %v1500
  %v1502 = vpop.f32.mrb[0].mxu0
  %1503 = vmatprep.mubr.bf16.mxu0 0
  %1504 = vmatmul.mubr.bf16.gmra.mrb[0].mxu0 %v988
  %v1505 = vpop.f32.mrb[0].mxu0
  %v1506 = vadd.f32 0.0, %v1505
  %v1507 = vpop.f32.mrb[0].mxu0
  %v1508 = vpop.f32.mrb[0].mxu0
  %v1509 = vadd.f32 0.0, %v1508
  %v1510 = vpop.f32.mrb[0].mxu0
  %1511 = vmatprep.mubr.bf16.mxu0 0
  %1512 = vmatmul.mubr.bf16.gmra.mrb[0].mxu0 %v991
  %v1513 = vpop.f32.mrb[0].mxu0
  %v1514 = vadd.f32 0.0, %v1513
  %v1515 = vpop.f32.mrb[0].mxu0
  %v1516 = vpop.f32.mrb[0].mxu0
  %v1517 = vadd.f32 0.0, %v1516
  %v1518 = vpop.f32.mrb[0].mxu0
  %1519 = vmatprep.mubr.bf16.mxu0 0
  %1520 = vmatmul.mubr.bf16.gmra.mrb[0].mxu0 %v994
  %v1521 = vpop.f32.mrb[0].mxu0
  %v1522 = vadd.f32 0.0, %v1521
  %v1523 = vpop.f32.mrb[0].mxu0
  %v1524 = vpop.f32.mrb[0].mxu0
  %v1525 = vadd.f32 0.0, %v1524
  %v1526 = vpop.f32.mrb[0].mxu0
  %1527 = vmatprep.mubr.bf16.mxu0 0
  %1528 = vmatmul.mubr.bf16.gmra.mrb[0].mxu0 %v997
  %v1529 = vpop.f32.mrb[0].mxu0
  %v1530 = vadd.f32 0.0, %v1529
  %v1531 = vpop.f32.mrb[0].mxu0
  %v1532 = vpop.f32.mrb[0].mxu0
  %v1533 = vadd.f32 0.0, %v1532
  %v1534 = vpop.f32.mrb[0].mxu0
  %1535 = vmatprep.mubr.bf16.mxu0 0
  %1536 = vmatmul.mubr.bf16.gmra.mrb[0].mxu0 %v1000
  %v1537 = vpop.f32.mrb[0].mxu0
  %v1538 = vadd.f32 0.0, %v1537
  %v1539 = vpop.f32.mrb[0].mxu0
  %v1540 = vpop.f32.mrb[0].mxu0
  %v1541 = vadd.f32 0.0, %v1540
  %v1542 = vpop.f32.mrb[0].mxu0
  %1543 = vmatprep.mubr.bf16.mxu0 0
  %1544 = vmatmul.mubr.bf16.gmra.mrb[0].mxu0 %v1003
  %v1545 = vpop.f32.mrb[0].mxu0
  %v1546 = vadd.f32 0.0, %v1545
  %v1547 = vpop.f32.mrb[0].mxu0
  %v1548 = vpop.f32.mrb[0].mxu0
  %v1549 = vadd.f32 0.0, %v1548
  %v1550 = vpop.f32.mrb[0].mxu0
  %1551 = vmatprep.mubr.bf16.mxu0 0
  %1552 = vmatmul.mubr.bf16.gmra.mrb[0].mxu0 %v1006
  %v1553 = vpop.f32.mrb[0].mxu0
  %v1554 = vadd.f32 0.0, %v1553
  %v1555 = vpop.f32.mrb[0].mxu0
  %v1556 = vpop.f32.mrb[0].mxu0
  %v1557 = vadd.f32 0.0, %v1556
  %v1558 = vpop.f32.mrb[0].mxu0
  %1559 = vmatprep.mubr.bf16.mxu0 0
  %1560 = vmatmul.mubr.bf16.gmra.mrb[0].mxu0 %v1009
  %v1561 = vpop.f32.mrb[0].mxu0
  %v1562 = vadd.f32 0.0, %v1561
  %v1563 = vpop.f32.mrb[0].mxu0
  %v1564 = vpop.f32.mrb[0].mxu0
  %v1565 = vadd.f32 0.0, %v1564
  %v1566 = vpop.f32.mrb[0].mxu0
  %1567 = vmatprep.mubr.bf16.mxu0 0
  %1568 = vmatmul.mubr.bf16.gmra.mrb[0].mxu0 %v1012
  %v1569 = vpop.f32.mrb[0].mxu0
  %v1570 = vadd.f32 0.0, %v1569
  %v1571 = vpop.f32.mrb[0].mxu0
  %v1572 = vpop.f32.mrb[0].mxu0
  %v1573 = vadd.f32 0.0, %v1572
  %v1574 = vpop.f32.mrb[0].mxu0
  %1575 = vmatprep.mubr.bf16.mxu0 0
  %1576 = vmatmul.mubr.bf16.gmra.mrb[0].mxu0 %v1015
  %v1577 = vpop.f32.mrb[0].mxu0
  %v1578 = vadd.f32 0.0, %v1577
  %v1579 = vpop.f32.mrb[0].mxu0
  %v1580 = vpop.f32.mrb[0].mxu0
  %v1581 = vadd.f32 0.0, %v1580
  %v1582 = vpop.f32.mrb[0].mxu0
  %1583 = vmatprep.mubr.bf16.mxu0 0
  %1584 = vmatmul.mubr.bf16.gmra.mrb[0].mxu0 %v1018
  %v1585 = vpop.f32.mrb[0].mxu0
  %v1586 = vadd.f32 0.0, %v1585
  %v1587 = vpop.f32.mrb[0].mxu0
  %v1588 = vpop.f32.mrb[0].mxu0
  %v1589 = vadd.f32 0.0, %v1588
  %v1590 = vpop.f32.mrb[0].mxu0
  %1591 = vmatprep.mubr.bf16.mxu0 0
  %1592 = vmatmul.mubr.bf16.gmra.mrb[0].mxu0 %v1021
  %v1593 = vpop.f32.mrb[0].mxu0
  %v1594 = vadd.f32 0.0, %v1593
  %v1595 = vpop.f32.mrb[0].mxu0
  %v1596 = vpop.f32.mrb[0].mxu0
  %v1597 = vadd.f32 0.0, %v1596
  %v1598 = vpop.f32.mrb[0].mxu0
  %1599 = vmatprep.mubr.bf16.mxu0 0
  %1600 = vmatmul.mubr.bf16.gmra.mrb[0].mxu0 %v1024
  %v1601 = vpop.f32.mrb[0].mxu0
  %v1602 = vadd.f32 0.0, %v1601
  %v1603 = vpop.f32.mrb[0].mxu0
  %v1604 = vpop.f32.mrb[0].mxu0
  %v1605 = vadd.f32 0.0, %v1604
  %v1606 = vpop.f32.mrb[0].mxu0
  %1607 = vmatprep.mubr.bf16.mxu0 0
  %1608 = vmatmul.mubr.bf16.gmra.mrb[0].mxu0 %v1027
  %v1609 = vpop.f32.mrb[0].mxu0
  %v1610 = vadd.f32 0.0, %v1609
  %v1611 = vpop.f32.mrb[0].mxu0
  %v1612 = vpop.f32.mrb[0].mxu0
  %v1613 = vadd.f32 0.0, %v1612
  %v1614 = vpop.f32.mrb[0].mxu0
  %1615 = vmatprep.mubr.bf16.mxu0 0
  %1616 = vmatmul.mubr.bf16.gmra.mrb[0].mxu0 %v1030
  %v1617 = vpop.f32.mrb[0].mxu0
  %v1618 = vadd.f32 0.0, %v1617
  %v1619 = vpop.f32.mrb[0].mxu0
  %v1620 = vpop.f32.mrb[0].mxu0
  %v1621 = vadd.f32 0.0, %v1620
  %v1622 = vpop.f32.mrb[0].mxu0
  %1623 = vmatprep.mubr.bf16.mxu0 0
  %1624 = vmatmul.mubr.bf16.gmra.mrb[0].mxu0 %v1033
  %v1625 = vpop.f32.mrb[0].mxu0
  %v1626 = vadd.f32 0.0, %v1625
  %v1627 = vpop.f32.mrb[0].mxu0
  %v1628 = vpop.f32.mrb[0].mxu0
  %v1629 = vadd.f32 0.0, %v1628
  %v1630 = vpop.f32.mrb[0].mxu0
  %1631 = vmatprep.mubr.bf16.mxu0 0
  %1632 = vmatmul.mubr.bf16.gmra.mrb[0].mxu0 %v1036
  %v1633 = vpop.f32.mrb[0].mxu0
  %v1634 = vadd.f32 0.0, %v1633
  %v1635 = vpop.f32.mrb[0].mxu0
  %v1636 = vpop.f32.mrb[0].mxu0
  %v1637 = vadd.f32 0.0, %v1636
  %v1638 = vpop.f32.mrb[0].mxu0
  %1639 = vmatprep.mubr.bf16.mxu0 0
  %1640 = vmatmul.mubr.bf16.gmra.mrb[0].mxu0 %v1039
  %v1641 = vpop.f32.mrb[0].mxu0
  %v1642 = vadd.f32 0.0, %v1641
  %v1643 = vpop.f32.mrb[0].mxu0
  %v1644 = vpop.f32.mrb[0].mxu0
  %v1645 = vadd.f32 0.0, %v1644
  %v1646 = vpop.f32.mrb[0].mxu0
  %1647 = vmatprep.mubr.bf16.mxu0 0
  %1648 = vmatmul.mubr.bf16.gmra.mrb[0].mxu0 %v1042
  %v1649 = vpop.f32.mrb[0].mxu0
  %v1650 = vadd.f32 0.0, %v1649
  %v1651 = vpop.f32.mrb[0].mxu0
  %v1652 = vpop.f32.mrb[0].mxu0
  %v1653 = vadd.f32 0.0, %v1652
  %v1654 = vpop.f32.mrb[0].mxu0
  %1655 = vmatprep.mubr.bf16.mxu0 0
  %1656 = vmatmul.mubr.bf16.gmra.mrb[0].mxu0 %v1045
  %v1657 = vpop.f32.mrb[0].mxu0
  %v1658 = vadd.f32 0.0, %v1657
  %v1659 = vpop.f32.mrb[0].mxu0
  %v1660 = vpop.f32.mrb[0].mxu0
  %v1661 = vadd.f32 0.0, %v1660
  %v1662 = vpop.f32.mrb[0].mxu0
  %1663 = vmatprep.mubr.bf16.mxu0 0
  %1664 = vmatmul.mubr.bf16.gmra.mrb[0].mxu0 %v1048
  %v1665 = vpop.f32.mrb[0].mxu0
  %v1666 = vadd.f32 0.0, %v1665
  %v1667 = vpop.f32.mrb[0].mxu0
  %v1668 = vpop.f32.mrb[0].mxu0
  %v1669 = vadd.f32 0.0, %v1668
  %v1670 = vpop.f32.mrb[0].mxu0
  %1671 = vmatprep.mubr.bf16.mxu0 0
  %1672 = vmatmul.mubr.bf16.gmra.mrb[0].mxu0 %v1051
  %v1673 = vpop.f32.mrb[0].mxu0
  %v1674 = vadd.f32 0.0, %v1673
  %v1675 = vpop.f32.mrb[0].mxu0
  %v1676 = vpop.f32.mrb[0].mxu0
  %v1677 = vadd.f32 0.0, %v1676
  %v1678 = vpop.f32.mrb[0].mxu0
  %1679 = vmatprep.mubr.bf16.mxu0 0
  %1680 = vmatmul.mubr.bf16.gmra.mrb[0].mxu0 %v1054
  %v1681 = vpop.f32.mrb[0].mxu0
  %v1682 = vadd.f32 0.0, %v1681
  %v1683 = vpop.f32.mrb[0].mxu0
  %v1684 = vpop.f32.mrb[0].mxu0
  %v1685 = vadd.f32 0.0, %v1684
  %v1686 = vpop.f32.mrb[0].mxu0
  %1687 = vmatprep.mubr.bf16.mxu0 0
  %1688 = vmatmul.mubr.bf16.gmra.mrb[0].mxu0 %v1057
  %v1689 = vpop.f32.mrb[0].mxu0
  %v1690 = vadd.f32 0.0, %v1689
  %v1691 = vpop.f32.mrb[0].mxu0
  %v1692 = vpop.f32.mrb[0].mxu0
  %v1693 = vadd.f32 0.0, %v1692
  %v1694 = vpop.f32.mrb[0].mxu0
  %1695 = vmatprep.mubr.bf16.mxu0 0
  %1696 = vmatmul.mubr.bf16.gmra.mrb[0].mxu0 %v1060
  %v1697 = vpop.f32.mrb[0].mxu0
  %v1698 = vadd.f32 0.0, %v1697
  %v1699 = vpop.f32.mrb[0].mxu0
  %v1700 = vpop.f32.mrb[0].mxu0
  %v1701 = vadd.f32 0.0, %v1700
  %v1702 = vpop.f32.mrb[0].mxu0
  %1703 = vmatprep.mubr.bf16.mxu0 0
  %1704 = vmatmul.mubr.bf16.gmra.mrb[0].mxu0 %v1063
  %v1705 = vpop.f32.mrb[0].mxu0
  %v1706 = vadd.f32 0.0, %v1705
  %v1707 = vpop.f32.mrb[0].mxu0
  %v1708 = vpop.f32.mrb[0].mxu0
  %v1709 = vadd.f32 0.0, %v1708
  %v1710 = vpop.f32.mrb[0].mxu0
  %1711 = vmatprep.mubr.bf16.mxu0 0
  %1712 = vmatmul.mubr.bf16.gmra.mrb[0].mxu0 %v1066
  %v1713 = vpop.f32.mrb[0].mxu0
  %v1714 = vadd.f32 0.0, %v1713
  %v1715 = vpop.f32.mrb[0].mxu0
  %v1716 = vpop.f32.mrb[0].mxu0
  %v1717 = vadd.f32 0.0, %v1716
  %v1718 = vpop.f32.mrb[0].mxu0
  %1719 = vmatprep.mubr.bf16.mxu0 0
  %1720 = vmatmul.mubr.bf16.gmra.mrb[0].mxu0 %v1069
  %v1721 = vpop.f32.mrb[0].mxu0
  %v1722 = vadd.f32 0.0, %v1721
  %v1723 = vpop.f32.mrb[0].mxu0
  %v1724 = vpop.f32.mrb[0].mxu0
  %v1725 = vadd.f32 0.0, %v1724
  %v1726 = vpop.f32.mrb[0].mxu0
  %1727 = vmatprep.mubr.bf16.mxu0 0
  %1728 = vmatmul.mubr.bf16.gmra.mrb[0].mxu0 %v1072
  %v1729 = vpop.f32.mrb[0].mxu0
  %v1730 = vadd.f32 0.0, %v1729
  %v1731 = vpop.f32.mrb[0].mxu0
  %v1732 = vpop.f32.mrb[0].mxu0
  %v1733 = vadd.f32 0.0, %v1732
  %v1734 = vpop.f32.mrb[0].mxu0
  %1735 = vmatprep.mubr.bf16.mxu0 0
  %1736 = vmatmul.mubr.bf16.gmra.mrb[0].mxu0 %v1075
  %v1737 = vpop.f32.mrb[0].mxu0
  %v1738 = vadd.f32 0.0, %v1737
  %v1739 = vpop.f32.mrb[0].mxu0
  %v1740 = vpop.f32.mrb[0].mxu0
  %v1741 = vadd.f32 0.0, %v1740
  %v1742 = vpop.f32.mrb[0].mxu0
  %1743 = vmatprep.mubr.bf16.mxu0 0
  %1744 = vmatmul.mubr.bf16.gmra.mrb[0].mxu0 %v1078
  %v1745 = vpop.f32.mrb[0].mxu0
  %v1746 = vadd.f32 0.0, %v1745
  %v1747 = vpop.f32.mrb[0].mxu0
  %v1748 = vpop.f32.mrb[0].mxu0
  %v1749 = vadd.f32 0.0, %v1748
  %v1750 = vpop.f32.mrb[0].mxu0
  %1751 = vmatprep.mubr.bf16.mxu0 0
  %1752 = vmatmul.mubr.bf16.gmra.mrb[0].mxu0 %v1081
  %v1753 = vpop.f32.mrb[0].mxu0
  %v1754 = vadd.f32 0.0, %v1753
  %v1755 = vpop.f32.mrb[0].mxu0
  %v1756 = vpop.f32.mrb[0].mxu0
  %v1757 = vadd.f32 0.0, %v1756
  %v1758 = vpop.f32.mrb[0].mxu0
  %1759 = vmatprep.mubr.bf16.mxu0 0
  %1760 = vmatmul.mubr.bf16.gmra.mrb[0].mxu0 %v1084
  %v1761 = vpop.f32.mrb[0].mxu0
  %v1762 = vadd.f32 0.0, %v1761
  %v1763 = vpop.f32.mrb[0].mxu0
  %v1764 = vpop.f32.mrb[0].mxu0
  %v1765 = vadd.f32 0.0, %v1764
  %v1766 = vpop.f32.mrb[0].mxu0
  %1767 = vmatprep.mubr.bf16.mxu0 0
  %1768 = vmatmul.mubr.bf16.gmra.mrb[0].mxu0 %v1087
  %v1769 = vpop.f32.mrb[0].mxu0
  %v1770 = vadd.f32 0.0, %v1769
  %v1771 = vpop.f32.mrb[0].mxu0
  %v1772 = vpop.f32.mrb[0].mxu0
  %v1773 = vadd.f32 0.0, %v1772
  %v1774 = vpop.f32.mrb[0].mxu0
  %1775 = vmatprep.mubr.bf16.mxu0 0
  %1776 = vmatmul.mubr.bf16.gmra.mrb[0].mxu0 %v1090
  %v1777 = vpop.f32.mrb[0].mxu0
  %v1778 = vadd.f32 0.0, %v1777
  %v1779 = vpop.f32.mrb[0].mxu0
  %v1780 = vpop.f32.mrb[0].mxu0
  %v1781 = vadd.f32 0.0, %v1780
  %v1782 = vpop.f32.mrb[0].mxu0
  %1783 = vmatprep.mubr.bf16.mxu0 0
  %1784 = vmatmul.mubr.bf16.gmra.mrb[0].mxu0 %v1093
  %v1785 = vpop.f32.mrb[0].mxu0
  %v1786 = vadd.f32 0.0, %v1785
  %v1787 = vpop.f32.mrb[0].mxu0
  %v1788 = vpop.f32.mrb[0].mxu0
  %v1789 = vadd.f32 0.0, %v1788
  %v1790 = vpop.f32.mrb[0].mxu0
  %1791 = vmatprep.mubr.bf16.mxu0 0
  %1792 = vmatmul.mubr.bf16.gmra.mrb[0].mxu0 %v1096
  %v1793 = vpop.f32.mrb[0].mxu0
  %v1794 = vadd.f32 0.0, %v1793
  %v1795 = vpop.f32.mrb[0].mxu0
  %v1796 = vpop.f32.mrb[0].mxu0
  %v1797 = vadd.f32 0.0, %v1796
  %v1798 = vpop.f32.mrb[0].mxu0
  %1799 = vmatprep.mubr.bf16.mxu0 0
  %1800 = vmatmul.mubr.bf16.gmra.mrb[0].mxu0 %v1099
  %v1801 = vpop.f32.mrb[0].mxu0
  %v1802 = vadd.f32 0.0, %v1801
  %v1803 = vpop.f32.mrb[0].mxu0
  %v1804 = vpop.f32.mrb[0].mxu0
  %v1805 = vadd.f32 0.0, %v1804
  %v1806 = vpop.f32.mrb[0].mxu0
  %1807 = vmatprep.mubr.bf16.mxu0 0
  %1808 = vmatmul.mubr.bf16.gmra.mrb[0].mxu0 %v1102
  %v1809 = vpop.f32.mrb[0].mxu0
  %v1810 = vadd.f32 0.0, %v1809
  %v1811 = vpop.f32.mrb[0].mxu0
  %v1812 = vpop.f32.mrb[0].mxu0
  %v1813 = vadd.f32 0.0, %v1812
  %v1814 = vpop.f32.mrb[0].mxu0
  %1815 = vmatprep.mubr.bf16.mxu0 0
  %1816 = vmatmul.mubr.bf16.gmra.mrb[0].mxu0 %v1105
  %v1817 = vpop.f32.mrb[0].mxu0
  %v1818 = vadd.f32 0.0, %v1817
  %v1819 = vpop.f32.mrb[0].mxu0
  %v1820 = vpop.f32.mrb[0].mxu0
  %v1821 = vadd.f32 0.0, %v1820
  %v1822 = vpop.f32.mrb[0].mxu0
  %1823 = vmatprep.mubr.bf16.mxu0 0
  %1824 = vmatmul.mubr.bf16.gmra.mrb[0].mxu0 %v1108
  %v1825 = vpop.f32.mrb[0].mxu0
  %v1826 = vadd.f32 0.0, %v1825
  %v1827 = vpop.f32.mrb[0].mxu0
  %v1828 = vpop.f32.mrb[0].mxu0
  %v1829 = vadd.f32 0.0, %v1828
  %v1830 = vpop.f32.mrb[0].mxu0
  %1831 = vmatprep.mubr.bf16.mxu0 0
  %1832 = vmatmul.mubr.bf16.gmra.mrb[0].mxu0 %v1111
  %v1833 = vpop.f32.mrb[0].mxu0
  %v1834 = vadd.f32 0.0, %v1833
  %v1835 = vpop.f32.mrb[0].mxu0
  %v1836 = vpop.f32.mrb[0].mxu0
  %v1837 = vadd.f32 0.0, %v1836
  %v1838 = vpop.f32.mrb[0].mxu0
  %1839 = vmatprep.mubr.bf16.mxu0 0
  %1840 = vmatmul.mubr.bf16.gmra.mrb[0].mxu0 %v1114
  %v1841 = vpop.f32.mrb[0].mxu0
  %v1842 = vadd.f32 0.0, %v1841
  %v1843 = vpop.f32.mrb[0].mxu0
  %v1844 = vpop.f32.mrb[0].mxu0
  %v1845 = vadd.f32 0.0, %v1844
  %v1846 = vpop.f32.mrb[0].mxu0
  %1847 = vmatprep.mubr.bf16.mxu0 0
  %1848 = vmatmul.mubr.bf16.gmra.mrb[0].mxu0 %v1117
  %v1849 = vpop.f32.mrb[0].mxu0
  %v1850 = vadd.f32 0.0, %v1849
  %v1851 = vpop.f32.mrb[0].mxu0
  %v1852 = vpop.f32.mrb[0].mxu0
  %v1853 = vadd.f32 0.0, %v1852
  %v1854 = vpop.f32.mrb[0].mxu0
  %1855 = vmatprep.mubr.bf16.mxu0 0
  %1856 = vmatmul.mubr.bf16.gmra.mrb[0].mxu0 %v1120
  %v1857 = vpop.f32.mrb[0].mxu0
  %v1858 = vadd.f32 0.0, %v1857
  %v1859 = vpop.f32.mrb[0].mxu0
  %v1860 = vpop.f32.mrb[0].mxu0
  %v1861 = vadd.f32 0.0, %v1860
  %v1862 = vpop.f32.mrb[0].mxu0
  %1863 = vmatprep.mubr.bf16.mxu0 0
  %1864 = vmatmul.mubr.bf16.gmra.mrb[0].mxu0 %v1123
  %v1865 = vpop.f32.mrb[0].mxu0
  %v1866 = vadd.f32 0.0, %v1865
  %v1867 = vpop.f32.mrb[0].mxu0
  %v1868 = vpop.f32.mrb[0].mxu0
  %v1869 = vadd.f32 0.0, %v1868
  %v1870 = vpop.f32.mrb[0].mxu0
  %1871 = vmatprep.mubr.bf16.mxu0 0
  %1872 = vmatmul.mubr.bf16.gmra.mrb[0].mxu0 %v1126
  %v1873 = vpop.f32.mrb[0].mxu0
  %v1874 = vadd.f32 0.0, %v1873
  %v1875 = vpop.f32.mrb[0].mxu0
  %v1876 = vpop.f32.mrb[0].mxu0
  %v1877 = vadd.f32 0.0, %v1876
  %v1878 = vpop.f32.mrb[0].mxu0
  %1879 = vmatprep.mubr.bf16.mxu0 0
  %1880 = vmatmul.mubr.bf16.gmra.mrb[0].mxu0 %v1129
  %v1881 = vpop.f32.mrb[0].mxu0
  %v1882 = vadd.f32 0.0, %v1881
  %v1883 = vpop.f32.mrb[0].mxu0
  %v1884 = vpop.f32.mrb[0].mxu0
  %v1885 = vadd.f32 0.0, %v1884
  %v1886 = vpop.f32.mrb[0].mxu0
  %1887 = vmatprep.mubr.bf16.mxu0 0
  %1888 = vmatmul.mubr.bf16.gmra.mrb[0].mxu0 %v1132
  %v1889 = vpop.f32.mrb[0].mxu0
  %v1890 = vadd.f32 0.0, %v1889
  %v1891 = vpop.f32.mrb[0].mxu0
  %v1892 = vpop.f32.mrb[0].mxu0
  %v1893 = vadd.f32 0.0, %v1892
  %v1894 = vpop.f32.mrb[0].mxu0
  %1895 = vmatprep.mubr.bf16.mxu0 0
  %1896 = vmatmul.mubr.bf16.gmra.mrb[0].mxu0 %v1135
  %v1897 = vpop.f32.mrb[0].mxu0
  %v1898 = vadd.f32 0.0, %v1897
  %v1899 = vpop.f32.mrb[0].mxu0
  %v1900 = vpop.f32.mrb[0].mxu0
  %v1901 = vadd.f32 0.0, %v1900
  %v1902 = vpop.f32.mrb[0].mxu0
  %1903 = vmatprep.mubr.bf16.mxu0 0
  %1904 = vmatmul.mubr.bf16.gmra.mrb[0].mxu0 %v1138
  %v1905 = vpop.f32.mrb[0].mxu0
  %v1906 = vadd.f32 0.0, %v1905
  %v1907 = vpop.f32.mrb[0].mxu0
  %v1908 = vpop.f32.mrb[0].mxu0
  %v1909 = vadd.f32 0.0, %v1908
  %v1910 = vpop.f32.mrb[0].mxu0
  %1911 = vmatprep.mubr.bf16.mxu0 0
  %1912 = vmatmul.mubr.bf16.gmra.mrb[0].mxu0 %v1141
  %v1913 = vpop.f32.mrb[0].mxu0
  %v1914 = vadd.f32 0.0, %v1913
  %v1915 = vpop.f32.mrb[0].mxu0
  %v1916 = vpop.f32.mrb[0].mxu0
  %v1917 = vadd.f32 0.0, %v1916
  %v1918 = vpop.f32.mrb[0].mxu0
  %1919 = vmatprep.mubr.bf16.mxu0 0
  %1920 = vmatmul.mubr.bf16.gmra.mrb[0].mxu0 %v1144
  %v1921 = vpop.f32.mrb[0].mxu0
  %v1922 = vadd.f32 0.0, %v1921
  %v1923 = vpop.f32.mrb[0].mxu0
  %v1924 = vpop.f32.mrb[0].mxu0
  %v1925 = vadd.f32 0.0, %v1924
  %v1926 = vpop.f32.mrb[0].mxu0
  %1927 = vmatprep.mubr.bf16.mxu0 0
  %1928 = vmatmul.mubr.bf16.gmra.mrb[0].mxu0 %v1147
  %v1929 = vpop.f32.mrb[0].mxu0
  %v1930 = vadd.f32 0.0, %v1929
  %v1931 = vpop.f32.mrb[0].mxu0
  %v1932 = vpop.f32.mrb[0].mxu0
  %v1933 = vadd.f32 0.0, %v1932
  %v1934 = vpop.f32.mrb[0].mxu0
  %1935 = vmatprep.mubr.bf16.mxu0 0
  %1936 = vmatmul.mubr.bf16.gmra.mrb[0].mxu0 %v1150
  %v1937 = vpop.f32.mrb[0].mxu0
  %v1938 = vadd.f32 0.0, %v1937
  %v1939 = vpop.f32.mrb[0].mxu0
  %v1940 = vpop.f32.mrb[0].mxu0
  %v1941 = vadd.f32 0.0, %v1940
  %v1942 = vpop.f32.mrb[0].mxu0
  %1943 = vmatprep.mubr.bf16.mxu0 0
  %1944 = vmatmul.mubr.bf16.gmra.mrb[0].mxu0 %v1153
  %v1945 = vpop.f32.mrb[0].mxu0
  %v1946 = vadd.f32 0.0, %v1945
  %v1947 = vpop.f32.mrb[0].mxu0
  %v1948 = vpop.f32.mrb[0].mxu0
  %v1949 = vadd.f32 0.0, %v1948
  %v1950 = vpop.f32.mrb[0].mxu0
  %1951 = vmatprep.mubr.bf16.mxu0 0
  %1952 = vmatmul.mubr.bf16.gmra.mrb[0].mxu0 %v1156
  %v1953 = vpop.f32.mrb[0].mxu0
  %v1954 = vadd.f32 0.0, %v1953
  %v1955 = vpop.f32.mrb[0].mxu0
  %v1956 = vpop.f32.mrb[0].mxu0
  %v1957 = vadd.f32 0.0, %v1956
  %v1958 = vpop.f32.mrb[0].mxu0
  %1959 = vmatprep.mubr.bf16.mxu0 0
  %1960 = vmatmul.mubr.bf16.gmra.mrb[0].mxu0 %v1159
  %v1961 = vpop.f32.mrb[0].mxu0
  %v1962 = vadd.f32 0.0, %v1961
  %v1963 = vpop.f32.mrb[0].mxu0
  %v1964 = vpop.f32.mrb[0].mxu0
  %v1965 = vadd.f32 0.0, %v1964
  %v1966 = vpop.f32.mrb[0].mxu0
  %1967 = vmatprep.mubr.bf16.mxu0 0
  %1968 = vmatmul.mubr.bf16.gmra.mrb[0].mxu0 %v1162
  %v1969 = vpop.f32.mrb[0].mxu0
  %v1970 = vadd.f32 0.0, %v1969
  %v1971 = vpop.f32.mrb[0].mxu0
  %v1972 = vpop.f32.mrb[0].mxu0
  %v1973 = vadd.f32 0.0, %v1972
  %v1974 = vpop.f32.mrb[0].mxu0
  %1975 = vmatprep.mubr.bf16.mxu0 0
  %1976 = vmatmul.mubr.bf16.gmra.mrb[0].mxu0 %v1165
  %v1977 = vpop.f32.mrb[0].mxu0
  %v1978 = vadd.f32 0.0, %v1977
  %v1979 = vpop.f32.mrb[0].mxu0
  %v1980 = vpop.f32.mrb[0].mxu0
  %v1981 = vadd.f32 0.0, %v1980
  %v1982 = vpop.f32.mrb[0].mxu0
  %1983 = vmatprep.mubr.bf16.mxu0 0
  %1984 = vmatmul.mubr.bf16.gmra.mrb[0].mxu0 %v1168
  %v1985 = vpop.f32.mrb[0].mxu0
  %v1986 = vadd.f32 0.0, %v1985
  %v1987 = vpop.f32.mrb[0].mxu0
  %v1988 = vpop.f32.mrb[0].mxu0
  %v1989 = vadd.f32 0.0, %v1988
  %v1990 = vpop.f32.mrb[0].mxu0
  %1991 = vmatprep.mubr.bf16.mxu0 0
  %1992 = vmatmul.mubr.bf16.gmra.mrb[0].mxu0 %v1171
  %v1993 = vpop.f32.mrb[0].mxu0
  %v1994 = vadd.f32 0.0, %v1993
  %v1995 = vpop.f32.mrb[0].mxu0
  %v1996 = vpop.f32.mrb[0].mxu0
  %v1997 = vadd.f32 0.0, %v1996
  %v1998 = vpop.f32.mrb[0].mxu0
  %1999 = vmatprep.mubr.bf16.mxu0 0
  %2000 = vmatmul.mubr.bf16.gmra.mrb[0].mxu0 %v1174
  %v2001 = vpop.f32.mrb[0].mxu0
  %v2002 = vadd.f32 0.0, %v2001
  %v2003 = vpop.f32.mrb[0].mxu0
  %v2004 = vpop.f32.mrb[0].mxu0
  %v2005 = vadd.f32 0.0, %v2004
  %v2006 = vpop.f32.mrb[0].mxu0
  %2007 = vmatprep.mubr.bf16.mxu0 0
  %2008 = vmatmul.mubr.bf16.gmra.mrb[0].mxu0 %v1177
  %v2009 = vpop.f32.mrb[0].mxu0
  %v2010 = vadd.f32 0.0, %v2009
  %v2011 = vpop.f32.mrb[0].mxu0
  %v2012 = vpop.f32.mrb[0].mxu0
  %v2013 = vadd.f32 0.0, %v2012
  %v2014 = vpop.f32.mrb[0].mxu0
  %2015 = vmatprep.mubr.bf16.mxu0 0
  %2016 = vmatmul.mubr.bf16.gmra.mrb[0].mxu0 %v1180
  %v2017 = vpop.f32.mrb[0].mxu0
  %v2018 = vadd.f32 0.0, %v2017
  %v2019 = vpop.f32.mrb[0].mxu0
  %v2020 = vpop.f32.mrb[0].mxu0
  %v2021 = vadd.f32 0.0, %v2020
  %v2022 = vpop.f32.mrb[0].mxu0
  %2023 = vmatprep.mubr.bf16.mxu0 0
  %2024 = vmatmul.mubr.bf16.gmra.mrb[0].mxu0 %v1183
  %v2025 = vpop.f32.mrb[0].mxu0
  %v2026 = vadd.f32 0.0, %v2025
  %v2027 = vpop.f32.mrb[0].mxu0
  %v2028 = vpop.f32.mrb[0].mxu0
  %v2029 = vadd.f32 0.0, %v2028
  %v2030 = vpop.f32.mrb[0].mxu0
  %2031 = vmatprep.mubr.bf16.mxu0 0
  %2032 = vmatmul.mubr.bf16.gmra.mrb[0].mxu0 %v1186
  %v2033 = vpop.f32.mrb[0].mxu0
  %v2034 = vadd.f32 0.0, %v2033
  %v2035 = vpop.f32.mrb[0].mxu0
  %v2036 = vpop.f32.mrb[0].mxu0
  %v2037 = vadd.f32 0.0, %v2036
  %v2038 = vpop.f32.mrb[0].mxu0
  %2039 = vmatprep.mubr.bf16.mxu0 0
  %2040 = vmatmul.mubr.bf16.gmra.mrb[0].mxu0 %v1189
  %v2041 = vpop.f32.mrb[0].mxu0
  %v2042 = vadd.f32 0.0, %v2041
  %v2043 = vpop.f32.mrb[0].mxu0
  %v2044 = vpop.f32.mrb[0].mxu0
  %v2045 = vadd.f32 0.0, %v2044
  %v2046 = vpop.f32.mrb[0].mxu0
  %2047 = vmatprep.mubr.bf16.mxu0 0
  %2048 = vmatmul.mubr.bf16.gmra.mrb[0].mxu0 %v1192
  %v2049 = vpop.f32.mrb[0].mxu0
  %v2050 = vadd.f32 0.0, %v2049
  %v2051 = vpop.f32.mrb[0].mxu0
  %v2052 = vpop.f32.mrb[0].mxu0
  %v2053 = vadd.f32 0.0, %v2052
  %v2054 = vpop.f32.mrb[0].mxu0
  %2055 = vmatprep.mubr.bf16.mxu0 0
  %2056 = vmatmul.mubr.bf16.gmra.mrb[0].mxu0 %v1195
  %v2057 = vpop.f32.mrb[0].mxu0
  %v2058 = vadd.f32 0.0, %v2057
  %v2059 = vpop.f32.mrb[0].mxu0
  %v2060 = vpop.f32.mrb[0].mxu0
  %v2061 = vadd.f32 0.0, %v2060
  %v2062 = vpop.f32.mrb[0].mxu0
  %2063 = vmatprep.mubr.bf16.mxu0 0
  %2064 = vmatmul.mubr.bf16.gmra.mrb[0].mxu0 %v1198
  %v2065 = vpop.f32.mrb[0].mxu0
  %v2066 = vadd.f32 0.0, %v2065
  %v2067 = vpop.f32.mrb[0].mxu0
  %v2068 = vpop.f32.mrb[0].mxu0
  %v2069 = vadd.f32 0.0, %v2068
  %v2070 = vpop.f32.mrb[0].mxu0
  %2071 = vmatprep.mubr.bf16.mxu0 0
  %2072 = vmatmul.mubr.bf16.gmra.mrb[0].mxu0 %v1201
  %v2073 = vpop.f32.mrb[0].mxu0
  %v2074 = vadd.f32 0.0, %v2073
  %v2075 = vpop.f32.mrb[0].mxu0
  %v2076 = vpop.f32.mrb[0].mxu0
  %v2077 = vadd.f32 0.0, %v2076
  %v2078 = vpop.f32.mrb[0].mxu0
  %2079 = vmatprep.mubr.bf16.mxu0 0
  %2080 = vmatmul.mubr.bf16.gmra.mrb[0].mxu0 %v1204
  %v2081 = vpop.f32.mrb[0].mxu0
  %v2082 = vadd.f32 0.0, %v2081
  %v2083 = vpop.f32.mrb[0].mxu0
  %v2084 = vpop.f32.mrb[0].mxu0
  %v2085 = vadd.f32 0.0, %v2084
  %v2086 = vpop.f32.mrb[0].mxu0
  %2087 = vmatprep.mubr.bf16.mxu0 0
  %2088 = vmatmul.mubr.bf16.gmra.mrb[0].mxu0 %v1207
  %v2089 = vpop.f32.mrb[0].mxu0
  %v2090 = vadd.f32 0.0, %v2089
  %v2091 = vpop.f32.mrb[0].mxu0
  %v2092 = vpop.f32.mrb[0].mxu0
  %v2093 = vadd.f32 0.0, %v2092
  %v2094 = vpop.f32.mrb[0].mxu0
  %2095 = vmatprep.mubr.bf16.mxu0 0
  %2096 = vmatmul.mubr.bf16.gmra.mrb[0].mxu0 %v1210
  %v2097 = vpop.f32.mrb[0].mxu0
  %v2098 = vadd.f32 0.0, %v2097
  %v2099 = vpop.f32.mrb[0].mxu0
  %v2100 = vpop.f32.mrb[0].mxu0
  %v2101 = vadd.f32 0.0, %v2100
  %v2102 = vpop.f32.mrb[0].mxu0
  %2103 = vmatprep.mubr.bf16.mxu0 0
  %2104 = vmatmul.mubr.bf16.gmra.mrb[0].mxu0 %v1213
  %v2105 = vpop.f32.mrb[0].mxu0
  %v2106 = vadd.f32 0.0, %v2105
  %v2107 = vpop.f32.mrb[0].mxu0
  %v2108 = vpop.f32.mrb[0].mxu0
  %v2109 = vadd.f32 0.0, %v2108
  %v2110 = vpop.f32.mrb[0].mxu0
  %2111 = vmatprep.mubr.bf16.mxu0 0
  %2112 = vmatmul.mubr.bf16.gmra.mrb[0].mxu0 %v1216
  %v2113 = vpop.f32.mrb[0].mxu0
  %v2114 = vadd.f32 0.0, %v2113
  %v2115 = vpop.f32.mrb[0].mxu0
  %v2116 = vpop.f32.mrb[0].mxu0
  %v2117 = vadd.f32 0.0, %v2116
  %v2118 = vpop.f32.mrb[0].mxu0
  %2119 = vmatprep.mubr.bf16.mxu0 0
  %2120 = vmatmul.mubr.bf16.gmra.mrb[0].mxu0 %v1219
  %v2121 = vpop.f32.mrb[0].mxu0
  %v2122 = vadd.f32 0.0, %v2121
  %v2123 = vpop.f32.mrb[0].mxu0
  %v2124 = vpop.f32.mrb[0].mxu0
  %v2125 = vadd.f32 0.0, %v2124
  %v2126 = vpop.f32.mrb[0].mxu0
  %2127 = vmatprep.mubr.bf16.mxu0 0
  %2128 = vmatmul.mubr.bf16.gmra.mrb[0].mxu0 %v1222
  %v2129 = vpop.f32.mrb[0].mxu0
  %v2130 = vadd.f32 0.0, %v2129
  %v2131 = vpop.f32.mrb[0].mxu0
  %v2132 = vpop.f32.mrb[0].mxu0
  %v2133 = vadd.f32 0.0, %v2132
  %v2134 = vpop.f32.mrb[0].mxu0
  %2135 = vmatprep.mubr.bf16.mxu0 0
  %2136 = vmatmul.mubr.bf16.gmra.mrb[0].mxu0 %v1225
  %v2137 = vpop.f32.mrb[0].mxu0
  %v2138 = vadd.f32 0.0, %v2137
  %v2139 = vpop.f32.mrb[0].mxu0
  %v2140 = vpop.f32.mrb[0].mxu0
  %v2141 = vadd.f32 0.0, %v2140
  %v2142 = vpop.f32.mrb[0].mxu0
  %2143 = vmatprep.mubr.bf16.mxu0 0
  %2144 = vmatmul.mubr.bf16.gmra.mrb[0].mxu0 %v1228
  %v2145 = vpop.f32.mrb[0].mxu0
  %v2146 = vadd.f32 0.0, %v2145
  %v2147 = vpop.f32.mrb[0].mxu0
  %v2148 = vpop.f32.mrb[0].mxu0
  %v2149 = vadd.f32 0.0, %v2148
  %v2150 = vpop.f32.mrb[0].mxu0
  %2151 = vmatprep.mubr.bf16.mxu0 0
  %2152 = vmatmul.mubr.bf16.gmra.mrb[0].mxu0 %v1231
  %v2153 = vpop.f32.mrb[0].mxu0
  %v2154 = vadd.f32 0.0, %v2153
  %v2155 = vpop.f32.mrb[0].mxu0
  %v2156 = vpop.f32.mrb[0].mxu0
  %v2157 = vadd.f32 0.0, %v2156
  %v2158 = vpop.f32.mrb[0].mxu0
  %2159 = vmatprep.mubr.bf16.mxu0 0
  %2160 = vmatmul.mubr.bf16.gmra.mrb[0].mxu0 %v1234
  %v2161 = vpop.f32.mrb[0].mxu0
  %v2162 = vadd.f32 0.0, %v2161
  %v2163 = vpop.f32.mrb[0].mxu0
  %v2164 = vpop.f32.mrb[0].mxu0
  %v2165 = vadd.f32 0.0, %v2164
  %v2166 = vpop.f32.mrb[0].mxu0
  %2167 = vmatprep.mubr.bf16.mxu0 0
  %2168 = vmatmul.mubr.bf16.gmra.mrb[0].mxu0 %v1237
  %v2169 = vpop.f32.mrb[0].mxu0
  %v2170 = vadd.f32 0.0, %v2169
  %v2171 = vpop.f32.mrb[0].mxu0
  %v2172 = vpop.f32.mrb[0].mxu0
  %v2173 = vadd.f32 0.0, %v2172
  %v2174 = vpop.f32.mrb[0].mxu0
  %2175 = vmatprep.mubr.bf16.mxu0 0
  %2176 = vmatmul.mubr.bf16.gmra.mrb[0].mxu0 %v1240
  %v2177 = vpop.f32.mrb[0].mxu0
  %v2178 = vadd.f32 0.0, %v2177
  %v2179 = vpop.f32.mrb[0].mxu0
  %v2180 = vpop.f32.mrb[0].mxu0
  %v2181 = vadd.f32 0.0, %v2180
  %v2182 = vpop.f32.mrb[0].mxu0
  %2183 = vmatprep.mubr.bf16.mxu0 0
  %2184 = vmatmul.mubr.bf16.gmra.mrb[0].mxu0 %v1243
  %v2185 = vpop.f32.mrb[0].mxu0
  %v2186 = vadd.f32 0.0, %v2185
  %v2187 = vpop.f32.mrb[0].mxu0
  %v2188 = vpop.f32.mrb[0].mxu0
  %v2189 = vadd.f32 0.0, %v2188
  %v2190 = vpop.f32.mrb[0].mxu0
  %2191 = vmatprep.mubr.bf16.mxu0 0
  %2192 = vmatmul.mubr.bf16.gmra.mrb[0].mxu0 %v1246
  %v2193 = vpop.f32.mrb[0].mxu0
  %v2194 = vadd.f32 0.0, %v2193
  %v2195 = vpop.f32.mrb[0].mxu0
  %v2196 = vpop.f32.mrb[0].mxu0
  %v2197 = vadd.f32 0.0, %v2196
  %v2198 = vpop.f32.mrb[0].mxu0
  %2199 = vmatprep.mubr.bf16.mxu0 0
  %2200 = vmatmul.mubr.bf16.gmra.mrb[0].mxu0 %v1249
  %v2201 = vpop.f32.mrb[0].mxu0
  %v2202 = vadd.f32 0.0, %v2201
  %v2203 = vpop.f32.mrb[0].mxu0
  %v2204 = vpop.f32.mrb[0].mxu0
  %v2205 = vadd.f32 0.0, %v2204
  %v2206 = vpop.f32.mrb[0].mxu0
  %2207 = vmatprep.mubr.bf16.mxu0 0
  %2208 = vmatmul.mubr.bf16.gmra.mrb[0].mxu0 %v1252
  %v2209 = vpop.f32.mrb[0].mxu0
  %v2210 = vadd.f32 0.0, %v2209
  %v2211 = vpop.f32.mrb[0].mxu0
  %v2212 = vpop.f32.mrb[0].mxu0
  %v2213 = vadd.f32 0.0, %v2212
  %v2214 = vpop.f32.mrb[0].mxu0
  %2215 = vmatprep.mubr.bf16.mxu0 0
  %2216 = vmatmul.mubr.bf16.gmra.mrb[0].mxu0 %v1255
  %v2217 = vpop.f32.mrb[0].mxu0
  %v2218 = vadd.f32 0.0, %v2217
  %v2219 = vpop.f32.mrb[0].mxu0
  %v2220 = vpop.f32.mrb[0].mxu0
  %v2221 = vadd.f32 0.0, %v2220
  %v2222 = vpop.f32.mrb[0].mxu0
  %2223 = vmatprep.mubr.bf16.mxu0 0
  %2224 = vmatmul.mubr.bf16.gmra.mrb[0].mxu0 %v1258
  %v2225 = vpop.f32.mrb[0].mxu0
  %v2226 = vadd.f32 0.0, %v2225
  %v2227 = vpop.f32.mrb[0].mxu0
  %v2228 = vpop.f32.mrb[0].mxu0
  %v2229 = vadd.f32 0.0, %v2228
  %v2230 = vpop.f32.mrb[0].mxu0
  %2231 = vmatprep.mubr.bf16.mxu0 0
  %2232 = vmatmul.mubr.bf16.gmra.mrb[0].mxu0 %v1261
  %v2233 = vpop.f32.mrb[0].mxu0
  %v2234 = vadd.f32 0.0, %v2233
  %v2235 = vpop.f32.mrb[0].mxu0
  %v2236 = vpop.f32.mrb[0].mxu0
  %v2237 = vadd.f32 0.0, %v2236
  %v2238 = vpop.f32.mrb[0].mxu0
  %2239 = vmatprep.mubr.bf16.mxu0 0
  %2240 = vmatmul.mubr.bf16.gmra.mrb[0].mxu0 %v1264
  %v2241 = vpop.f32.mrb[0].mxu0
  %v2242 = vadd.f32 0.0, %v2241
  %v2243 = vpop.f32.mrb[0].mxu0
  %v2244 = vpop.f32.mrb[0].mxu0
  %v2245 = vadd.f32 0.0, %v2244
  %v2246 = vpop.f32.mrb[0].mxu0
  %2247 = vmatprep.mubr.bf16.mxu0 0
  %2248 = vmatmul.mubr.bf16.gmra.mrb[0].mxu0 %v1267
  %v2249 = vpop.f32.mrb[0].mxu0
  %v2250 = vadd.f32 0.0, %v2249
  %v2251 = vpop.f32.mrb[0].mxu0
  %v2252 = vpop.f32.mrb[0].mxu0
  %v2253 = vadd.f32 0.0, %v2252
  %v2254 = vpop.f32.mrb[0].mxu0
  %2255 = vmatprep.mubr.bf16.mxu0 0
  %2256 = vmatmul.mubr.bf16.gmra.mrb[0].mxu0 %v1270
  %v2257 = vpop.f32.mrb[0].mxu0
  %v2258 = vadd.f32 0.0, %v2257
  %v2259 = vpop.f32.mrb[0].mxu0
  %v2260 = vpop.f32.mrb[0].mxu0
  %v2261 = vadd.f32 0.0, %v2260
  %v2262 = vpop.f32.mrb[0].mxu0
  %2263 = vmatprep.mubr.bf16.mxu0 0
  %2264 = vmatmul.mubr.bf16.gmra.mrb[0].mxu0 %v1273
  %v2265 = vpop.f32.mrb[0].mxu0
  %v2266 = vadd.f32 0.0, %v2265
  %v2267 = vpop.f32.mrb[0].mxu0
  %v2268 = vpop.f32.mrb[0].mxu0
  %v2269 = vadd.f32 0.0, %v2268
  %v2270 = vpop.f32.mrb[0].mxu0
  %2271 = vmatprep.mubr.bf16.mxu0 0
  %2272 = vmatmul.mubr.bf16.gmra.mrb[0].mxu0 %v1276
  %v2273 = vpop.f32.mrb[0].mxu0
  %v2274 = vadd.f32 0.0, %v2273
  %v2275 = vpop.f32.mrb[0].mxu0
  %v2276 = vpop.f32.mrb[0].mxu0
  %v2277 = vadd.f32 0.0, %v2276
  %v2278 = vpop.f32.mrb[0].mxu0
  %2279 = vmatprep.mubr.bf16.mxu0 0
  %2280 = vmatmul.mubr.bf16.gmra.mrb[0].mxu0 %v1279
  %v2281 = vpop.f32.mrb[0].mxu0
  %v2282 = vadd.f32 0.0, %v2281
  %v2283 = vpop.f32.mrb[0].mxu0
  %v2284 = vpop.f32.mrb[0].mxu0
  %v2285 = vadd.f32 0.0, %v2284
  %v2286 = vpop.f32.mrb[0].mxu0
  %2287 = vmatprep.mubr.bf16.mxu0 0
  %2288 = vmatmul.mubr.bf16.gmra.mrb[0].mxu0 %v1282
  %v2289 = vpop.f32.mrb[0].mxu0
  %v2290 = vadd.f32 0.0, %v2289
  %v2291 = vpop.f32.mrb[0].mxu0
  %v2292 = vpop.f32.mrb[0].mxu0
  %v2293 = vadd.f32 0.0, %v2292
  %v2294 = vpop.f32.mrb[0].mxu0
  %2295 = vmatprep.mubr.bf16.mxu0 0
  %2296 = vmatmul.mubr.bf16.gmra.mrb[0].mxu0 %v1285
  %v2297 = vpop.f32.mrb[0].mxu0
  %v2298 = vadd.f32 0.0, %v2297
  %v2299 = vpop.f32.mrb[0].mxu0
  %v2300 = vpop.f32.mrb[0].mxu0
  %v2301 = vadd.f32 0.0, %v2300
  %v2302 = vpop.f32.mrb[0].mxu0
  %2303 = vmatprep.mubr.bf16.mxu0 0
  %2304 = vmatmul.mubr.bf16.gmra.mrb[0].mxu0 %v1288
  %v2305 = vpop.f32.mrb[0].mxu0
  %v2306 = vadd.f32 0.0, %v2305
  %v2307 = vpop.f32.mrb[0].mxu0
  %v2308 = vpop.f32.mrb[0].mxu0
  %v2309 = vadd.f32 0.0, %v2308
  %v2310 = vpop.f32.mrb[0].mxu0
  %2311 = vmatprep.mubr.bf16.mxu0 0
  %2312 = vmatmul.mubr.bf16.gmra.mrb[0].mxu0 %v1291
  %v2313 = vpop.f32.mrb[0].mxu0
  %v2314 = vadd.f32 0.0, %v2313
  %v2315 = vpop.f32.mrb[0].mxu0
  %v2316 = vpop.f32.mrb[0].mxu0
  %v2317 = vadd.f32 0.0, %v2316
  %v2318 = vpop.f32.mrb[0].mxu0
  %2319 = vmatprep.mubr.bf16.mxu0 0
  %2320 = vmatmul.mubr.bf16.gmra.mrb[0].mxu0 %v1294
  %v2321 = vpop.f32.mrb[0].mxu0
  %v2322 = vadd.f32 0.0, %v2321
  %v2323 = vpop.f32.mrb[0].mxu0
  %v2324 = vpop.f32.mrb[0].mxu0
  %v2325 = vadd.f32 0.0, %v2324
  %v2326 = vpop.f32.mrb[0].mxu0
  %2327 = vmatprep.mubr.bf16.mxu0 0
  %2328 = vmatmul.mubr.bf16.gmra.mrb[0].mxu0 %v1297
  %v2329 = vpop.f32.mrb[0].mxu0
  %v2330 = vadd.f32 0.0, %v2329
  %v2331 = vpop.f32.mrb[0].mxu0
  %v2332 = vpop.f32.mrb[0].mxu0
  %v2333 = vadd.f32 0.0, %v2332
  %v2334 = vpop.f32.mrb[0].mxu0
  %2335 = vmatprep.mubr.bf16.mxu0 0
  %2336 = vmatmul.mubr.bf16.gmra.mrb[0].mxu0 %v1300
  %v2337 = vpop.f32.mrb[0].mxu0
  %v2338 = vadd.f32 0.0, %v2337
  %v2339 = vpop.f32.mrb[0].mxu0
  %v2340 = vpop.f32.mrb[0].mxu0
  %v2341 = vadd.f32 0.0, %v2340
  %v2342 = vpop.f32.mrb[0].mxu0
  %2343 = vmatprep.mubr.bf16.mxu0 0
  %2344 = vmatmul.mubr.bf16.gmra.mrb[0].mxu0 %v1303
  %v2345 = vpop.f32.mrb[0].mxu0
  %v2346 = vadd.f32 0.0, %v2345
  %v2347 = vpop.f32.mrb[0].mxu0
  %v2348 = vpop.f32.mrb[0].mxu0
  %v2349 = vadd.f32 0.0, %v2348
  %v2350 = vpop.f32.mrb[0].mxu0
  %2351 = vmatprep.mubr.bf16.mxu0 0
  %2352 = vmatmul.mubr.bf16.gmra.mrb[0].mxu0 %v1306
  %v2353 = vpop.f32.mrb[0].mxu0
  %v2354 = vadd.f32 0.0, %v2353
  %v2355 = vpop.f32.mrb[0].mxu0
  %v2356 = vpop.f32.mrb[0].mxu0
  %v2357 = vadd.f32 0.0, %v2356
  %v2358 = vpop.f32.mrb[0].mxu0
  %2359 = vmatprep.mubr.bf16.mxu0 0
  %2360 = vmatmul.mubr.bf16.gmra.mrb[0].mxu0 %v1309
  %v2361 = vpop.f32.mrb[0].mxu0
  %v2362 = vadd.f32 0.0, %v2361
  %v2363 = vpop.f32.mrb[0].mxu0
  %v2364 = vpop.f32.mrb[0].mxu0
  %v2365 = vadd.f32 0.0, %v2364
  %v2366 = vpop.f32.mrb[0].mxu0
  %2367 = vdwg.mxu0
  %2368 = vst.msk [vmem:[#allocation2] sm:$0xff] %vm926, %v1346
  %2369 = vst.msk [vmem:[#allocation2 + $0x8] sm:$0xff] %vm926, %v1349
  %2370 = vst.msk [vmem:[#allocation2 + $0x10] sm:$0xff] %vm926, %v1354
  %2371 = vst.msk [vmem:[#allocation2 + $0x18] sm:$0xff] %vm926, %v1357
  %2372 = vst.msk [vmem:[#allocation2 + $0x20] sm:$0xff] %vm926, %v1362
  %2373 = vst.msk [vmem:[#allocation2 + $0x28] sm:$0xff] %vm926, %v1365
  %2374 = vst.msk [vmem:[#allocation2 + $0x30] sm:$0xff] %vm926, %v1370
  %2375 = vst.msk [vmem:[#allocation2 + $0x38] sm:$0xff] %vm926, %v1373
  %2376 = vst.msk [vmem:[#allocation2 + $0x40] sm:$0xff] %vm926, %v1378
  %2377 = vst.msk [vmem:[#allocation2 + $0x48] sm:$0xff] %vm926, %v1381
  %2378 = vst.msk [vmem:[#allocation2 + $0x50] sm:$0xff] %vm926, %v1386
  %2379 = vst.msk [vmem:[#allocation2 + $0x58] sm:$0xff] %vm926, %v1389
  %2380 = vst.msk [vmem:[#allocation2 + $0x60] sm:$0xff] %vm926, %v1394
  %2381 = vst.msk [vmem:[#allocation2 + $0x68] sm:$0xff] %vm926, %v1397
  %2382 = vst.msk [vmem:[#allocation2 + $0x70] sm:$0xff] %vm926, %v1402
  %2383 = vst.msk [vmem:[#allocation2 + $0x78] sm:$0xff] %vm926, %v1405
  %2384 = vst.msk [vmem:[#allocation2 + $0x80] sm:$0xff] %vm926, %v1410
  %2385 = vst.msk [vmem:[#allocation2 + $0x88] sm:$0xff] %vm926, %v1413
  %2386 = vst.msk [vmem:[#allocation2 + $0x90] sm:$0xff] %vm926, %v1418
  %2387 = vst.msk [vmem:[#allocation2 + $0x98] sm:$0xff] %vm926, %v1421
  %2388 = vst.msk [vmem:[#allocation2 + $0xa0] sm:$0xff] %vm926, %v1426
  %2389 = vst.msk [vmem:[#allocation2 + $0xa8] sm:$0xff] %vm926, %v1429
  %2390 = vst.msk [vmem:[#allocation2 + $0xb0] sm:$0xff] %vm926, %v1434
  %2391 = vst.msk [vmem:[#allocation2 + $0xb8] sm:$0xff] %vm926, %v1437
  %2392 = vst.msk [vmem:[#allocation2 + $0xc0] sm:$0xff] %vm926, %v1442
  %2393 = vst.msk [vmem:[#allocation2 + $0xc8] sm:$0xff] %vm926, %v1445
  %2394 = vst.msk [vmem:[#allocation2 + $0xd0] sm:$0xff] %vm926, %v1450
  %2395 = vst.msk [vmem:[#allocation2 + $0xd8] sm:$0xff] %vm926, %v1453
  %2396 = vst.msk [vmem:[#allocation2 + $0xe0] sm:$0xff] %vm926, %v1458
  %2397 = vst.msk [vmem:[#allocation2 + $0xe8] sm:$0xff] %vm926, %v1461
  %2398 = vst.msk [vmem:[#allocation2 + $0xf0] sm:$0xff] %vm926, %v1466
  %2399 = vst.msk [vmem:[#allocation2 + $0xf8] sm:$0xff] %vm926, %v1469
  %2400 = vst.msk [vmem:[#allocation2 + $0x100] sm:$0xff] %vm926, %v1474
  %2401 = vst.msk [vmem:[#allocation2 + $0x108] sm:$0xff] %vm926, %v1477
  %2402 = vst.msk [vmem:[#allocation2 + $0x110] sm:$0xff] %vm926, %v1482
  %2403 = vst.msk [vmem:[#allocation2 + $0x118] sm:$0xff] %vm926, %v1485
  %2404 = vst.msk [vmem:[#allocation2 + $0x120] sm:$0xff] %vm926, %v1490
  %2405 = vst.msk [vmem:[#allocation2 + $0x128] sm:$0xff] %vm926, %v1493
  %2406 = vst.msk [vmem:[#allocation2 + $0x130] sm:$0xff] %vm926, %v1498
  %2407 = vst.msk [vmem:[#allocation2 + $0x138] sm:$0xff] %vm926, %v1501
  %2408 = vst.msk [vmem:[#allocation2 + $0x140] sm:$0xff] %vm926, %v1506
  %2409 = vst.msk [vmem:[#allocation2 + $0x148] sm:$0xff] %vm926, %v1509
  %2410 = vst.msk [vmem:[#allocation2 + $0x150] sm:$0xff] %vm926, %v1514
  %2411 = vst.msk [vmem:[#allocation2 + $0x158] sm:$0xff] %vm926, %v1517
  %2412 = vst.msk [vmem:[#allocation2 + $0x160] sm:$0xff] %vm926, %v1522
  %2413 = vst.msk [vmem:[#allocation2 + $0x168] sm:$0xff] %vm926, %v1525
  %2414 = vst.msk [vmem:[#allocation2 + $0x170] sm:$0xff] %vm926, %v1530
  %2415 = vst.msk [vmem:[#allocation2 + $0x178] sm:$0xff] %vm926, %v1533
  %2416 = vst.msk [vmem:[#allocation2 + $0x180] sm:$0xff] %vm926, %v1538
  %2417 = vst.msk [vmem:[#allocation2 + $0x188] sm:$0xff] %vm926, %v1541
  %2418 = vst.msk [vmem:[#allocation2 + $0x190] sm:$0xff] %vm926, %v1546
  %2419 = vst.msk [vmem:[#allocation2 + $0x198] sm:$0xff] %vm926, %v1549
  %2420 = vst.msk [vmem:[#allocation2 + $0x1a0] sm:$0xff] %vm926, %v1554
  %2421 = vst.msk [vmem:[#allocation2 + $0x1a8] sm:$0xff] %vm926, %v1557
  %2422 = vst.msk [vmem:[#allocation2 + $0x1b0] sm:$0xff] %vm926, %v1562
  %2423 = vst.msk [vmem:[#allocation2 + $0x1b8] sm:$0xff] %vm926, %v1565
  %2424 = vst.msk [vmem:[#allocation2 + $0x1c0] sm:$0xff] %vm926, %v1570
  %2425 = vst.msk [vmem:[#allocation2 + $0x1c8] sm:$0xff] %vm926, %v1573
  %2426 = vst.msk [vmem:[#allocation2 + $0x1d0] sm:$0xff] %vm926, %v1578
  %2427 = vst.msk [vmem:[#allocation2 + $0x1d8] sm:$0xff] %vm926, %v1581
  %2428 = vst.msk [vmem:[#allocation2 + $0x1e0] sm:$0xff] %vm926, %v1586
  %2429 = vst.msk [vmem:[#allocation2 + $0x1e8] sm:$0xff] %vm926, %v1589
  %2430 = vst.msk [vmem:[#allocation2 + $0x1f0] sm:$0xff] %vm926, %v1594
  %2431 = vst.msk [vmem:[#allocation2 + $0x1f8] sm:$0xff] %vm926, %v1597
  %2432 = vst.msk [vmem:[#allocation2 + $0x200] sm:$0xff] %vm926, %v1602
  %2433 = vst.msk [vmem:[#allocation2 + $0x208] sm:$0xff] %vm926, %v1605
  %2434 = vst.msk [vmem:[#allocation2 + $0x210] sm:$0xff] %vm926, %v1610
  %2435 = vst.msk [vmem:[#allocation2 + $0x218] sm:$0xff] %vm926, %v1613
  %2436 = vst.msk [vmem:[#allocation2 + $0x220] sm:$0xff] %vm926, %v1618
  %2437 = vst.msk [vmem:[#allocation2 + $0x228] sm:$0xff] %vm926, %v1621
  %2438 = vst.msk [vmem:[#allocation2 + $0x230] sm:$0xff] %vm926, %v1626
  %2439 = vst.msk [vmem:[#allocation2 + $0x238] sm:$0xff] %vm926, %v1629
  %2440 = vst.msk [vmem:[#allocation2 + $0x240] sm:$0xff] %vm926, %v1634
  %2441 = vst.msk [vmem:[#allocation2 + $0x248] sm:$0xff] %vm926, %v1637
  %2442 = vst.msk [vmem:[#allocation2 + $0x250] sm:$0xff] %vm926, %v1642
  %2443 = vst.msk [vmem:[#allocation2 + $0x258] sm:$0xff] %vm926, %v1645
  %2444 = vst.msk [vmem:[#allocation2 + $0x260] sm:$0xff] %vm926, %v1650
  %2445 = vst.msk [vmem:[#allocation2 + $0x268] sm:$0xff] %vm926, %v1653
  %2446 = vst.msk [vmem:[#allocation2 + $0x270] sm:$0xff] %vm926, %v1658
  %2447 = vst.msk [vmem:[#allocation2 + $0x278] sm:$0xff] %vm926, %v1661
  %2448 = vst.msk [vmem:[#allocation2 + $0x280] sm:$0xff] %vm926, %v1666
  %2449 = vst.msk [vmem:[#allocation2 + $0x288] sm:$0xff] %vm926, %v1669
  %2450 = vst.msk [vmem:[#allocation2 + $0x290] sm:$0xff] %vm926, %v1674
  %2451 = vst.msk [vmem:[#allocation2 + $0x298] sm:$0xff] %vm926, %v1677
  %2452 = vst.msk [vmem:[#allocation2 + $0x2a0] sm:$0xff] %vm926, %v1682
  %2453 = vst.msk [vmem:[#allocation2 + $0x2a8] sm:$0xff] %vm926, %v1685
  %2454 = vst.msk [vmem:[#allocation2 + $0x2b0] sm:$0xff] %vm926, %v1690
  %2455 = vst.msk [vmem:[#allocation2 + $0x2b8] sm:$0xff] %vm926, %v1693
  %2456 = vst.msk [vmem:[#allocation2 + $0x2c0] sm:$0xff] %vm926, %v1698
  %2457 = vst.msk [vmem:[#allocation2 + $0x2c8] sm:$0xff] %vm926, %v1701
  %2458 = vst.msk [vmem:[#allocation2 + $0x2d0] sm:$0xff] %vm926, %v1706
  %2459 = vst.msk [vmem:[#allocation2 + $0x2d8] sm:$0xff] %vm926, %v1709
  %2460 = vst.msk [vmem:[#allocation2 + $0x2e0] sm:$0xff] %vm926, %v1714
  %2461 = vst.msk [vmem:[#allocation2 + $0x2e8] sm:$0xff] %vm926, %v1717
  %2462 = vst.msk [vmem:[#allocation2 + $0x2f0] sm:$0xff] %vm926, %v1722
  %2463 = vst.msk [vmem:[#allocation2 + $0x2f8] sm:$0xff] %vm926, %v1725
  %2464 = vst.msk [vmem:[#allocation2 + $0x300] sm:$0xff] %vm926, %v1730
  %2465 = vst.msk [vmem:[#allocation2 + $0x308] sm:$0xff] %vm926, %v1733
  %2466 = vst.msk [vmem:[#allocation2 + $0x310] sm:$0xff] %vm926, %v1738
  %2467 = vst.msk [vmem:[#allocation2 + $0x318] sm:$0xff] %vm926, %v1741
  %2468 = vst.msk [vmem:[#allocation2 + $0x320] sm:$0xff] %vm926, %v1746
  %2469 = vst.msk [vmem:[#allocation2 + $0x328] sm:$0xff] %vm926, %v1749
  %2470 = vst.msk [vmem:[#allocation2 + $0x330] sm:$0xff] %vm926, %v1754
  %2471 = vst.msk [vmem:[#allocation2 + $0x338] sm:$0xff] %vm926, %v1757
  %2472 = vst.msk [vmem:[#allocation2 + $0x340] sm:$0xff] %vm926, %v1762
  %2473 = vst.msk [vmem:[#allocation2 + $0x348] sm:$0xff] %vm926, %v1765
  %2474 = vst.msk [vmem:[#allocation2 + $0x350] sm:$0xff] %vm926, %v1770
  %2475 = vst.msk [vmem:[#allocation2 + $0x358] sm:$0xff] %vm926, %v1773
  %2476 = vst.msk [vmem:[#allocation2 + $0x360] sm:$0xff] %vm926, %v1778
  %2477 = vst.msk [vmem:[#allocation2 + $0x368] sm:$0xff] %vm926, %v1781
  %2478 = vst.msk [vmem:[#allocation2 + $0x370] sm:$0xff] %vm926, %v1786
  %2479 = vst.msk [vmem:[#allocation2 + $0x378] sm:$0xff] %vm926, %v1789
  %2480 = vst.msk [vmem:[#allocation2 + $0x380] sm:$0xff] %vm926, %v1794
  %2481 = vst.msk [vmem:[#allocation2 + $0x388] sm:$0xff] %vm926, %v1797
  %2482 = vst.msk [vmem:[#allocation2 + $0x390] sm:$0xff] %vm926, %v1802
  %2483 = vst.msk [vmem:[#allocation2 + $0x398] sm:$0xff] %vm926, %v1805
  %2484 = vst.msk [vmem:[#allocation2 + $0x3a0] sm:$0xff] %vm926, %v1810
  %2485 = vst.msk [vmem:[#allocation2 + $0x3a8] sm:$0xff] %vm926, %v1813
  %2486 = vst.msk [vmem:[#allocation2 + $0x3b0] sm:$0xff] %vm926, %v1818
  %2487 = vst.msk [vmem:[#allocation2 + $0x3b8] sm:$0xff] %vm926, %v1821
  %2488 = vst.msk [vmem:[#allocation2 + $0x3c0] sm:$0xff] %vm926, %v1826
  %2489 = vst.msk [vmem:[#allocation2 + $0x3c8] sm:$0xff] %vm926, %v1829
  %2490 = vst.msk [vmem:[#allocation2 + $0x3d0] sm:$0xff] %vm926, %v1834
  %2491 = vst.msk [vmem:[#allocation2 + $0x3d8] sm:$0xff] %vm926, %v1837
  %2492 = vst.msk [vmem:[#allocation2 + $0x3e0] sm:$0xff] %vm926, %v1842
  %2493 = vst.msk [vmem:[#allocation2 + $0x3e8] sm:$0xff] %vm926, %v1845
  %2494 = vst.msk [vmem:[#allocation2 + $0x3f0] sm:$0xff] %vm926, %v1850
  %2495 = vst.msk [vmem:[#allocation2 + $0x3f8] sm:$0xff] %vm926, %v1853
  %2496 = vst.msk [vmem:[#allocation2 + $0x400] sm:$0xff] %vm926, %v1858
  %2497 = vst.msk [vmem:[#allocation2 + $0x408] sm:$0xff] %vm926, %v1861
  %2498 = vst.msk [vmem:[#allocation2 + $0x410] sm:$0xff] %vm926, %v1866
  %2499 = vst.msk [vmem:[#allocation2 + $0x418] sm:$0xff] %vm926, %v1869
  %2500 = vst.msk [vmem:[#allocation2 + $0x420] sm:$0xff] %vm926, %v1874
  %2501 = vst.msk [vmem:[#allocation2 + $0x428] sm:$0xff] %vm926, %v1877
  %2502 = vst.msk [vmem:[#allocation2 + $0x430] sm:$0xff] %vm926, %v1882
  %2503 = vst.msk [vmem:[#allocation2 + $0x438] sm:$0xff] %vm926, %v1885
  %2504 = vst.msk [vmem:[#allocation2 + $0x440] sm:$0xff] %vm926, %v1890
  %2505 = vst.msk [vmem:[#allocation2 + $0x448] sm:$0xff] %vm926, %v1893
  %2506 = vst.msk [vmem:[#allocation2 + $0x450] sm:$0xff] %vm926, %v1898
  %2507 = vst.msk [vmem:[#allocation2 + $0x458] sm:$0xff] %vm926, %v1901
  %2508 = vst.msk [vmem:[#allocation2 + $0x460] sm:$0xff] %vm926, %v1906
  %2509 = vst.msk [vmem:[#allocation2 + $0x468] sm:$0xff] %vm926, %v1909
  %2510 = vst.msk [vmem:[#allocation2 + $0x470] sm:$0xff] %vm926, %v1914
  %2511 = vst.msk [vmem:[#allocation2 + $0x478] sm:$0xff] %vm926, %v1917
  %2512 = vst.msk [vmem:[#allocation2 + $0x480] sm:$0xff] %vm926, %v1922
  %2513 = vst.msk [vmem:[#allocation2 + $0x488] sm:$0xff] %vm926, %v1925
  %2514 = vst.msk [vmem:[#allocation2 + $0x490] sm:$0xff] %vm926, %v1930
  %2515 = vst.msk [vmem:[#allocation2 + $0x498] sm:$0xff] %vm926, %v1933
  %2516 = vst.msk [vmem:[#allocation2 + $0x4a0] sm:$0xff] %vm926, %v1938
  %2517 = vst.msk [vmem:[#allocation2 + $0x4a8] sm:$0xff] %vm926, %v1941
  %2518 = vst.msk [vmem:[#allocation2 + $0x4b0] sm:$0xff] %vm926, %v1946
  %2519 = vst.msk [vmem:[#allocation2 + $0x4b8] sm:$0xff] %vm926, %v1949
  %2520 = vst.msk [vmem:[#allocation2 + $0x4c0] sm:$0xff] %vm926, %v1954
  %2521 = vst.msk [vmem:[#allocation2 + $0x4c8] sm:$0xff] %vm926, %v1957
  %2522 = vst.msk [vmem:[#allocation2 + $0x4d0] sm:$0xff] %vm926, %v1962
  %2523 = vst.msk [vmem:[#allocation2 + $0x4d8] sm:$0xff] %vm926, %v1965
  %2524 = vst.msk [vmem:[#allocation2 + $0x4e0] sm:$0xff] %vm926, %v1970
  %2525 = vst.msk [vmem:[#allocation2 + $0x4e8] sm:$0xff] %vm926, %v1973
  %2526 = vst.msk [vmem:[#allocation2 + $0x4f0] sm:$0xff] %vm926, %v1978
  %2527 = vst.msk [vmem:[#allocation2 + $0x4f8] sm:$0xff] %vm926, %v1981
  %2528 = vst.msk [vmem:[#allocation2 + $0x500] sm:$0xff] %vm926, %v1986
  %2529 = vst.msk [vmem:[#allocation2 + $0x508] sm:$0xff] %vm926, %v1989
  %2530 = vst.msk [vmem:[#allocation2 + $0x510] sm:$0xff] %vm926, %v1994
  %2531 = vst.msk [vmem:[#allocation2 + $0x518] sm:$0xff] %vm926, %v1997
  %2532 = vst.msk [vmem:[#allocation2 + $0x520] sm:$0xff] %vm926, %v2002
  %2533 = vst.msk [vmem:[#allocation2 + $0x528] sm:$0xff] %vm926, %v2005
  %2534 = vst.msk [vmem:[#allocation2 + $0x530] sm:$0xff] %vm926, %v2010
  %2535 = vst.msk [vmem:[#allocation2 + $0x538] sm:$0xff] %vm926, %v2013
  %2536 = vst.msk [vmem:[#allocation2 + $0x540] sm:$0xff] %vm926, %v2018
  %2537 = vst.msk [vmem:[#allocation2 + $0x548] sm:$0xff] %vm926, %v2021
  %2538 = vst.msk [vmem:[#allocation2 + $0x550] sm:$0xff] %vm926, %v2026
  %2539 = vst.msk [vmem:[#allocation2 + $0x558] sm:$0xff] %vm926, %v2029
  %2540 = vst.msk [vmem:[#allocation2 + $0x560] sm:$0xff] %vm926, %v2034
  %2541 = vst.msk [vmem:[#allocation2 + $0x568] sm:$0xff] %vm926, %v2037
  %2542 = vst.msk [vmem:[#allocation2 + $0x570] sm:$0xff] %vm926, %v2042
  %2543 = vst.msk [vmem:[#allocation2 + $0x578] sm:$0xff] %vm926, %v2045
  %2544 = vst.msk [vmem:[#allocation2 + $0x580] sm:$0xff] %vm926, %v2050
  %2545 = vst.msk [vmem:[#allocation2 + $0x588] sm:$0xff] %vm926, %v2053
  %2546 = vst.msk [vmem:[#allocation2 + $0x590] sm:$0xff] %vm926, %v2058
  %2547 = vst.msk [vmem:[#allocation2 + $0x598] sm:$0xff] %vm926, %v2061
  %2548 = vst.msk [vmem:[#allocation2 + $0x5a0] sm:$0xff] %vm926, %v2066
  %2549 = vst.msk [vmem:[#allocation2 + $0x5a8] sm:$0xff] %vm926, %v2069
  %2550 = vst.msk [vmem:[#allocation2 + $0x5b0] sm:$0xff] %vm926, %v2074
  %2551 = vst.msk [vmem:[#allocation2 + $0x5b8] sm:$0xff] %vm926, %v2077
  %2552 = vst.msk [vmem:[#allocation2 + $0x5c0] sm:$0xff] %vm926, %v2082
  %2553 = vst.msk [vmem:[#allocation2 + $0x5c8] sm:$0xff] %vm926, %v2085
  %2554 = vst.msk [vmem:[#allocation2 + $0x5d0] sm:$0xff] %vm926, %v2090
  %2555 = vst.msk [vmem:[#allocation2 + $0x5d8] sm:$0xff] %vm926, %v2093
  %2556 = vst.msk [vmem:[#allocation2 + $0x5e0] sm:$0xff] %vm926, %v2098
  %2557 = vst.msk [vmem:[#allocation2 + $0x5e8] sm:$0xff] %vm926, %v2101
  %2558 = vst.msk [vmem:[#allocation2 + $0x5f0] sm:$0xff] %vm926, %v2106
  %2559 = vst.msk [vmem:[#allocation2 + $0x5f8] sm:$0xff] %vm926, %v2109
  %2560 = vst.msk [vmem:[#allocation2 + $0x600] sm:$0xff] %vm926, %v2114
  %2561 = vst.msk [vmem:[#allocation2 + $0x608] sm:$0xff] %vm926, %v2117
  %2562 = vst.msk [vmem:[#allocation2 + $0x610] sm:$0xff] %vm926, %v2122
  %2563 = vst.msk [vmem:[#allocation2 + $0x618] sm:$0xff] %vm926, %v2125
  %2564 = vst.msk [vmem:[#allocation2 + $0x620] sm:$0xff] %vm926, %v2130
  %2565 = vst.msk [vmem:[#allocation2 + $0x628] sm:$0xff] %vm926, %v2133
  %2566 = vst.msk [vmem:[#allocation2 + $0x630] sm:$0xff] %vm926, %v2138
  %2567 = vst.msk [vmem:[#allocation2 + $0x638] sm:$0xff] %vm926, %v2141
  %2568 = vst.msk [vmem:[#allocation2 + $0x640] sm:$0xff] %vm926, %v2146
  %2569 = vst.msk [vmem:[#allocation2 + $0x648] sm:$0xff] %vm926, %v2149
  %2570 = vst.msk [vmem:[#allocation2 + $0x650] sm:$0xff] %vm926, %v2154
  %2571 = vst.msk [vmem:[#allocation2 + $0x658] sm:$0xff] %vm926, %v2157
  %2572 = vst.msk [vmem:[#allocation2 + $0x660] sm:$0xff] %vm926, %v2162
  %2573 = vst.msk [vmem:[#allocation2 + $0x668] sm:$0xff] %vm926, %v2165
  %2574 = vst.msk [vmem:[#allocation2 + $0x670] sm:$0xff] %vm926, %v2170
  %2575 = vst.msk [vmem:[#allocation2 + $0x678] sm:$0xff] %vm926, %v2173
  %2576 = vst.msk [vmem:[#allocation2 + $0x680] sm:$0xff] %vm926, %v2178
  %2577 = vst.msk [vmem:[#allocation2 + $0x688] sm:$0xff] %vm926, %v2181
  %2578 = vst.msk [vmem:[#allocation2 + $0x690] sm:$0xff] %vm926, %v2186
  %2579 = vst.msk [vmem:[#allocation2 + $0x698] sm:$0xff] %vm926, %v2189
  %2580 = vst.msk [vmem:[#allocation2 + $0x6a0] sm:$0xff] %vm926, %v2194
  %2581 = vst.msk [vmem:[#allocation2 + $0x6a8] sm:$0xff] %vm926, %v2197
  %2582 = vst.msk [vmem:[#allocation2 + $0x6b0] sm:$0xff] %vm926, %v2202
  %2583 = vst.msk [vmem:[#allocation2 + $0x6b8] sm:$0xff] %vm926, %v2205
  %2584 = vst.msk [vmem:[#allocation2 + $0x6c0] sm:$0xff] %vm926, %v2210
  %2585 = vst.msk [vmem:[#allocation2 + $0x6c8] sm:$0xff] %vm926, %v2213
  %2586 = vst.msk [vmem:[#allocation2 + $0x6d0] sm:$0xff] %vm926, %v2218
  %2587 = vst.msk [vmem:[#allocation2 + $0x6d8] sm:$0xff] %vm926, %v2221
  %2588 = vst.msk [vmem:[#allocation2 + $0x6e0] sm:$0xff] %vm926, %v2226
  %2589 = vst.msk [vmem:[#allocation2 + $0x6e8] sm:$0xff] %vm926, %v2229
  %2590 = vst.msk [vmem:[#allocation2 + $0x6f0] sm:$0xff] %vm926, %v2234
  %2591 = vst.msk [vmem:[#allocation2 + $0x6f8] sm:$0xff] %vm926, %v2237
  %2592 = vst.msk [vmem:[#allocation2 + $0x700] sm:$0xff] %vm926, %v2242
  %2593 = vst.msk [vmem:[#allocation2 + $0x708] sm:$0xff] %vm926, %v2245
  %2594 = vst.msk [vmem:[#allocation2 + $0x710] sm:$0xff] %vm926, %v2250
  %2595 = vst.msk [vmem:[#allocation2 + $0x718] sm:$0xff] %vm926, %v2253
  %2596 = vst.msk [vmem:[#allocation2 + $0x720] sm:$0xff] %vm926, %v2258
  %2597 = vst.msk [vmem:[#allocation2 + $0x728] sm:$0xff] %vm926, %v2261
  %2598 = vst.msk [vmem:[#allocation2 + $0x730] sm:$0xff] %vm926, %v2266
  %2599 = vst.msk [vmem:[#allocation2 + $0x738] sm:$0xff] %vm926, %v2269
  %2600 = vst.msk [vmem:[#allocation2 + $0x740] sm:$0xff] %vm926, %v2274
  %2601 = vst.msk [vmem:[#allocation2 + $0x748] sm:$0xff] %vm926, %v2277
  %2602 = vst.msk [vmem:[#allocation2 + $0x750] sm:$0xff] %vm926, %v2282
  %2603 = vst.msk [vmem:[#allocation2 + $0x758] sm:$0xff] %vm926, %v2285
  %2604 = vst.msk [vmem:[#allocation2 + $0x760] sm:$0xff] %vm926, %v2290
  %2605 = vst.msk [vmem:[#allocation2 + $0x768] sm:$0xff] %vm926, %v2293
  %2606 = vst.msk [vmem:[#allocation2 + $0x770] sm:$0xff] %vm926, %v2298
  %2607 = vst.msk [vmem:[#allocation2 + $0x778] sm:$0xff] %vm926, %v2301
  %2608 = vst.msk [vmem:[#allocation2 + $0x780] sm:$0xff] %vm926, %v2306
  %2609 = vst.msk [vmem:[#allocation2 + $0x788] sm:$0xff] %vm926, %v2309
  %2610 = vst.msk [vmem:[#allocation2 + $0x790] sm:$0xff] %vm926, %v2314
  %2611 = vst.msk [vmem:[#allocation2 + $0x798] sm:$0xff] %vm926, %v2317
  %2612 = vst.msk [vmem:[#allocation2 + $0x7a0] sm:$0xff] %vm926, %v2322
  %2613 = vst.msk [vmem:[#allocation2 + $0x7a8] sm:$0xff] %vm926, %v2325
  %2614 = vst.msk [vmem:[#allocation2 + $0x7b0] sm:$0xff] %vm926, %v2330
  %2615 = vst.msk [vmem:[#allocation2 + $0x7b8] sm:$0xff] %vm926, %v2333
  %2616 = vst.msk [vmem:[#allocation2 + $0x7c0] sm:$0xff] %vm926, %v2338
  %2617 = vst.msk [vmem:[#allocation2 + $0x7c8] sm:$0xff] %vm926, %v2341
  %2618 = vst.msk [vmem:[#allocation2 + $0x7d0] sm:$0xff] %vm926, %v2346
  %2619 = vst.msk [vmem:[#allocation2 + $0x7d8] sm:$0xff] %vm926, %v2349
  %2620 = vst.msk [vmem:[#allocation2 + $0x7e0] sm:$0xff] %vm926, %v2354
  %2621 = vst.msk [vmem:[#allocation2 + $0x7e8] sm:$0xff] %vm926, %v2357
  %2622 = vst.msk [vmem:[#allocation2 + $0x7f0] sm:$0xff] %vm926, %v2362
  %2623 = vst.msk [vmem:[#allocation2 + $0x7f8] sm:$0xff] %vm926, %v2365
  %v2624 = vld [vmem:[#allocation2] sm:$0xff]
  %v2625 = vld [vmem:[#allocation2 + $0x8] sm:$0xff]
  %v2626 = vld [vmem:[#allocation2 + $0x10] sm:$0xff]
  %v2627 = vld [vmem:[#allocation2 + $0x18] sm:$0xff]
  %v2628 = vld [vmem:[#allocation2 + $0x20] sm:$0xff]
  %v2629 = vld [vmem:[#allocation2 + $0x28] sm:$0xff]
  %v2630 = vld [vmem:[#allocation2 + $0x30] sm:$0xff]
  %v2631 = vld [vmem:[#allocation2 + $0x38] sm:$0xff]
  %v2632 = vld [vmem:[#allocation2 + $0x40] sm:$0xff]
  %v2633 = vld [vmem:[#allocation2 + $0x48] sm:$0xff]
  %v2634 = vld [vmem:[#allocation2 + $0x50] sm:$0xff]
  %v2635 = vld [vmem:[#allocation2 + $0x58] sm:$0xff]
  %v2636 = vld [vmem:[#allocation2 + $0x60] sm:$0xff]
  %v2637 = vld [vmem:[#allocation2 + $0x68] sm:$0xff]
  %v2638 = vld [vmem:[#allocation2 + $0x70] sm:$0xff]
  %v2639 = vld [vmem:[#allocation2 + $0x78] sm:$0xff]
  %v2640 = vld [vmem:[#allocation2 + $0x80] sm:$0xff]
  %v2641 = vld [vmem:[#allocation2 + $0x88] sm:$0xff]
  %v2642 = vld [vmem:[#allocation2 + $0x90] sm:$0xff]
  %v2643 = vld [vmem:[#allocation2 + $0x98] sm:$0xff]
  %v2644 = vld [vmem:[#allocation2 + $0xa0] sm:$0xff]
  %v2645 = vld [vmem:[#allocation2 + $0xa8] sm:$0xff]
  %v2646 = vld [vmem:[#allocation2 + $0xb0] sm:$0xff]
  %v2647 = vld [vmem:[#allocation2 + $0xb8] sm:$0xff]
  %v2648 = vld [vmem:[#allocation2 + $0xc0] sm:$0xff]
  %v2649 = vld [vmem:[#allocation2 + $0xc8] sm:$0xff]
  %v2650 = vld [vmem:[#allocation2 + $0xd0] sm:$0xff]
  %v2651 = vld [vmem:[#allocation2 + $0xd8] sm:$0xff]
  %v2652 = vld [vmem:[#allocation2 + $0xe0] sm:$0xff]
  %v2653 = vld [vmem:[#allocation2 + $0xe8] sm:$0xff]
  %v2654 = vld [vmem:[#allocation2 + $0xf0] sm:$0xff]
  %v2655 = vld [vmem:[#allocation2 + $0xf8] sm:$0xff]
  %v2656 = vld [vmem:[#allocation2 + $0x100] sm:$0xff]
  %v2657 = vld [vmem:[#allocation2 + $0x108] sm:$0xff]
  %v2658 = vld [vmem:[#allocation2 + $0x110] sm:$0xff]
  %v2659 = vld [vmem:[#allocation2 + $0x118] sm:$0xff]
  %v2660 = vld [vmem:[#allocation2 + $0x120] sm:$0xff]
  %v2661 = vld [vmem:[#allocation2 + $0x128] sm:$0xff]
  %v2662 = vld [vmem:[#allocation2 + $0x130] sm:$0xff]
  %v2663 = vld [vmem:[#allocation2 + $0x138] sm:$0xff]
  %v2664 = vld [vmem:[#allocation2 + $0x140] sm:$0xff]
  %v2665 = vld [vmem:[#allocation2 + $0x148] sm:$0xff]
  %v2666 = vld [vmem:[#allocation2 + $0x150] sm:$0xff]
  %v2667 = vld [vmem:[#allocation2 + $0x158] sm:$0xff]
  %v2668 = vld [vmem:[#allocation2 + $0x160] sm:$0xff]
  %v2669 = vld [vmem:[#allocation2 + $0x168] sm:$0xff]
  %v2670 = vld [vmem:[#allocation2 + $0x170] sm:$0xff]
  %v2671 = vld [vmem:[#allocation2 + $0x178] sm:$0xff]
  %v2672 = vld [vmem:[#allocation2 + $0x180] sm:$0xff]
  %v2673 = vld [vmem:[#allocation2 + $0x188] sm:$0xff]
  %v2674 = vld [vmem:[#allocation2 + $0x190] sm:$0xff]
  %v2675 = vld [vmem:[#allocation2 + $0x198] sm:$0xff]
  %v2676 = vld [vmem:[#allocation2 + $0x1a0] sm:$0xff]
  %v2677 = vld [vmem:[#allocation2 + $0x1a8] sm:$0xff]
  %v2678 = vld [vmem:[#allocation2 + $0x1b0] sm:$0xff]
  %v2679 = vld [vmem:[#allocation2 + $0x1b8] sm:$0xff]
  %v2680 = vld [vmem:[#allocation2 + $0x1c0] sm:$0xff]
  %v2681 = vld [vmem:[#allocation2 + $0x1c8] sm:$0xff]
  %v2682 = vld [vmem:[#allocation2 + $0x1d0] sm:$0xff]
  %v2683 = vld [vmem:[#allocation2 + $0x1d8] sm:$0xff]
  %v2684 = vld [vmem:[#allocation2 + $0x1e0] sm:$0xff]
  %v2685 = vld [vmem:[#allocation2 + $0x1e8] sm:$0xff]
  %v2686 = vld [vmem:[#allocation2 + $0x1f0] sm:$0xff]
  %v2687 = vld [vmem:[#allocation2 + $0x1f8] sm:$0xff]
  %v2688 = vld [vmem:[#allocation2 + $0x200] sm:$0xff]
  %v2689 = vld [vmem:[#allocation2 + $0x208] sm:$0xff]
  %v2690 = vld [vmem:[#allocation2 + $0x210] sm:$0xff]
  %v2691 = vld [vmem:[#allocation2 + $0x218] sm:$0xff]
  %v2692 = vld [vmem:[#allocation2 + $0x220] sm:$0xff]
  %v2693 = vld [vmem:[#allocation2 + $0x228] sm:$0xff]
  %v2694 = vld [vmem:[#allocation2 + $0x230] sm:$0xff]
  %v2695 = vld [vmem:[#allocation2 + $0x238] sm:$0xff]
  %v2696 = vld [vmem:[#allocation2 + $0x240] sm:$0xff]
  %v2697 = vld [vmem:[#allocation2 + $0x248] sm:$0xff]
  %v2698 = vld [vmem:[#allocation2 + $0x250] sm:$0xff]
  %v2699 = vld [vmem:[#allocation2 + $0x258] sm:$0xff]
  %v2700 = vld [vmem:[#allocation2 + $0x260] sm:$0xff]
  %v2701 = vld [vmem:[#allocation2 + $0x268] sm:$0xff]
  %v2702 = vld [vmem:[#allocation2 + $0x270] sm:$0xff]
  %v2703 = vld [vmem:[#allocation2 + $0x278] sm:$0xff]
  %v2704 = vld [vmem:[#allocation2 + $0x280] sm:$0xff]
  %v2705 = vld [vmem:[#allocation2 + $0x288] sm:$0xff]
  %v2706 = vld [vmem:[#allocation2 + $0x290] sm:$0xff]
  %v2707 = vld [vmem:[#allocation2 + $0x298] sm:$0xff]
  %v2708 = vld [vmem:[#allocation2 + $0x2a0] sm:$0xff]
  %v2709 = vld [vmem:[#allocation2 + $0x2a8] sm:$0xff]
  %v2710 = vld [vmem:[#allocation2 + $0x2b0] sm:$0xff]
  %v2711 = vld [vmem:[#allocation2 + $0x2b8] sm:$0xff]
  %v2712 = vld [vmem:[#allocation2 + $0x2c0] sm:$0xff]
  %v2713 = vld [vmem:[#allocation2 + $0x2c8] sm:$0xff]
  %v2714 = vld [vmem:[#allocation2 + $0x2d0] sm:$0xff]
  %v2715 = vld [vmem:[#allocation2 + $0x2d8] sm:$0xff]
  %v2716 = vld [vmem:[#allocation2 + $0x2e0] sm:$0xff]
  %v2717 = vld [vmem:[#allocation2 + $0x2e8] sm:$0xff]
  %v2718 = vld [vmem:[#allocation2 + $0x2f0] sm:$0xff]
  %v2719 = vld [vmem:[#allocation2 + $0x2f8] sm:$0xff]
  %v2720 = vld [vmem:[#allocation2 + $0x300] sm:$0xff]
  %v2721 = vld [vmem:[#allocation2 + $0x308] sm:$0xff]
  %v2722 = vld [vmem:[#allocation2 + $0x310] sm:$0xff]
  %v2723 = vld [vmem:[#allocation2 + $0x318] sm:$0xff]
  %v2724 = vld [vmem:[#allocation2 + $0x320] sm:$0xff]
  %v2725 = vld [vmem:[#allocation2 + $0x328] sm:$0xff]
  %v2726 = vld [vmem:[#allocation2 + $0x330] sm:$0xff]
  %v2727 = vld [vmem:[#allocation2 + $0x338] sm:$0xff]
  %v2728 = vld [vmem:[#allocation2 + $0x340] sm:$0xff]
  %v2729 = vld [vmem:[#allocation2 + $0x348] sm:$0xff]
  %v2730 = vld [vmem:[#allocation2 + $0x350] sm:$0xff]
  %v2731 = vld [vmem:[#allocation2 + $0x358] sm:$0xff]
  %v2732 = vld [vmem:[#allocation2 + $0x360] sm:$0xff]
  %v2733 = vld [vmem:[#allocation2 + $0x368] sm:$0xff]
  %v2734 = vld [vmem:[#allocation2 + $0x370] sm:$0xff]
  %v2735 = vld [vmem:[#allocation2 + $0x378] sm:$0xff]
  %v2736 = vld [vmem:[#allocation2 + $0x380] sm:$0xff]
  %v2737 = vld [vmem:[#allocation2 + $0x388] sm:$0xff]
  %v2738 = vld [vmem:[#allocation2 + $0x390] sm:$0xff]
  %v2739 = vld [vmem:[#allocation2 + $0x398] sm:$0xff]
  %v2740 = vld [vmem:[#allocation2 + $0x3a0] sm:$0xff]
  %v2741 = vld [vmem:[#allocation2 + $0x3a8] sm:$0xff]
  %v2742 = vld [vmem:[#allocation2 + $0x3b0] sm:$0xff]
  %v2743 = vld [vmem:[#allocation2 + $0x3b8] sm:$0xff]
  %v2744 = vld [vmem:[#allocation2 + $0x3c0] sm:$0xff]
  %v2745 = vld [vmem:[#allocation2 + $0x3c8] sm:$0xff]
  %v2746 = vld [vmem:[#allocation2 + $0x3d0] sm:$0xff]
  %v2747 = vld [vmem:[#allocation2 + $0x3d8] sm:$0xff]
  %v2748 = vld [vmem:[#allocation2 + $0x3e0] sm:$0xff]
  %v2749 = vld [vmem:[#allocation2 + $0x3e8] sm:$0xff]
  %v2750 = vld [vmem:[#allocation2 + $0x3f0] sm:$0xff]
  %v2751 = vld [vmem:[#allocation2 + $0x3f8] sm:$0xff]
  %v2752 = vld [vmem:[#allocation2 + $0x400] sm:$0xff]
  %v2753 = vld [vmem:[#allocation2 + $0x408] sm:$0xff]
  %v2754 = vld [vmem:[#allocation2 + $0x410] sm:$0xff]
  %v2755 = vld [vmem:[#allocation2 + $0x418] sm:$0xff]
  %v2756 = vld [vmem:[#allocation2 + $0x420] sm:$0xff]
  %v2757 = vld [vmem:[#allocation2 + $0x428] sm:$0xff]
  %v2758 = vld [vmem:[#allocation2 + $0x430] sm:$0xff]
  %v2759 = vld [vmem:[#allocation2 + $0x438] sm:$0xff]
  %v2760 = vld [vmem:[#allocation2 + $0x440] sm:$0xff]
  %v2761 = vld [vmem:[#allocation2 + $0x448] sm:$0xff]
  %v2762 = vld [vmem:[#allocation2 + $0x450] sm:$0xff]
  %v2763 = vld [vmem:[#allocation2 + $0x458] sm:$0xff]
  %v2764 = vld [vmem:[#allocation2 + $0x460] sm:$0xff]
  %v2765 = vld [vmem:[#allocation2 + $0x468] sm:$0xff]
  %v2766 = vld [vmem:[#allocation2 + $0x470] sm:$0xff]
  %v2767 = vld [vmem:[#allocation2 + $0x478] sm:$0xff]
  %v2768 = vld [vmem:[#allocation2 + $0x480] sm:$0xff]
  %v2769 = vld [vmem:[#allocation2 + $0x488] sm:$0xff]
  %v2770 = vld [vmem:[#allocation2 + $0x490] sm:$0xff]
  %v2771 = vld [vmem:[#allocation2 + $0x498] sm:$0xff]
  %v2772 = vld [vmem:[#allocation2 + $0x4a0] sm:$0xff]
  %v2773 = vld [vmem:[#allocation2 + $0x4a8] sm:$0xff]
  %v2774 = vld [vmem:[#allocation2 + $0x4b0] sm:$0xff]
  %v2775 = vld [vmem:[#allocation2 + $0x4b8] sm:$0xff]
  %v2776 = vld [vmem:[#allocation2 + $0x4c0] sm:$0xff]
  %v2777 = vld [vmem:[#allocation2 + $0x4c8] sm:$0xff]
  %v2778 = vld [vmem:[#allocation2 + $0x4d0] sm:$0xff]
  %v2779 = vld [vmem:[#allocation2 + $0x4d8] sm:$0xff]
  %v2780 = vld [vmem:[#allocation2 + $0x4e0] sm:$0xff]
  %v2781 = vld [vmem:[#allocation2 + $0x4e8] sm:$0xff]
  %v2782 = vld [vmem:[#allocation2 + $0x4f0] sm:$0xff]
  %v2783 = vld [vmem:[#allocation2 + $0x4f8] sm:$0xff]
  %v2784 = vld [vmem:[#allocation2 + $0x500] sm:$0xff]
  %v2785 = vld [vmem:[#allocation2 + $0x508] sm:$0xff]
  %v2786 = vld [vmem:[#allocation2 + $0x510] sm:$0xff]
  %v2787 = vld [vmem:[#allocation2 + $0x518] sm:$0xff]
  %v2788 = vld [vmem:[#allocation2 + $0x520] sm:$0xff]
  %v2789 = vld [vmem:[#allocation2 + $0x528] sm:$0xff]
  %v2790 = vld [vmem:[#allocation2 + $0x530] sm:$0xff]
  %v2791 = vld [vmem:[#allocation2 + $0x538] sm:$0xff]
  %v2792 = vld [vmem:[#allocation2 + $0x540] sm:$0xff]
  %v2793 = vld [vmem:[#allocation2 + $0x548] sm:$0xff]
  %v2794 = vld [vmem:[#allocation2 + $0x550] sm:$0xff]
  %v2795 = vld [vmem:[#allocation2 + $0x558] sm:$0xff]
  %v2796 = vld [vmem:[#allocation2 + $0x560] sm:$0xff]
  %v2797 = vld [vmem:[#allocation2 + $0x568] sm:$0xff]
  %v2798 = vld [vmem:[#allocation2 + $0x570] sm:$0xff]
  %v2799 = vld [vmem:[#allocation2 + $0x578] sm:$0xff]
  %v2800 = vld [vmem:[#allocation2 + $0x580] sm:$0xff]
  %v2801 = vld [vmem:[#allocation2 + $0x588] sm:$0xff]
  %v2802 = vld [vmem:[#allocation2 + $0x590] sm:$0xff]
  %v2803 = vld [vmem:[#allocation2 + $0x598] sm:$0xff]
  %v2804 = vld [vmem:[#allocation2 + $0x5a0] sm:$0xff]
  %v2805 = vld [vmem:[#allocation2 + $0x5a8] sm:$0xff]
  %v2806 = vld [vmem:[#allocation2 + $0x5b0] sm:$0xff]
  %v2807 = vld [vmem:[#allocation2 + $0x5b8] sm:$0xff]
  %v2808 = vld [vmem:[#allocation2 + $0x5c0] sm:$0xff]
  %v2809 = vld [vmem:[#allocation2 + $0x5c8] sm:$0xff]
  %v2810 = vld [vmem:[#allocation2 + $0x5d0] sm:$0xff]
  %v2811 = vld [vmem:[#allocation2 + $0x5d8] sm:$0xff]
  %v2812 = vld [vmem:[#allocation2 + $0x5e0] sm:$0xff]
  %v2813 = vld [vmem:[#allocation2 + $0x5e8] sm:$0xff]
  %v2814 = vld [vmem:[#allocation2 + $0x5f0] sm:$0xff]
  %v2815 = vld [vmem:[#allocation2 + $0x5f8] sm:$0xff]
  %v2816 = vld [vmem:[#allocation2 + $0x600] sm:$0xff]
  %v2817 = vld [vmem:[#allocation2 + $0x608] sm:$0xff]
  %v2818 = vld [vmem:[#allocation2 + $0x610] sm:$0xff]
  %v2819 = vld [vmem:[#allocation2 + $0x618] sm:$0xff]
  %v2820 = vld [vmem:[#allocation2 + $0x620] sm:$0xff]
  %v2821 = vld [vmem:[#allocation2 + $0x628] sm:$0xff]
  %v2822 = vld [vmem:[#allocation2 + $0x630] sm:$0xff]
  %v2823 = vld [vmem:[#allocation2 + $0x638] sm:$0xff]
  %v2824 = vld [vmem:[#allocation2 + $0x640] sm:$0xff]
  %v2825 = vld [vmem:[#allocation2 + $0x648] sm:$0xff]
  %v2826 = vld [vmem:[#allocation2 + $0x650] sm:$0xff]
  %v2827 = vld [vmem:[#allocation2 + $0x658] sm:$0xff]
  %v2828 = vld [vmem:[#allocation2 + $0x660] sm:$0xff]
  %v2829 = vld [vmem:[#allocation2 + $0x668] sm:$0xff]
  %v2830 = vld [vmem:[#allocation2 + $0x670] sm:$0xff]
  %v2831 = vld [vmem:[#allocation2 + $0x678] sm:$0xff]
  %v2832 = vld [vmem:[#allocation2 + $0x680] sm:$0xff]
  %v2833 = vld [vmem:[#allocation2 + $0x688] sm:$0xff]
  %v2834 = vld [vmem:[#allocation2 + $0x690] sm:$0xff]
  %v2835 = vld [vmem:[#allocation2 + $0x698] sm:$0xff]
  %v2836 = vld [vmem:[#allocation2 + $0x6a0] sm:$0xff]
  %v2837 = vld [vmem:[#allocation2 + $0x6a8] sm:$0xff]
  %v2838 = vld [vmem:[#allocation2 + $0x6b0] sm:$0xff]
  %v2839 = vld [vmem:[#allocation2 + $0x6b8] sm:$0xff]
  %v2840 = vld [vmem:[#allocation2 + $0x6c0] sm:$0xff]
  %v2841 = vld [vmem:[#allocation2 + $0x6c8] sm:$0xff]
  %v2842 = vld [vmem:[#allocation2 + $0x6d0] sm:$0xff]
  %v2843 = vld [vmem:[#allocation2 + $0x6d8] sm:$0xff]
  %v2844 = vld [vmem:[#allocation2 + $0x6e0] sm:$0xff]
  %v2845 = vld [vmem:[#allocation2 + $0x6e8] sm:$0xff]
  %v2846 = vld [vmem:[#allocation2 + $0x6f0] sm:$0xff]
  %v2847 = vld [vmem:[#allocation2 + $0x6f8] sm:$0xff]
  %v2848 = vld [vmem:[#allocation2 + $0x700] sm:$0xff]
  %v2849 = vld [vmem:[#allocation2 + $0x708] sm:$0xff]
  %v2850 = vld [vmem:[#allocation2 + $0x710] sm:$0xff]
  %v2851 = vld [vmem:[#allocation2 + $0x718] sm:$0xff]
  %v2852 = vld [vmem:[#allocation2 + $0x720] sm:$0xff]
  %v2853 = vld [vmem:[#allocation2 + $0x728] sm:$0xff]
  %v2854 = vld [vmem:[#allocation2 + $0x730] sm:$0xff]
  %v2855 = vld [vmem:[#allocation2 + $0x738] sm:$0xff]
  %v2856 = vld [vmem:[#allocation2 + $0x740] sm:$0xff]
  %v2857 = vld [vmem:[#allocation2 + $0x748] sm:$0xff]
  %v2858 = vld [vmem:[#allocation2 + $0x750] sm:$0xff]
  %v2859 = vld [vmem:[#allocation2 + $0x758] sm:$0xff]
  %v2860 = vld [vmem:[#allocation2 + $0x760] sm:$0xff]
  %v2861 = vld [vmem:[#allocation2 + $0x768] sm:$0xff]
  %v2862 = vld [vmem:[#allocation2 + $0x770] sm:$0xff]
  %v2863 = vld [vmem:[#allocation2 + $0x778] sm:$0xff]
  %v2864 = vld [vmem:[#allocation2 + $0x780] sm:$0xff]
  %v2865 = vld [vmem:[#allocation2 + $0x788] sm:$0xff]
  %v2866 = vld [vmem:[#allocation2 + $0x790] sm:$0xff]
  %v2867 = vld [vmem:[#allocation2 + $0x798] sm:$0xff]
  %v2868 = vld [vmem:[#allocation2 + $0x7a0] sm:$0xff]
  %v2869 = vld [vmem:[#allocation2 + $0x7a8] sm:$0xff]
  %v2870 = vld [vmem:[#allocation2 + $0x7b0] sm:$0xff]
  %v2871 = vld [vmem:[#allocation2 + $0x7b8] sm:$0xff]
  %v2872 = vld [vmem:[#allocation2 + $0x7c0] sm:$0xff]
  %v2873 = vld [vmem:[#allocation2 + $0x7c8] sm:$0xff]
  %v2874 = vld [vmem:[#allocation2 + $0x7d0] sm:$0xff]
  %v2875 = vld [vmem:[#allocation2 + $0x7d8] sm:$0xff]
  %v2876 = vld [vmem:[#allocation2 + $0x7e0] sm:$0xff]
  %v2877 = vld [vmem:[#allocation2 + $0x7e8] sm:$0xff]
  %v2878 = vld [vmem:[#allocation2 + $0x7f0] sm:$0xff]
  %v2879 = vld [vmem:[#allocation2 + $0x7f8] sm:$0xff]
  %v2880 = vpack.c.bf16 %v2625, %v2624
  %v2881 = vpack.c.bf16 %v2627, %v2626
  %v2882 = vpack.c.bf16 %v2629, %v2628
  %v2883 = vpack.c.bf16 %v2631, %v2630
  %v2884 = vpack.c.bf16 %v2633, %v2632
  %v2885 = vpack.c.bf16 %v2635, %v2634
  %v2886 = vpack.c.bf16 %v2637, %v2636
  %v2887 = vpack.c.bf16 %v2639, %v2638
  %v2888 = vpack.c.bf16 %v2641, %v2640
  %v2889 = vpack.c.bf16 %v2643, %v2642
  %v2890 = vpack.c.bf16 %v2645, %v2644
  %v2891 = vpack.c.bf16 %v2647, %v2646
  %v2892 = vpack.c.bf16 %v2649, %v2648
  %v2893 = vpack.c.bf16 %v2651, %v2650
  %v2894 = vpack.c.bf16 %v2653, %v2652
  %v2895 = vpack.c.bf16 %v2655, %v2654
  %v2896 = vpack.c.bf16 %v2657, %v2656
  %v2897 = vpack.c.bf16 %v2659, %v2658
  %v2898 = vpack.c.bf16 %v2661, %v2660
  %v2899 = vpack.c.bf16 %v2663, %v2662
  %v2900 = vpack.c.bf16 %v2665, %v2664
  %v2901 = vpack.c.bf16 %v2667, %v2666
  %v2902 = vpack.c.bf16 %v2669, %v2668
  %v2903 = vpack.c.bf16 %v2671, %v2670
  %v2904 = vpack.c.bf16 %v2673, %v2672
  %v2905 = vpack.c.bf16 %v2675, %v2674
  %v2906 = vpack.c.bf16 %v2677, %v2676
  %v2907 = vpack.c.bf16 %v2679, %v2678
  %v2908 = vpack.c.bf16 %v2681, %v2680
  %v2909 = vpack.c.bf16 %v2683, %v2682
  %v2910 = vpack.c.bf16 %v2685, %v2684
  %v2911 = vpack.c.bf16 %v2687, %v2686
  %v2912 = vpack.c.bf16 %v2689, %v2688
  %v2913 = vpack.c.bf16 %v2691, %v2690
  %v2914 = vpack.c.bf16 %v2693, %v2692
  %v2915 = vpack.c.bf16 %v2695, %v2694
  %v2916 = vpack.c.bf16 %v2697, %v2696
  %v2917 = vpack.c.bf16 %v2699, %v2698
  %v2918 = vpack.c.bf16 %v2701, %v2700
  %v2919 = vpack.c.bf16 %v2703, %v2702
  %v2920 = vpack.c.bf16 %v2705, %v2704
  %v2921 = vpack.c.bf16 %v2707, %v2706
  %v2922 = vpack.c.bf16 %v2709, %v2708
  %v2923 = vpack.c.bf16 %v2711, %v2710
  %v2924 = vpack.c.bf16 %v2713, %v2712
  %v2925 = vpack.c.bf16 %v2715, %v2714
  %v2926 = vpack.c.bf16 %v2717, %v2716
  %v2927 = vpack.c.bf16 %v2719, %v2718
  %v2928 = vpack.c.bf16 %v2721, %v2720
  %v2929 = vpack.c.bf16 %v2723, %v2722
  %v2930 = vpack.c.bf16 %v2725, %v2724
  %v2931 = vpack.c.bf16 %v2727, %v2726
  %v2932 = vpack.c.bf16 %v2729, %v2728
  %v2933 = vpack.c.bf16 %v2731, %v2730
  %v2934 = vpack.c.bf16 %v2733, %v2732
  %v2935 = vpack.c.bf16 %v2735, %v2734
  %v2936 = vpack.c.bf16 %v2737, %v2736
  %v2937 = vpack.c.bf16 %v2739, %v2738
  %v2938 = vpack.c.bf16 %v2741, %v2740
  %v2939 = vpack.c.bf16 %v2743, %v2742
  %v2940 = vpack.c.bf16 %v2745, %v2744
  %v2941 = vpack.c.bf16 %v2747, %v2746
  %v2942 = vpack.c.bf16 %v2749, %v2748
  %v2943 = vpack.c.bf16 %v2751, %v2750
  %v2944 = vpack.c.bf16 %v2753, %v2752
  %v2945 = vpack.c.bf16 %v2755, %v2754
  %v2946 = vpack.c.bf16 %v2757, %v2756
  %v2947 = vpack.c.bf16 %v2759, %v2758
  %v2948 = vpack.c.bf16 %v2761, %v2760
  %v2949 = vpack.c.bf16 %v2763, %v2762
  %v2950 = vpack.c.bf16 %v2765, %v2764
  %v2951 = vpack.c.bf16 %v2767, %v2766
  %v2952 = vpack.c.bf16 %v2769, %v2768
  %v2953 = vpack.c.bf16 %v2771, %v2770
  %v2954 = vpack.c.bf16 %v2773, %v2772
  %v2955 = vpack.c.bf16 %v2775, %v2774
  %v2956 = vpack.c.bf16 %v2777, %v2776
  %v2957 = vpack.c.bf16 %v2779, %v2778
  %v2958 = vpack.c.bf16 %v2781, %v2780
  %v2959 = vpack.c.bf16 %v2783, %v2782
  %v2960 = vpack.c.bf16 %v2785, %v2784
  %v2961 = vpack.c.bf16 %v2787, %v2786
  %v2962 = vpack.c.bf16 %v2789, %v2788
  %v2963 = vpack.c.bf16 %v2791, %v2790
  %v2964 = vpack.c.bf16 %v2793, %v2792
  %v2965 = vpack.c.bf16 %v2795, %v2794
  %v2966 = vpack.c.bf16 %v2797, %v2796
  %v2967 = vpack.c.bf16 %v2799, %v2798
  %v2968 = vpack.c.bf16 %v2801, %v2800
  %v2969 = vpack.c.bf16 %v2803, %v2802
  %v2970 = vpack.c.bf16 %v2805, %v2804
  %v2971 = vpack.c.bf16 %v2807, %v2806
  %v2972 = vpack.c.bf16 %v2809, %v2808
  %v2973 = vpack.c.bf16 %v2811, %v2810
  %v2974 = vpack.c.bf16 %v2813, %v2812
  %v2975 = vpack.c.bf16 %v2815, %v2814
  %v2976 = vpack.c.bf16 %v2817, %v2816
  %v2977 = vpack.c.bf16 %v2819, %v2818
  %v2978 = vpack.c.bf16 %v2821, %v2820
  %v2979 = vpack.c.bf16 %v2823, %v2822
  %v2980 = vpack.c.bf16 %v2825, %v2824
  %v2981 = vpack.c.bf16 %v2827, %v2826
  %v2982 = vpack.c.bf16 %v2829, %v2828
  %v2983 = vpack.c.bf16 %v2831, %v2830
  %v2984 = vpack.c.bf16 %v2833, %v2832
  %v2985 = vpack.c.bf16 %v2835, %v2834
  %v2986 = vpack.c.bf16 %v2837, %v2836
  %v2987 = vpack.c.bf16 %v2839, %v2838
  %v2988 = vpack.c.bf16 %v2841, %v2840
  %v2989 = vpack.c.bf16 %v2843, %v2842
  %v2990 = vpack.c.bf16 %v2845, %v2844
  %v2991 = vpack.c.bf16 %v2847, %v2846
  %v2992 = vpack.c.bf16 %v2849, %v2848
  %v2993 = vpack.c.bf16 %v2851, %v2850
  %v2994 = vpack.c.bf16 %v2853, %v2852
  %v2995 = vpack.c.bf16 %v2855, %v2854
  %v2996 = vpack.c.bf16 %v2857, %v2856
  %v2997 = vpack.c.bf16 %v2859, %v2858
  %v2998 = vpack.c.bf16 %v2861, %v2860
  %v2999 = vpack.c.bf16 %v2863, %v2862
  %v3000 = vpack.c.bf16 %v2865, %v2864
  %v3001 = vpack.c.bf16 %v2867, %v2866
  %v3002 = vpack.c.bf16 %v2869, %v2868
  %v3003 = vpack.c.bf16 %v2871, %v2870
  %v3004 = vpack.c.bf16 %v2873, %v2872
  %v3005 = vpack.c.bf16 %v2875, %v2874
  %v3006 = vpack.c.bf16 %v2877, %v2876
  %v3007 = vpack.c.bf16 %v2879, %v2878
  %v3136 = vunpack.c.l.b16 %v2880
  %v3137 = vunpack.c.h.b16 %v2880
  %v3138 = vunpack.c.l.b16 %v2881
  %v3139 = vunpack.c.h.b16 %v2881
  %v3140 = vunpack.c.l.b16 %v2882
  %v3141 = vunpack.c.h.b16 %v2882
  %v3142 = vunpack.c.l.b16 %v2883
  %v3143 = vunpack.c.h.b16 %v2883
  %v3144 = vunpack.c.l.b16 %v2884
  %v3145 = vunpack.c.h.b16 %v2884
  %v3146 = vunpack.c.l.b16 %v2885
  %v3147 = vunpack.c.h.b16 %v2885
  %v3148 = vunpack.c.l.b16 %v2886
  %v3149 = vunpack.c.h.b16 %v2886
  %v3150 = vunpack.c.l.b16 %v2887
  %v3151 = vunpack.c.h.b16 %v2887
  %v3152 = vunpack.c.l.b16 %v2888
  %v3153 = vunpack.c.h.b16 %v2888
  %v3154 = vunpack.c.l.b16 %v2889
  %v3155 = vunpack.c.h.b16 %v2889
  %v3156 = vunpack.c.l.b16 %v2890
  %v3157 = vunpack.c.h.b16 %v2890
  %v3158 = vunpack.c.l.b16 %v2891
  %v3159 = vunpack.c.h.b16 %v2891
  %v3160 = vunpack.c.l.b16 %v2892
  %v3161 = vunpack.c.h.b16 %v2892
  %v3162 = vunpack.c.l.b16 %v2893
  %v3163 = vunpack.c.h.b16 %v2893
  %v3164 = vunpack.c.l.b16 %v2894
  %v3165 = vunpack.c.h.b16 %v2894
  %v3166 = vunpack.c.l.b16 %v2895
  %v3167 = vunpack.c.h.b16 %v2895
  %v3168 = vunpack.c.l.b16 %v2896
  %v3169 = vunpack.c.h.b16 %v2896
  %v3170 = vunpack.c.l.b16 %v2897
  %v3171 = vunpack.c.h.b16 %v2897
  %v3172 = vunpack.c.l.b16 %v2898
  %v3173 = vunpack.c.h.b16 %v2898
  %v3174 = vunpack.c.l.b16 %v2899
  %v3175 = vunpack.c.h.b16 %v2899
  %v3176 = vunpack.c.l.b16 %v2900
  %v3177 = vunpack.c.h.b16 %v2900
  %v3178 = vunpack.c.l.b16 %v2901
  %v3179 = vunpack.c.h.b16 %v2901
  %v3180 = vunpack.c.l.b16 %v2902
  %v3181 = vunpack.c.h.b16 %v2902
  %v3182 = vunpack.c.l.b16 %v2903
  %v3183 = vunpack.c.h.b16 %v2903
  %v3184 = vunpack.c.l.b16 %v2904
  %v3185 = vunpack.c.h.b16 %v2904
  %v3186 = vunpack.c.l.b16 %v2905
  %v3187 = vunpack.c.h.b16 %v2905
  %v3188 = vunpack.c.l.b16 %v2906
  %v3189 = vunpack.c.h.b16 %v2906
  %v3190 = vunpack.c.l.b16 %v2907
  %v3191 = vunpack.c.h.b16 %v2907
  %v3192 = vunpack.c.l.b16 %v2908
  %v3193 = vunpack.c.h.b16 %v2908
  %v3194 = vunpack.c.l.b16 %v2909
  %v3195 = vunpack.c.h.b16 %v2909
  %v3196 = vunpack.c.l.b16 %v2910
  %v3197 = vunpack.c.h.b16 %v2910
  %v3198 = vunpack.c.l.b16 %v2911
  %v3199 = vunpack.c.h.b16 %v2911
  %v3200 = vunpack.c.l.b16 %v2912
  %v3201 = vunpack.c.h.b16 %v2912
  %v3202 = vunpack.c.l.b16 %v2913
  %v3203 = vunpack.c.h.b16 %v2913
  %v3204 = vunpack.c.l.b16 %v2914
  %v3205 = vunpack.c.h.b16 %v2914
  %v3206 = vunpack.c.l.b16 %v2915
  %v3207 = vunpack.c.h.b16 %v2915
  %v3208 = vunpack.c.l.b16 %v2916
  %v3209 = vunpack.c.h.b16 %v2916
  %v3210 = vunpack.c.l.b16 %v2917
  %v3211 = vunpack.c.h.b16 %v2917
  %v3212 = vunpack.c.l.b16 %v2918
  %v3213 = vunpack.c.h.b16 %v2918
  %v3214 = vunpack.c.l.b16 %v2919
  %v3215 = vunpack.c.h.b16 %v2919
  %v3216 = vunpack.c.l.b16 %v2920
  %v3217 = vunpack.c.h.b16 %v2920
  %v3218 = vunpack.c.l.b16 %v2921
  %v3219 = vunpack.c.h.b16 %v2921
  %v3220 = vunpack.c.l.b16 %v2922
  %v3221 = vunpack.c.h.b16 %v2922
  %v3222 = vunpack.c.l.b16 %v2923
  %v3223 = vunpack.c.h.b16 %v2923
  %v3224 = vunpack.c.l.b16 %v2924
  %v3225 = vunpack.c.h.b16 %v2924
  %v3226 = vunpack.c.l.b16 %v2925
  %v3227 = vunpack.c.h.b16 %v2925
  %v3228 = vunpack.c.l.b16 %v2926
  %v3229 = vunpack.c.h.b16 %v2926
  %v3230 = vunpack.c.l.b16 %v2927
  %v3231 = vunpack.c.h.b16 %v2927
  %v3232 = vunpack.c.l.b16 %v2928
  %v3233 = vunpack.c.h.b16 %v2928
  %v3234 = vunpack.c.l.b16 %v2929
  %v3235 = vunpack.c.h.b16 %v2929
  %v3236 = vunpack.c.l.b16 %v2930
  %v3237 = vunpack.c.h.b16 %v2930
  %v3238 = vunpack.c.l.b16 %v2931
  %v3239 = vunpack.c.h.b16 %v2931
  %v3240 = vunpack.c.l.b16 %v2932
  %v3241 = vunpack.c.h.b16 %v2932
  %v3242 = vunpack.c.l.b16 %v2933
  %v3243 = vunpack.c.h.b16 %v2933
  %v3244 = vunpack.c.l.b16 %v2934
  %v3245 = vunpack.c.h.b16 %v2934
  %v3246 = vunpack.c.l.b16 %v2935
  %v3247 = vunpack.c.h.b16 %v2935
  %v3248 = vunpack.c.l.b16 %v2936
  %v3249 = vunpack.c.h.b16 %v2936
  %v3250 = vunpack.c.l.b16 %v2937
  %v3251 = vunpack.c.h.b16 %v2937
  %v3252 = vunpack.c.l.b16 %v2938
  %v3253 = vunpack.c.h.b16 %v2938
  %v3254 = vunpack.c.l.b16 %v2939
  %v3255 = vunpack.c.h.b16 %v2939
  %v3256 = vunpack.c.l.b16 %v2940
  %v3257 = vunpack.c.h.b16 %v2940
  %v3258 = vunpack.c.l.b16 %v2941
  %v3259 = vunpack.c.h.b16 %v2941
  %v3260 = vunpack.c.l.b16 %v2942
  %v3261 = vunpack.c.h.b16 %v2942
  %v3262 = vunpack.c.l.b16 %v2943
  %v3263 = vunpack.c.h.b16 %v2943
  %v3264 = vunpack.c.l.b16 %v2944
  %v3265 = vunpack.c.h.b16 %v2944
  %v3266 = vunpack.c.l.b16 %v2945
  %v3267 = vunpack.c.h.b16 %v2945
  %v3268 = vunpack.c.l.b16 %v2946
  %v3269 = vunpack.c.h.b16 %v2946
  %v3270 = vunpack.c.l.b16 %v2947
  %v3271 = vunpack.c.h.b16 %v2947
  %v3272 = vunpack.c.l.b16 %v2948
  %v3273 = vunpack.c.h.b16 %v2948
  %v3274 = vunpack.c.l.b16 %v2949
  %v3275 = vunpack.c.h.b16 %v2949
  %v3276 = vunpack.c.l.b16 %v2950
  %v3277 = vunpack.c.h.b16 %v2950
  %v3278 = vunpack.c.l.b16 %v2951
  %v3279 = vunpack.c.h.b16 %v2951
  %v3280 = vunpack.c.l.b16 %v2952
  %v3281 = vunpack.c.h.b16 %v2952
  %v3282 = vunpack.c.l.b16 %v2953
  %v3283 = vunpack.c.h.b16 %v2953
  %v3284 = vunpack.c.l.b16 %v2954
  %v3285 = vunpack.c.h.b16 %v2954
  %v3286 = vunpack.c.l.b16 %v2955
  %v3287 = vunpack.c.h.b16 %v2955
  %v3288 = vunpack.c.l.b16 %v2956
  %v3289 = vunpack.c.h.b16 %v2956
  %v3290 = vunpack.c.l.b16 %v2957
  %v3291 = vunpack.c.h.b16 %v2957
  %v3292 = vunpack.c.l.b16 %v2958
  %v3293 = vunpack.c.h.b16 %v2958
  %v3294 = vunpack.c.l.b16 %v2959
  %v3295 = vunpack.c.h.b16 %v2959
  %v3296 = vunpack.c.l.b16 %v2960
  %v3297 = vunpack.c.h.b16 %v2960
  %v3298 = vunpack.c.l.b16 %v2961
  %v3299 = vunpack.c.h.b16 %v2961
  %v3300 = vunpack.c.l.b16 %v2962
  %v3301 = vunpack.c.h.b16 %v2962
  %v3302 = vunpack.c.l.b16 %v2963
  %v3303 = vunpack.c.h.b16 %v2963
  %v3304 = vunpack.c.l.b16 %v2964
  %v3305 = vunpack.c.h.b16 %v2964
  %v3306 = vunpack.c.l.b16 %v2965
  %v3307 = vunpack.c.h.b16 %v2965
  %v3308 = vunpack.c.l.b16 %v2966
  %v3309 = vunpack.c.h.b16 %v2966
  %v3310 = vunpack.c.l.b16 %v2967
  %v3311 = vunpack.c.h.b16 %v2967
  %v3312 = vunpack.c.l.b16 %v2968
  %v3313 = vunpack.c.h.b16 %v2968
  %v3314 = vunpack.c.l.b16 %v2969
  %v3315 = vunpack.c.h.b16 %v2969
  %v3316 = vunpack.c.l.b16 %v2970
  %v3317 = vunpack.c.h.b16 %v2970
  %v3318 = vunpack.c.l.b16 %v2971
  %v3319 = vunpack.c.h.b16 %v2971
  %v3320 = vunpack.c.l.b16 %v2972
  %v3321 = vunpack.c.h.b16 %v2972
  %v3322 = vunpack.c.l.b16 %v2973
  %v3323 = vunpack.c.h.b16 %v2973
  %v3324 = vunpack.c.l.b16 %v2974
  %v3325 = vunpack.c.h.b16 %v2974
  %v3326 = vunpack.c.l.b16 %v2975
  %v3327 = vunpack.c.h.b16 %v2975
  %v3328 = vunpack.c.l.b16 %v2976
  %v3329 = vunpack.c.h.b16 %v2976
  %v3330 = vunpack.c.l.b16 %v2977
  %v3331 = vunpack.c.h.b16 %v2977
  %v3332 = vunpack.c.l.b16 %v2978
  %v3333 = vunpack.c.h.b16 %v2978
  %v3334 = vunpack.c.l.b16 %v2979
  %v3335 = vunpack.c.h.b16 %v2979
  %v3336 = vunpack.c.l.b16 %v2980
  %v3337 = vunpack.c.h.b16 %v2980
  %v3338 = vunpack.c.l.b16 %v2981
  %v3339 = vunpack.c.h.b16 %v2981
  %v3340 = vunpack.c.l.b16 %v2982
  %v3341 = vunpack.c.h.b16 %v2982
  %v3342 = vunpack.c.l.b16 %v2983
  %v3343 = vunpack.c.h.b16 %v2983
  %v3344 = vunpack.c.l.b16 %v2984
  %v3345 = vunpack.c.h.b16 %v2984
  %v3346 = vunpack.c.l.b16 %v2985
  %v3347 = vunpack.c.h.b16 %v2985
  %v3348 = vunpack.c.l.b16 %v2986
  %v3349 = vunpack.c.h.b16 %v2986
  %v3350 = vunpack.c.l.b16 %v2987
  %v3351 = vunpack.c.h.b16 %v2987
  %v3352 = vunpack.c.l.b16 %v2988
  %v3353 = vunpack.c.h.b16 %v2988
  %v3354 = vunpack.c.l.b16 %v2989
  %v3355 = vunpack.c.h.b16 %v2989
  %v3356 = vunpack.c.l.b16 %v2990
  %v3357 = vunpack.c.h.b16 %v2990
  %v3358 = vunpack.c.l.b16 %v2991
  %v3359 = vunpack.c.h.b16 %v2991
  %v3360 = vunpack.c.l.b16 %v2992
  %v3361 = vunpack.c.h.b16 %v2992
  %v3362 = vunpack.c.l.b16 %v2993
  %v3363 = vunpack.c.h.b16 %v2993
  %v3364 = vunpack.c.l.b16 %v2994
  %v3365 = vunpack.c.h.b16 %v2994
  %v3366 = vunpack.c.l.b16 %v2995
  %v3367 = vunpack.c.h.b16 %v2995
  %v3368 = vunpack.c.l.b16 %v2996
  %v3369 = vunpack.c.h.b16 %v2996
  %v3370 = vunpack.c.l.b16 %v2997
  %v3371 = vunpack.c.h.b16 %v2997
  %v3372 = vunpack.c.l.b16 %v2998
  %v3373 = vunpack.c.h.b16 %v2998
  %v3374 = vunpack.c.l.b16 %v2999
  %v3375 = vunpack.c.h.b16 %v2999
  %v3376 = vunpack.c.l.b16 %v3000
  %v3377 = vunpack.c.h.b16 %v3000
  %v3378 = vunpack.c.l.b16 %v3001
  %v3379 = vunpack.c.h.b16 %v3001
  %v3380 = vunpack.c.l.b16 %v3002
  %v3381 = vunpack.c.h.b16 %v3002
  %v3382 = vunpack.c.l.b16 %v3003
  %v3383 = vunpack.c.h.b16 %v3003
  %v3384 = vunpack.c.l.b16 %v3004
  %v3385 = vunpack.c.h.b16 %v3004
  %v3386 = vunpack.c.l.b16 %v3005
  %v3387 = vunpack.c.h.b16 %v3005
  %v3388 = vunpack.c.l.b16 %v3006
  %v3389 = vunpack.c.h.b16 %v3006
  %v3390 = vunpack.c.l.b16 %v3007
  %v3391 = vunpack.c.h.b16 %v3007
  %v3392 = vpack.c.b16 %v3136, %v3136
  %v3393 = vpack.c.b16 %v3137, %v3137
  %v3394 = vpack.c.b16 %v3138, %v3138
  %v3395 = vpack.c.b16 %v3139, %v3139
  %v3396 = vpack.c.b16 %v3140, %v3140
  %v3397 = vpack.c.b16 %v3141, %v3141
  %v3398 = vpack.c.b16 %v3142, %v3142
  %v3399 = vpack.c.b16 %v3143, %v3143
  %v3400 = vpack.c.b16 %v3144, %v3144
  %v3401 = vpack.c.b16 %v3145, %v3145
  %v3402 = vpack.c.b16 %v3146, %v3146
  %v3403 = vpack.c.b16 %v3147, %v3147
  %v3404 = vpack.c.b16 %v3148, %v3148
  %v3405 = vpack.c.b16 %v3149, %v3149
  %v3406 = vpack.c.b16 %v3150, %v3150
  %v3407 = vpack.c.b16 %v3151, %v3151
  %v3408 = vpack.c.b16 %v3152, %v3152
  %v3409 = vpack.c.b16 %v3153, %v3153
  %v3410 = vpack.c.b16 %v3154, %v3154
  %v3411 = vpack.c.b16 %v3155, %v3155
  %v3412 = vpack.c.b16 %v3156, %v3156
  %v3413 = vpack.c.b16 %v3157, %v3157
  %v3414 = vpack.c.b16 %v3158, %v3158
  %v3415 = vpack.c.b16 %v3159, %v3159
  %v3416 = vpack.c.b16 %v3160, %v3160
  %v3417 = vpack.c.b16 %v3161, %v3161
  %v3418 = vpack.c.b16 %v3162, %v3162
  %v3419 = vpack.c.b16 %v3163, %v3163
  %v3420 = vpack.c.b16 %v3164, %v3164
  %v3421 = vpack.c.b16 %v3165, %v3165
  %v3422 = vpack.c.b16 %v3166, %v3166
  %v3423 = vpack.c.b16 %v3167, %v3167
  %v3424 = vpack.c.b16 %v3168, %v3168
  %v3425 = vpack.c.b16 %v3169, %v3169
  %v3426 = vpack.c.b16 %v3170, %v3170
  %v3427 = vpack.c.b16 %v3171, %v3171
  %v3428 = vpack.c.b16 %v3172, %v3172
  %v3429 = vpack.c.b16 %v3173, %v3173
  %v3430 = vpack.c.b16 %v3174, %v3174
  %v3431 = vpack.c.b16 %v3175, %v3175
  %v3432 = vpack.c.b16 %v3176, %v3176
  %v3433 = vpack.c.b16 %v3177, %v3177
  %v3434 = vpack.c.b16 %v3178, %v3178
  %v3435 = vpack.c.b16 %v3179, %v3179
  %v3436 = vpack.c.b16 %v3180, %v3180
  %v3437 = vpack.c.b16 %v3181, %v3181
  %v3438 = vpack.c.b16 %v3182, %v3182
  %v3439 = vpack.c.b16 %v3183, %v3183
  %v3440 = vpack.c.b16 %v3184, %v3184
  %v3441 = vpack.c.b16 %v3185, %v3185
  %v3442 = vpack.c.b16 %v3186, %v3186
  %v3443 = vpack.c.b16 %v3187, %v3187
  %v3444 = vpack.c.b16 %v3188, %v3188
  %v3445 = vpack.c.b16 %v3189, %v3189
  %v3446 = vpack.c.b16 %v3190, %v3190
  %v3447 = vpack.c.b16 %v3191, %v3191
  %v3448 = vpack.c.b16 %v3192, %v3192
  %v3449 = vpack.c.b16 %v3193, %v3193
  %v3450 = vpack.c.b16 %v3194, %v3194
  %v3451 = vpack.c.b16 %v3195, %v3195
  %v3452 = vpack.c.b16 %v3196, %v3196
  %v3453 = vpack.c.b16 %v3197, %v3197
  %v3454 = vpack.c.b16 %v3198, %v3198
  %v3455 = vpack.c.b16 %v3199, %v3199
  %v3456 = vpack.c.b16 %v3200, %v3200
  %v3457 = vpack.c.b16 %v3201, %v3201
  %v3458 = vpack.c.b16 %v3202, %v3202
  %v3459 = vpack.c.b16 %v3203, %v3203
  %v3460 = vpack.c.b16 %v3204, %v3204
  %v3461 = vpack.c.b16 %v3205, %v3205
  %v3462 = vpack.c.b16 %v3206, %v3206
  %v3463 = vpack.c.b16 %v3207, %v3207
  %v3464 = vpack.c.b16 %v3208, %v3208
  %v3465 = vpack.c.b16 %v3209, %v3209
  %v3466 = vpack.c.b16 %v3210, %v3210
  %v3467 = vpack.c.b16 %v3211, %v3211
  %v3468 = vpack.c.b16 %v3212, %v3212
  %v3469 = vpack.c.b16 %v3213, %v3213
  %v3470 = vpack.c.b16 %v3214, %v3214
  %v3471 = vpack.c.b16 %v3215, %v3215
  %v3472 = vpack.c.b16 %v3216, %v3216
  %v3473 = vpack.c.b16 %v3217, %v3217
  %v3474 = vpack.c.b16 %v3218, %v3218
  %v3475 = vpack.c.b16 %v3219, %v3219
  %v3476 = vpack.c.b16 %v3220, %v3220
  %v3477 = vpack.c.b16 %v3221, %v3221
  %v3478 = vpack.c.b16 %v3222, %v3222
  %v3479 = vpack.c.b16 %v3223, %v3223
  %v3480 = vpack.c.b16 %v3224, %v3224
  %v3481 = vpack.c.b16 %v3225, %v3225
  %v3482 = vpack.c.b16 %v3226, %v3226
  %v3483 = vpack.c.b16 %v3227, %v3227
  %v3484 = vpack.c.b16 %v3228, %v3228
  %v3485 = vpack.c.b16 %v3229, %v3229
  %v3486 = vpack.c.b16 %v3230, %v3230
  %v3487 = vpack.c.b16 %v3231, %v3231
  %v3488 = vpack.c.b16 %v3232, %v3232
  %v3489 = vpack.c.b16 %v3233, %v3233
  %v3490 = vpack.c.b16 %v3234, %v3234
  %v3491 = vpack.c.b16 %v3235, %v3235
  %v3492 = vpack.c.b16 %v3236, %v3236
  %v3493 = vpack.c.b16 %v3237, %v3237
  %v3494 = vpack.c.b16 %v3238, %v3238
  %v3495 = vpack.c.b16 %v3239, %v3239
  %v3496 = vpack.c.b16 %v3240, %v3240
  %v3497 = vpack.c.b16 %v3241, %v3241
  %v3498 = vpack.c.b16 %v3242, %v3242
  %v3499 = vpack.c.b16 %v3243, %v3243
  %v3500 = vpack.c.b16 %v3244, %v3244
  %v3501 = vpack.c.b16 %v3245, %v3245
  %v3502 = vpack.c.b16 %v3246, %v3246
  %v3503 = vpack.c.b16 %v3247, %v3247
  %v3504 = vpack.c.b16 %v3248, %v3248
  %v3505 = vpack.c.b16 %v3249, %v3249
  %v3506 = vpack.c.b16 %v3250, %v3250
  %v3507 = vpack.c.b16 %v3251, %v3251
  %v3508 = vpack.c.b16 %v3252, %v3252
  %v3509 = vpack.c.b16 %v3253, %v3253
  %v3510 = vpack.c.b16 %v3254, %v3254
  %v3511 = vpack.c.b16 %v3255, %v3255
  %v3512 = vpack.c.b16 %v3256, %v3256
  %v3513 = vpack.c.b16 %v3257, %v3257
  %v3514 = vpack.c.b16 %v3258, %v3258
  %v3515 = vpack.c.b16 %v3259, %v3259
  %v3516 = vpack.c.b16 %v3260, %v3260
  %v3517 = vpack.c.b16 %v3261, %v3261
  %v3518 = vpack.c.b16 %v3262, %v3262
  %v3519 = vpack.c.b16 %v3263, %v3263
  %v3520 = vpack.c.b16 %v3264, %v3264
  %v3521 = vpack.c.b16 %v3265, %v3265
  %v3522 = vpack.c.b16 %v3266, %v3266
  %v3523 = vpack.c.b16 %v3267, %v3267
  %v3524 = vpack.c.b16 %v3268, %v3268
  %v3525 = vpack.c.b16 %v3269, %v3269
  %v3526 = vpack.c.b16 %v3270, %v3270
  %v3527 = vpack.c.b16 %v3271, %v3271
  %v3528 = vpack.c.b16 %v3272, %v3272
  %v3529 = vpack.c.b16 %v3273, %v3273
  %v3530 = vpack.c.b16 %v3274, %v3274
  %v3531 = vpack.c.b16 %v3275, %v3275
  %v3532 = vpack.c.b16 %v3276, %v3276
  %v3533 = vpack.c.b16 %v3277, %v3277
  %v3534 = vpack.c.b16 %v3278, %v3278
  %v3535 = vpack.c.b16 %v3279, %v3279
  %v3536 = vpack.c.b16 %v3280, %v3280
  %v3537 = vpack.c.b16 %v3281, %v3281
  %v3538 = vpack.c.b16 %v3282, %v3282
  %v3539 = vpack.c.b16 %v3283, %v3283
  %v3540 = vpack.c.b16 %v3284, %v3284
  %v3541 = vpack.c.b16 %v3285, %v3285
  %v3542 = vpack.c.b16 %v3286, %v3286
  %v3543 = vpack.c.b16 %v3287, %v3287
  %v3544 = vpack.c.b16 %v3288, %v3288
  %v3545 = vpack.c.b16 %v3289, %v3289
  %v3546 = vpack.c.b16 %v3290, %v3290
  %v3547 = vpack.c.b16 %v3291, %v3291
  %v3548 = vpack.c.b16 %v3292, %v3292
  %v3549 = vpack.c.b16 %v3293, %v3293
  %v3550 = vpack.c.b16 %v3294, %v3294
  %v3551 = vpack.c.b16 %v3295, %v3295
  %v3552 = vpack.c.b16 %v3296, %v3296
  %v3553 = vpack.c.b16 %v3297, %v3297
  %v3554 = vpack.c.b16 %v3298, %v3298
  %v3555 = vpack.c.b16 %v3299, %v3299
  %v3556 = vpack.c.b16 %v3300, %v3300
  %v3557 = vpack.c.b16 %v3301, %v3301
  %v3558 = vpack.c.b16 %v3302, %v3302
  %v3559 = vpack.c.b16 %v3303, %v3303
  %v3560 = vpack.c.b16 %v3304, %v3304
  %v3561 = vpack.c.b16 %v3305, %v3305
  %v3562 = vpack.c.b16 %v3306, %v3306
  %v3563 = vpack.c.b16 %v3307, %v3307
  %v3564 = vpack.c.b16 %v3308, %v3308
  %v3565 = vpack.c.b16 %v3309, %v3309
  %v3566 = vpack.c.b16 %v3310, %v3310
  %v3567 = vpack.c.b16 %v3311, %v3311
  %v3568 = vpack.c.b16 %v3312, %v3312
  %v3569 = vpack.c.b16 %v3313, %v3313
  %v3570 = vpack.c.b16 %v3314, %v3314
  %v3571 = vpack.c.b16 %v3315, %v3315
  %v3572 = vpack.c.b16 %v3316, %v3316
  %v3573 = vpack.c.b16 %v3317, %v3317
  %v3574 = vpack.c.b16 %v3318, %v3318
  %v3575 = vpack.c.b16 %v3319, %v3319
  %v3576 = vpack.c.b16 %v3320, %v3320
  %v3577 = vpack.c.b16 %v3321, %v3321
  %v3578 = vpack.c.b16 %v3322, %v3322
  %v3579 = vpack.c.b16 %v3323, %v3323
  %v3580 = vpack.c.b16 %v3324, %v3324
  %v3581 = vpack.c.b16 %v3325, %v3325
  %v3582 = vpack.c.b16 %v3326, %v3326
  %v3583 = vpack.c.b16 %v3327, %v3327
  %v3584 = vpack.c.b16 %v3328, %v3328
  %v3585 = vpack.c.b16 %v3329, %v3329
  %v3586 = vpack.c.b16 %v3330, %v3330
  %v3587 = vpack.c.b16 %v3331, %v3331
  %v3588 = vpack.c.b16 %v3332, %v3332
  %v3589 = vpack.c.b16 %v3333, %v3333
  %v3590 = vpack.c.b16 %v3334, %v3334
  %v3591 = vpack.c.b16 %v3335, %v3335
  %v3592 = vpack.c.b16 %v3336, %v3336
  %v3593 = vpack.c.b16 %v3337, %v3337
  %v3594 = vpack.c.b16 %v3338, %v3338
  %v3595 = vpack.c.b16 %v3339, %v3339
  %v3596 = vpack.c.b16 %v3340, %v3340
  %v3597 = vpack.c.b16 %v3341, %v3341
  %v3598 = vpack.c.b16 %v3342, %v3342
  %v3599 = vpack.c.b16 %v3343, %v3343
  %v3600 = vpack.c.b16 %v3344, %v3344
  %v3601 = vpack.c.b16 %v3345, %v3345
  %v3602 = vpack.c.b16 %v3346, %v3346
  %v3603 = vpack.c.b16 %v3347, %v3347
  %v3604 = vpack.c.b16 %v3348, %v3348
  %v3605 = vpack.c.b16 %v3349, %v3349
  %v3606 = vpack.c.b16 %v3350, %v3350
  %v3607 = vpack.c.b16 %v3351, %v3351
  %v3608 = vpack.c.b16 %v3352, %v3352
  %v3609 = vpack.c.b16 %v3353, %v3353
  %v3610 = vpack.c.b16 %v3354, %v3354
  %v3611 = vpack.c.b16 %v3355, %v3355
  %v3612 = vpack.c.b16 %v3356, %v3356
  %v3613 = vpack.c.b16 %v3357, %v3357
  %v3614 = vpack.c.b16 %v3358, %v3358
  %v3615 = vpack.c.b16 %v3359, %v3359
  %v3616 = vpack.c.b16 %v3360, %v3360
  %v3617 = vpack.c.b16 %v3361, %v3361
  %v3618 = vpack.c.b16 %v3362, %v3362
  %v3619 = vpack.c.b16 %v3363, %v3363
  %v3620 = vpack.c.b16 %v3364, %v3364
  %v3621 = vpack.c.b16 %v3365, %v3365
  %v3622 = vpack.c.b16 %v3366, %v3366
  %v3623 = vpack.c.b16 %v3367, %v3367
  %v3624 = vpack.c.b16 %v3368, %v3368
  %v3625 = vpack.c.b16 %v3369, %v3369
  %v3626 = vpack.c.b16 %v3370, %v3370
  %v3627 = vpack.c.b16 %v3371, %v3371
  %v3628 = vpack.c.b16 %v3372, %v3372
  %v3629 = vpack.c.b16 %v3373, %v3373
  %v3630 = vpack.c.b16 %v3374, %v3374
  %v3631 = vpack.c.b16 %v3375, %v3375
  %v3632 = vpack.c.b16 %v3376, %v3376
  %v3633 = vpack.c.b16 %v3377, %v3377
  %v3634 = vpack.c.b16 %v3378, %v3378
  %v3635 = vpack.c.b16 %v3379, %v3379
  %v3636 = vpack.c.b16 %v3380, %v3380
  %v3637 = vpack.c.b16 %v3381, %v3381
  %v3638 = vpack.c.b16 %v3382, %v3382
  %v3639 = vpack.c.b16 %v3383, %v3383
  %v3640 = vpack.c.b16 %v3384, %v3384
  %v3641 = vpack.c.b16 %v3385, %v3385
  %v3642 = vpack.c.b16 %v3386, %v3386
  %v3643 = vpack.c.b16 %v3387, %v3387
  %v3644 = vpack.c.b16 %v3388, %v3388
  %v3645 = vpack.c.b16 %v3389, %v3389
  %v3646 = vpack.c.b16 %v3390, %v3390
  %v3647 = vpack.c.b16 %v3391, %v3391
  %vm3904 = vcmask 257024
  %3905 = vst.msk [vmem:[%s2] sm:$0xf] %vm3904, %v3392
  %3906 = vst.msk [vmem:[%s2 + $0x4] sm:$0xf] %vm3904, %v3393
  %3907 = vst.msk [vmem:[%s2 + $0x8] sm:$0xf] %vm3904, %v3394
  %3908 = vst.msk [vmem:[%s2 + $0xc] sm:$0xf] %vm3904, %v3395
  %3909 = vst.msk [vmem:[%s2 + $0x10] sm:$0xf] %vm3904, %v3396
  %3910 = vst.msk [vmem:[%s2 + $0x14] sm:$0xf] %vm3904, %v3397
  %3911 = vst.msk [vmem:[%s2 + $0x18] sm:$0xf] %vm3904, %v3398
  %3912 = vst.msk [vmem:[%s2 + $0x1c] sm:$0xf] %vm3904, %v3399
  %3913 = vst.msk [vmem:[%s2 + $0x20] sm:$0xf] %vm3904, %v3400
  %3914 = vst.msk [vmem:[%s2 + $0x24] sm:$0xf] %vm3904, %v3401
  %3915 = vst.msk [vmem:[%s2 + $0x28] sm:$0xf] %vm3904, %v3402
  %3916 = vst.msk [vmem:[%s2 + $0x2c] sm:$0xf] %vm3904, %v3403
  %3917 = vst.msk [vmem:[%s2 + $0x30] sm:$0xf] %vm3904, %v3404
  %3918 = vst.msk [vmem:[%s2 + $0x34] sm:$0xf] %vm3904, %v3405
  %3919 = vst.msk [vmem:[%s2 + $0x38] sm:$0xf] %vm3904, %v3406
  %3920 = vst.msk [vmem:[%s2 + $0x3c] sm:$0xf] %vm3904, %v3407
  %3921 = vst.msk [vmem:[%s2 + $0x40] sm:$0xf] %vm3904, %v3408
  %3922 = vst.msk [vmem:[%s2 + $0x44] sm:$0xf] %vm3904, %v3409
  %3923 = vst.msk [vmem:[%s2 + $0x48] sm:$0xf] %vm3904, %v3410
  %3924 = vst.msk [vmem:[%s2 + $0x4c] sm:$0xf] %vm3904, %v3411
  %3925 = vst.msk [vmem:[%s2 + $0x50] sm:$0xf] %vm3904, %v3412
  %3926 = vst.msk [vmem:[%s2 + $0x54] sm:$0xf] %vm3904, %v3413
  %3927 = vst.msk [vmem:[%s2 + $0x58] sm:$0xf] %vm3904, %v3414
  %3928 = vst.msk [vmem:[%s2 + $0x5c] sm:$0xf] %vm3904, %v3415
  %3929 = vst.msk [vmem:[%s2 + $0x60] sm:$0xf] %vm3904, %v3416
  %3930 = vst.msk [vmem:[%s2 + $0x64] sm:$0xf] %vm3904, %v3417
  %3931 = vst.msk [vmem:[%s2 + $0x68] sm:$0xf] %vm3904, %v3418
  %3932 = vst.msk [vmem:[%s2 + $0x6c] sm:$0xf] %vm3904, %v3419
  %3933 = vst.msk [vmem:[%s2 + $0x70] sm:$0xf] %vm3904, %v3420
  %3934 = vst.msk [vmem:[%s2 + $0x74] sm:$0xf] %vm3904, %v3421
  %3935 = vst.msk [vmem:[%s2 + $0x78] sm:$0xf] %vm3904, %v3422
  %3936 = vst.msk [vmem:[%s2 + $0x7c] sm:$0xf] %vm3904, %v3423
  %3937 = vst.msk [vmem:[%s2 + $0x80] sm:$0xf] %vm3904, %v3424
  %3938 = vst.msk [vmem:[%s2 + $0x84] sm:$0xf] %vm3904, %v3425
  %3939 = vst.msk [vmem:[%s2 + $0x88] sm:$0xf] %vm3904, %v3426
  %3940 = vst.msk [vmem:[%s2 + $0x8c] sm:$0xf] %vm3904, %v3427
  %3941 = vst.msk [vmem:[%s2 + $0x90] sm:$0xf] %vm3904, %v3428
  %3942 = vst.msk [vmem:[%s2 + $0x94] sm:$0xf] %vm3904, %v3429
  %3943 = vst.msk [vmem:[%s2 + $0x98] sm:$0xf] %vm3904, %v3430
  %3944 = vst.msk [vmem:[%s2 + $0x9c] sm:$0xf] %vm3904, %v3431
  %3945 = vst.msk [vmem:[%s2 + $0xa0] sm:$0xf] %vm3904, %v3432
  %3946 = vst.msk [vmem:[%s2 + $0xa4] sm:$0xf] %vm3904, %v3433
  %3947 = vst.msk [vmem:[%s2 + $0xa8] sm:$0xf] %vm3904, %v3434
  %3948 = vst.msk [vmem:[%s2 + $0xac] sm:$0xf] %vm3904, %v3435
  %3949 = vst.msk [vmem:[%s2 + $0xb0] sm:$0xf] %vm3904, %v3436
  %3950 = vst.msk [vmem:[%s2 + $0xb4] sm:$0xf] %vm3904, %v3437
  %3951 = vst.msk [vmem:[%s2 + $0xb8] sm:$0xf] %vm3904, %v3438
  %3952 = vst.msk [vmem:[%s2 + $0xbc] sm:$0xf] %vm3904, %v3439
  %3953 = vst.msk [vmem:[%s2 + $0xc0] sm:$0xf] %vm3904, %v3440
  %3954 = vst.msk [vmem:[%s2 + $0xc4] sm:$0xf] %vm3904, %v3441
  %3955 = vst.msk [vmem:[%s2 + $0xc8] sm:$0xf] %vm3904, %v3442
  %3956 = vst.msk [vmem:[%s2 + $0xcc] sm:$0xf] %vm3904, %v3443
  %3957 = vst.msk [vmem:[%s2 + $0xd0] sm:$0xf] %vm3904, %v3444
  %3958 = vst.msk [vmem:[%s2 + $0xd4] sm:$0xf] %vm3904, %v3445
  %3959 = vst.msk [vmem:[%s2 + $0xd8] sm:$0xf] %vm3904, %v3446
  %3960 = vst.msk [vmem:[%s2 + $0xdc] sm:$0xf] %vm3904, %v3447
  %3961 = vst.msk [vmem:[%s2 + $0xe0] sm:$0xf] %vm3904, %v3448
  %3962 = vst.msk [vmem:[%s2 + $0xe4] sm:$0xf] %vm3904, %v3449
  %3963 = vst.msk [vmem:[%s2 + $0xe8] sm:$0xf] %vm3904, %v3450
  %3964 = vst.msk [vmem:[%s2 + $0xec] sm:$0xf] %vm3904, %v3451
  %3965 = vst.msk [vmem:[%s2 + $0xf0] sm:$0xf] %vm3904, %v3452
  %3966 = vst.msk [vmem:[%s2 + $0xf4] sm:$0xf] %vm3904, %v3453
  %3967 = vst.msk [vmem:[%s2 + $0xf8] sm:$0xf] %vm3904, %v3454
  %3968 = vst.msk [vmem:[%s2 + $0xfc] sm:$0xf] %vm3904, %v3455
  %3969 = vst.msk [vmem:[%s2 + $0x100] sm:$0xf] %vm3904, %v3456
  %3970 = vst.msk [vmem:[%s2 + $0x104] sm:$0xf] %vm3904, %v3457
  %3971 = vst.msk [vmem:[%s2 + $0x108] sm:$0xf] %vm3904, %v3458
  %3972 = vst.msk [vmem:[%s2 + $0x10c] sm:$0xf] %vm3904, %v3459
  %3973 = vst.msk [vmem:[%s2 + $0x110] sm:$0xf] %vm3904, %v3460
  %3974 = vst.msk [vmem:[%s2 + $0x114] sm:$0xf] %vm3904, %v3461
  %3975 = vst.msk [vmem:[%s2 + $0x118] sm:$0xf] %vm3904, %v3462
  %3976 = vst.msk [vmem:[%s2 + $0x11c] sm:$0xf] %vm3904, %v3463
  %3977 = vst.msk [vmem:[%s2 + $0x120] sm:$0xf] %vm3904, %v3464
  %3978 = vst.msk [vmem:[%s2 + $0x124] sm:$0xf] %vm3904, %v3465
  %3979 = vst.msk [vmem:[%s2 + $0x128] sm:$0xf] %vm3904, %v3466
  %3980 = vst.msk [vmem:[%s2 + $0x12c] sm:$0xf] %vm3904, %v3467
  %3981 = vst.msk [vmem:[%s2 + $0x130] sm:$0xf] %vm3904, %v3468
  %3982 = vst.msk [vmem:[%s2 + $0x134] sm:$0xf] %vm3904, %v3469
  %3983 = vst.msk [vmem:[%s2 + $0x138] sm:$0xf] %vm3904, %v3470
  %3984 = vst.msk [vmem:[%s2 + $0x13c] sm:$0xf] %vm3904, %v3471
  %3985 = vst.msk [vmem:[%s2 + $0x140] sm:$0xf] %vm3904, %v3472
  %3986 = vst.msk [vmem:[%s2 + $0x144] sm:$0xf] %vm3904, %v3473
  %3987 = vst.msk [vmem:[%s2 + $0x148] sm:$0xf] %vm3904, %v3474
  %3988 = vst.msk [vmem:[%s2 + $0x14c] sm:$0xf] %vm3904, %v3475
  %3989 = vst.msk [vmem:[%s2 + $0x150] sm:$0xf] %vm3904, %v3476
  %3990 = vst.msk [vmem:[%s2 + $0x154] sm:$0xf] %vm3904, %v3477
  %3991 = vst.msk [vmem:[%s2 + $0x158] sm:$0xf] %vm3904, %v3478
  %3992 = vst.msk [vmem:[%s2 + $0x15c] sm:$0xf] %vm3904, %v3479
  %3993 = vst.msk [vmem:[%s2 + $0x160] sm:$0xf] %vm3904, %v3480
  %3994 = vst.msk [vmem:[%s2 + $0x164] sm:$0xf] %vm3904, %v3481
  %3995 = vst.msk [vmem:[%s2 + $0x168] sm:$0xf] %vm3904, %v3482
  %3996 = vst.msk [vmem:[%s2 + $0x16c] sm:$0xf] %vm3904, %v3483
  %3997 = vst.msk [vmem:[%s2 + $0x170] sm:$0xf] %vm3904, %v3484
  %3998 = vst.msk [vmem:[%s2 + $0x174] sm:$0xf] %vm3904, %v3485
  %3999 = vst.msk [vmem:[%s2 + $0x178] sm:$0xf] %vm3904, %v3486
  %4000 = vst.msk [vmem:[%s2 + $0x17c] sm:$0xf] %vm3904, %v3487
  %4001 = vst.msk [vmem:[%s2 + $0x180] sm:$0xf] %vm3904, %v3488
  %4002 = vst.msk [vmem:[%s2 + $0x184] sm:$0xf] %vm3904, %v3489
  %4003 = vst.msk [vmem:[%s2 + $0x188] sm:$0xf] %vm3904, %v3490
  %4004 = vst.msk [vmem:[%s2 + $0x18c] sm:$0xf] %vm3904, %v3491
  %4005 = vst.msk [vmem:[%s2 + $0x190] sm:$0xf] %vm3904, %v3492
  %4006 = vst.msk [vmem:[%s2 + $0x194] sm:$0xf] %vm3904, %v3493
  %4007 = vst.msk [vmem:[%s2 + $0x198] sm:$0xf] %vm3904, %v3494
  %4008 = vst.msk [vmem:[%s2 + $0x19c] sm:$0xf] %vm3904, %v3495
  %4009 = vst.msk [vmem:[%s2 + $0x1a0] sm:$0xf] %vm3904, %v3496
  %4010 = vst.msk [vmem:[%s2 + $0x1a4] sm:$0xf] %vm3904, %v3497
  %4011 = vst.msk [vmem:[%s2 + $0x1a8] sm:$0xf] %vm3904, %v3498
  %4012 = vst.msk [vmem:[%s2 + $0x1ac] sm:$0xf] %vm3904, %v3499
  %4013 = vst.msk [vmem:[%s2 + $0x1b0] sm:$0xf] %vm3904, %v3500
  %4014 = vst.msk [vmem:[%s2 + $0x1b4] sm:$0xf] %vm3904, %v3501
  %4015 = vst.msk [vmem:[%s2 + $0x1b8] sm:$0xf] %vm3904, %v3502
  %4016 = vst.msk [vmem:[%s2 + $0x1bc] sm:$0xf] %vm3904, %v3503
  %4017 = vst.msk [vmem:[%s2 + $0x1c0] sm:$0xf] %vm3904, %v3504
  %4018 = vst.msk [vmem:[%s2 + $0x1c4] sm:$0xf] %vm3904, %v3505
  %4019 = vst.msk [vmem:[%s2 + $0x1c8] sm:$0xf] %vm3904, %v3506
  %4020 = vst.msk [vmem:[%s2 + $0x1cc] sm:$0xf] %vm3904, %v3507
  %4021 = vst.msk [vmem:[%s2 + $0x1d0] sm:$0xf] %vm3904, %v3508
  %4022 = vst.msk [vmem:[%s2 + $0x1d4] sm:$0xf] %vm3904, %v3509
  %4023 = vst.msk [vmem:[%s2 + $0x1d8] sm:$0xf] %vm3904, %v3510
  %4024 = vst.msk [vmem:[%s2 + $0x1dc] sm:$0xf] %vm3904, %v3511
  %4025 = vst.msk [vmem:[%s2 + $0x1e0] sm:$0xf] %vm3904, %v3512
  %4026 = vst.msk [vmem:[%s2 + $0x1e4] sm:$0xf] %vm3904, %v3513
  %4027 = vst.msk [vmem:[%s2 + $0x1e8] sm:$0xf] %vm3904, %v3514
  %4028 = vst.msk [vmem:[%s2 + $0x1ec] sm:$0xf] %vm3904, %v3515
  %4029 = vst.msk [vmem:[%s2 + $0x1f0] sm:$0xf] %vm3904, %v3516
  %4030 = vst.msk [vmem:[%s2 + $0x1f4] sm:$0xf] %vm3904, %v3517
  %4031 = vst.msk [vmem:[%s2 + $0x1f8] sm:$0xf] %vm3904, %v3518
  %4032 = vst.msk [vmem:[%s2 + $0x1fc] sm:$0xf] %vm3904, %v3519
  %4033 = vst.msk [vmem:[%s2 + $0x200] sm:$0xf] %vm3904, %v3520
  %4034 = vst.msk [vmem:[%s2 + $0x204] sm:$0xf] %vm3904, %v3521
  %4035 = vst.msk [vmem:[%s2 + $0x208] sm:$0xf] %vm3904, %v3522
  %4036 = vst.msk [vmem:[%s2 + $0x20c] sm:$0xf] %vm3904, %v3523
  %4037 = vst.msk [vmem:[%s2 + $0x210] sm:$0xf] %vm3904, %v3524
  %4038 = vst.msk [vmem:[%s2 + $0x214] sm:$0xf] %vm3904, %v3525
  %4039 = vst.msk [vmem:[%s2 + $0x218] sm:$0xf] %vm3904, %v3526
  %4040 = vst.msk [vmem:[%s2 + $0x21c] sm:$0xf] %vm3904, %v3527
  %4041 = vst.msk [vmem:[%s2 + $0x220] sm:$0xf] %vm3904, %v3528
  %4042 = vst.msk [vmem:[%s2 + $0x224] sm:$0xf] %vm3904, %v3529
  %4043 = vst.msk [vmem:[%s2 + $0x228] sm:$0xf] %vm3904, %v3530
  %4044 = vst.msk [vmem:[%s2 + $0x22c] sm:$0xf] %vm3904, %v3531
  %4045 = vst.msk [vmem:[%s2 + $0x230] sm:$0xf] %vm3904, %v3532
  %4046 = vst.msk [vmem:[%s2 + $0x234] sm:$0xf] %vm3904, %v3533
  %4047 = vst.msk [vmem:[%s2 + $0x238] sm:$0xf] %vm3904, %v3534
  %4048 = vst.msk [vmem:[%s2 + $0x23c] sm:$0xf] %vm3904, %v3535
  %4049 = vst.msk [vmem:[%s2 + $0x240] sm:$0xf] %vm3904, %v3536
  %4050 = vst.msk [vmem:[%s2 + $0x244] sm:$0xf] %vm3904, %v3537
  %4051 = vst.msk [vmem:[%s2 + $0x248] sm:$0xf] %vm3904, %v3538
  %4052 = vst.msk [vmem:[%s2 + $0x24c] sm:$0xf] %vm3904, %v3539
  %4053 = vst.msk [vmem:[%s2 + $0x250] sm:$0xf] %vm3904, %v3540
  %4054 = vst.msk [vmem:[%s2 + $0x254] sm:$0xf] %vm3904, %v3541
  %4055 = vst.msk [vmem:[%s2 + $0x258] sm:$0xf] %vm3904, %v3542
  %4056 = vst.msk [vmem:[%s2 + $0x25c] sm:$0xf] %vm3904, %v3543
  %4057 = vst.msk [vmem:[%s2 + $0x260] sm:$0xf] %vm3904, %v3544
  %4058 = vst.msk [vmem:[%s2 + $0x264] sm:$0xf] %vm3904, %v3545
  %4059 = vst.msk [vmem:[%s2 + $0x268] sm:$0xf] %vm3904, %v3546
  %4060 = vst.msk [vmem:[%s2 + $0x26c] sm:$0xf] %vm3904, %v3547
  %4061 = vst.msk [vmem:[%s2 + $0x270] sm:$0xf] %vm3904, %v3548
  %4062 = vst.msk [vmem:[%s2 + $0x274] sm:$0xf] %vm3904, %v3549
  %4063 = vst.msk [vmem:[%s2 + $0x278] sm:$0xf] %vm3904, %v3550
  %4064 = vst.msk [vmem:[%s2 + $0x27c] sm:$0xf] %vm3904, %v3551
  %4065 = vst.msk [vmem:[%s2 + $0x280] sm:$0xf] %vm3904, %v3552
  %4066 = vst.msk [vmem:[%s2 + $0x284] sm:$0xf] %vm3904, %v3553
  %4067 = vst.msk [vmem:[%s2 + $0x288] sm:$0xf] %vm3904, %v3554
  %4068 = vst.msk [vmem:[%s2 + $0x28c] sm:$0xf] %vm3904, %v3555
  %4069 = vst.msk [vmem:[%s2 + $0x290] sm:$0xf] %vm3904, %v3556
  %4070 = vst.msk [vmem:[%s2 + $0x294] sm:$0xf] %vm3904, %v3557
  %4071 = vst.msk [vmem:[%s2 + $0x298] sm:$0xf] %vm3904, %v3558
  %4072 = vst.msk [vmem:[%s2 + $0x29c] sm:$0xf] %vm3904, %v3559
  %4073 = vst.msk [vmem:[%s2 + $0x2a0] sm:$0xf] %vm3904, %v3560
  %4074 = vst.msk [vmem:[%s2 + $0x2a4] sm:$0xf] %vm3904, %v3561
  %4075 = vst.msk [vmem:[%s2 + $0x2a8] sm:$0xf] %vm3904, %v3562
  %4076 = vst.msk [vmem:[%s2 + $0x2ac] sm:$0xf] %vm3904, %v3563
  %4077 = vst.msk [vmem:[%s2 + $0x2b0] sm:$0xf] %vm3904, %v3564
  %4078 = vst.msk [vmem:[%s2 + $0x2b4] sm:$0xf] %vm3904, %v3565
  %4079 = vst.msk [vmem:[%s2 + $0x2b8] sm:$0xf] %vm3904, %v3566
  %4080 = vst.msk [vmem:[%s2 + $0x2bc] sm:$0xf] %vm3904, %v3567
  %4081 = vst.msk [vmem:[%s2 + $0x2c0] sm:$0xf] %vm3904, %v3568
  %4082 = vst.msk [vmem:[%s2 + $0x2c4] sm:$0xf] %vm3904, %v3569
  %4083 = vst.msk [vmem:[%s2 + $0x2c8] sm:$0xf] %vm3904, %v3570
  %4084 = vst.msk [vmem:[%s2 + $0x2cc] sm:$0xf] %vm3904, %v3571
  %4085 = vst.msk [vmem:[%s2 + $0x2d0] sm:$0xf] %vm3904, %v3572
  %4086 = vst.msk [vmem:[%s2 + $0x2d4] sm:$0xf] %vm3904, %v3573
  %4087 = vst.msk [vmem:[%s2 + $0x2d8] sm:$0xf] %vm3904, %v3574
  %4088 = vst.msk [vmem:[%s2 + $0x2dc] sm:$0xf] %vm3904, %v3575
  %4089 = vst.msk [vmem:[%s2 + $0x2e0] sm:$0xf] %vm3904, %v3576
  %4090 = vst.msk [vmem:[%s2 + $0x2e4] sm:$0xf] %vm3904, %v3577
  %4091 = vst.msk [vmem:[%s2 + $0x2e8] sm:$0xf] %vm3904, %v3578
  %4092 = vst.msk [vmem:[%s2 + $0x2ec] sm:$0xf] %vm3904, %v3579
  %4093 = vst.msk [vmem:[%s2 + $0x2f0] sm:$0xf] %vm3904, %v3580
  %4094 = vst.msk [vmem:[%s2 + $0x2f4] sm:$0xf] %vm3904, %v3581
  %4095 = vst.msk [vmem:[%s2 + $0x2f8] sm:$0xf] %vm3904, %v3582
  %4096 = vst.msk [vmem:[%s2 + $0x2fc] sm:$0xf] %vm3904, %v3583
  %4097 = vst.msk [vmem:[%s2 + $0x300] sm:$0xf] %vm3904, %v3584
  %4098 = vst.msk [vmem:[%s2 + $0x304] sm:$0xf] %vm3904, %v3585
  %4099 = vst.msk [vmem:[%s2 + $0x308] sm:$0xf] %vm3904, %v3586
  %4100 = vst.msk [vmem:[%s2 + $0x30c] sm:$0xf] %vm3904, %v3587
  %4101 = vst.msk [vmem:[%s2 + $0x310] sm:$0xf] %vm3904, %v3588
  %4102 = vst.msk [vmem:[%s2 + $0x314] sm:$0xf] %vm3904, %v3589
  %4103 = vst.msk [vmem:[%s2 + $0x318] sm:$0xf] %vm3904, %v3590
  %4104 = vst.msk [vmem:[%s2 + $0x31c] sm:$0xf] %vm3904, %v3591
  %4105 = vst.msk [vmem:[%s2 + $0x320] sm:$0xf] %vm3904, %v3592
  %4106 = vst.msk [vmem:[%s2 + $0x324] sm:$0xf] %vm3904, %v3593
  %4107 = vst.msk [vmem:[%s2 + $0x328] sm:$0xf] %vm3904, %v3594
  %4108 = vst.msk [vmem:[%s2 + $0x32c] sm:$0xf] %vm3904, %v3595
  %4109 = vst.msk [vmem:[%s2 + $0x330] sm:$0xf] %vm3904, %v3596
  %4110 = vst.msk [vmem:[%s2 + $0x334] sm:$0xf] %vm3904, %v3597
  %4111 = vst.msk [vmem:[%s2 + $0x338] sm:$0xf] %vm3904, %v3598
  %4112 = vst.msk [vmem:[%s2 + $0x33c] sm:$0xf] %vm3904, %v3599
  %4113 = vst.msk [vmem:[%s2 + $0x340] sm:$0xf] %vm3904, %v3600
  %4114 = vst.msk [vmem:[%s2 + $0x344] sm:$0xf] %vm3904, %v3601
  %4115 = vst.msk [vmem:[%s2 + $0x348] sm:$0xf] %vm3904, %v3602
  %4116 = vst.msk [vmem:[%s2 + $0x34c] sm:$0xf] %vm3904, %v3603
  %4117 = vst.msk [vmem:[%s2 + $0x350] sm:$0xf] %vm3904, %v3604
  %4118 = vst.msk [vmem:[%s2 + $0x354] sm:$0xf] %vm3904, %v3605
  %4119 = vst.msk [vmem:[%s2 + $0x358] sm:$0xf] %vm3904, %v3606
  %4120 = vst.msk [vmem:[%s2 + $0x35c] sm:$0xf] %vm3904, %v3607
  %4121 = vst.msk [vmem:[%s2 + $0x360] sm:$0xf] %vm3904, %v3608
  %4122 = vst.msk [vmem:[%s2 + $0x364] sm:$0xf] %vm3904, %v3609
  %4123 = vst.msk [vmem:[%s2 + $0x368] sm:$0xf] %vm3904, %v3610
  %4124 = vst.msk [vmem:[%s2 + $0x36c] sm:$0xf] %vm3904, %v3611
  %4125 = vst.msk [vmem:[%s2 + $0x370] sm:$0xf] %vm3904, %v3612
  %4126 = vst.msk [vmem:[%s2 + $0x374] sm:$0xf] %vm3904, %v3613
  %4127 = vst.msk [vmem:[%s2 + $0x378] sm:$0xf] %vm3904, %v3614
  %4128 = vst.msk [vmem:[%s2 + $0x37c] sm:$0xf] %vm3904, %v3615
  %4129 = vst.msk [vmem:[%s2 + $0x380] sm:$0xf] %vm3904, %v3616
  %4130 = vst.msk [vmem:[%s2 + $0x384] sm:$0xf] %vm3904, %v3617
  %4131 = vst.msk [vmem:[%s2 + $0x388] sm:$0xf] %vm3904, %v3618
  %4132 = vst.msk [vmem:[%s2 + $0x38c] sm:$0xf] %vm3904, %v3619
  %4133 = vst.msk [vmem:[%s2 + $0x390] sm:$0xf] %vm3904, %v3620
  %4134 = vst.msk [vmem:[%s2 + $0x394] sm:$0xf] %vm3904, %v3621
  %4135 = vst.msk [vmem:[%s2 + $0x398] sm:$0xf] %vm3904, %v3622
  %4136 = vst.msk [vmem:[%s2 + $0x39c] sm:$0xf] %vm3904, %v3623
  %4137 = vst.msk [vmem:[%s2 + $0x3a0] sm:$0xf] %vm3904, %v3624
  %4138 = vst.msk [vmem:[%s2 + $0x3a4] sm:$0xf] %vm3904, %v3625
  %4139 = vst.msk [vmem:[%s2 + $0x3a8] sm:$0xf] %vm3904, %v3626
  %4140 = vst.msk [vmem:[%s2 + $0x3ac] sm:$0xf] %vm3904, %v3627
  %4141 = vst.msk [vmem:[%s2 + $0x3b0] sm:$0xf] %vm3904, %v3628
  %4142 = vst.msk [vmem:[%s2 + $0x3b4] sm:$0xf] %vm3904, %v3629
  %4143 = vst.msk [vmem:[%s2 + $0x3b8] sm:$0xf] %vm3904, %v3630
  %4144 = vst.msk [vmem:[%s2 + $0x3bc] sm:$0xf] %vm3904, %v3631
  %4145 = vst.msk [vmem:[%s2 + $0x3c0] sm:$0xf] %vm3904, %v3632
  %4146 = vst.msk [vmem:[%s2 + $0x3c4] sm:$0xf] %vm3904, %v3633
  %4147 = vst.msk [vmem:[%s2 + $0x3c8] sm:$0xf] %vm3904, %v3634
  %4148 = vst.msk [vmem:[%s2 + $0x3cc] sm:$0xf] %vm3904, %v3635
  %4149 = vst.msk [vmem:[%s2 + $0x3d0] sm:$0xf] %vm3904, %v3636
  %4150 = vst.msk [vmem:[%s2 + $0x3d4] sm:$0xf] %vm3904, %v3637
  %4151 = vst.msk [vmem:[%s2 + $0x3d8] sm:$0xf] %vm3904, %v3638
  %4152 = vst.msk [vmem:[%s2 + $0x3dc] sm:$0xf] %vm3904, %v3639
  %4153 = vst.msk [vmem:[%s2 + $0x3e0] sm:$0xf] %vm3904, %v3640
  %4154 = vst.msk [vmem:[%s2 + $0x3e4] sm:$0xf] %vm3904, %v3641
  %4155 = vst.msk [vmem:[%s2 + $0x3e8] sm:$0xf] %vm3904, %v3642
  %4156 = vst.msk [vmem:[%s2 + $0x3ec] sm:$0xf] %vm3904, %v3643
  %4157 = vst.msk [vmem:[%s2 + $0x3f0] sm:$0xf] %vm3904, %v3644
  %4158 = vst.msk [vmem:[%s2 + $0x3f4] sm:$0xf] %vm3904, %v3645
  %4159 = vst.msk [vmem:[%s2 + $0x3f8] sm:$0xf] %vm3904, %v3646
  %4160 = vst.msk [vmem:[%s2 + $0x3fc] sm:$0xf] %vm3904, %v3647
  %v4161 = vsel %vm926, %v2624, 0.0
  %v4162 = vsel %vm926, %v2625, 0.0
  %v4163 = vadd.f32 %v4161, %v4162
  %v4164 = vsel %vm926, %v2626, 0.0
  %v4165 = vadd.f32 %v4163, %v4164
  %v4166 = vsel %vm926, %v2627, 0.0
  %v4167 = vadd.f32 %v4165, %v4166
  %v4168 = vsel %vm926, %v2628, 0.0
  %v4169 = vadd.f32 %v4167, %v4168
  %v4170 = vsel %vm926, %v2629, 0.0
  %v4171 = vadd.f32 %v4169, %v4170
  %v4172 = vsel %vm926, %v2630, 0.0
  %v4173 = vadd.f32 %v4171, %v4172
  %v4174 = vsel %vm926, %v2631, 0.0
  %v4175 = vadd.f32 %v4173, %v4174
  %v4176 = vsel %vm926, %v2632, 0.0
  %v4177 = vadd.f32 %v4175, %v4176
  %v4178 = vsel %vm926, %v2633, 0.0
  %v4179 = vadd.f32 %v4177, %v4178
  %v4180 = vsel %vm926, %v2634, 0.0
  %v4181 = vadd.f32 %v4179, %v4180
  %v4182 = vsel %vm926, %v2635, 0.0
  %v4183 = vadd.f32 %v4181, %v4182
  %v4184 = vsel %vm926, %v2636, 0.0
  %v4185 = vadd.f32 %v4183, %v4184
  %v4186 = vsel %vm926, %v2637, 0.0
  %v4187 = vadd.f32 %v4185, %v4186
  %v4188 = vsel %vm926, %v2638, 0.0
  %v4189 = vadd.f32 %v4187, %v4188
  %v4190 = vsel %vm926, %v2639, 0.0
  %v4191 = vadd.f32 %v4189, %v4190
  %v4192 = vsel %vm926, %v2640, 0.0
  %v4193 = vadd.f32 %v4191, %v4192
  %v4194 = vsel %vm926, %v2641, 0.0
  %v4195 = vadd.f32 %v4193, %v4194
  %v4196 = vsel %vm926, %v2642, 0.0
  %v4197 = vadd.f32 %v4195, %v4196
  %v4198 = vsel %vm926, %v2643, 0.0
  %v4199 = vadd.f32 %v4197, %v4198
  %v4200 = vsel %vm926, %v2644, 0.0
  %v4201 = vadd.f32 %v4199, %v4200
  %v4202 = vsel %vm926, %v2645, 0.0
  %v4203 = vadd.f32 %v4201, %v4202
  %v4204 = vsel %vm926, %v2646, 0.0
  %v4205 = vadd.f32 %v4203, %v4204
  %v4206 = vsel %vm926, %v2647, 0.0
  %v4207 = vadd.f32 %v4205, %v4206
  %v4208 = vsel %vm926, %v2648, 0.0
  %v4209 = vadd.f32 %v4207, %v4208
  %v4210 = vsel %vm926, %v2649, 0.0
  %v4211 = vadd.f32 %v4209, %v4210
  %v4212 = vsel %vm926, %v2650, 0.0
  %v4213 = vadd.f32 %v4211, %v4212
  %v4214 = vsel %vm926, %v2651, 0.0
  %v4215 = vadd.f32 %v4213, %v4214
  %v4216 = vsel %vm926, %v2652, 0.0
  %v4217 = vadd.f32 %v4215, %v4216
  %v4218 = vsel %vm926, %v2653, 0.0
  %v4219 = vadd.f32 %v4217, %v4218
  %v4220 = vsel %vm926, %v2654, 0.0
  %v4221 = vadd.f32 %v4219, %v4220
  %v4222 = vsel %vm926, %v2655, 0.0
  %v4223 = vadd.f32 %v4221, %v4222
  %v4224 = vsel %vm926, %v2656, 0.0
  %v4225 = vadd.f32 %v4223, %v4224
  %v4226 = vsel %vm926, %v2657, 0.0
  %v4227 = vadd.f32 %v4225, %v4226
  %v4228 = vsel %vm926, %v2658, 0.0
  %v4229 = vadd.f32 %v4227, %v4228
  %v4230 = vsel %vm926, %v2659, 0.0
  %v4231 = vadd.f32 %v4229, %v4230
  %v4232 = vsel %vm926, %v2660, 0.0
  %v4233 = vadd.f32 %v4231, %v4232
  %v4234 = vsel %vm926, %v2661, 0.0
  %v4235 = vadd.f32 %v4233, %v4234
  %v4236 = vsel %vm926, %v2662, 0.0
  %v4237 = vadd.f32 %v4235, %v4236
  %v4238 = vsel %vm926, %v2663, 0.0
  %v4239 = vadd.f32 %v4237, %v4238
  %v4240 = vsel %vm926, %v2664, 0.0
  %v4241 = vadd.f32 %v4239, %v4240
  %v4242 = vsel %vm926, %v2665, 0.0
  %v4243 = vadd.f32 %v4241, %v4242
  %v4244 = vsel %vm926, %v2666, 0.0
  %v4245 = vadd.f32 %v4243, %v4244
  %v4246 = vsel %vm926, %v2667, 0.0
  %v4247 = vadd.f32 %v4245, %v4246
  %v4248 = vsel %vm926, %v2668, 0.0
  %v4249 = vadd.f32 %v4247, %v4248
  %v4250 = vsel %vm926, %v2669, 0.0
  %v4251 = vadd.f32 %v4249, %v4250
  %v4252 = vsel %vm926, %v2670, 0.0
  %v4253 = vadd.f32 %v4251, %v4252
  %v4254 = vsel %vm926, %v2671, 0.0
  %v4255 = vadd.f32 %v4253, %v4254
  %v4256 = vsel %vm926, %v2672, 0.0
  %v4257 = vadd.f32 %v4255, %v4256
  %v4258 = vsel %vm926, %v2673, 0.0
  %v4259 = vadd.f32 %v4257, %v4258
  %v4260 = vsel %vm926, %v2674, 0.0
  %v4261 = vadd.f32 %v4259, %v4260
  %v4262 = vsel %vm926, %v2675, 0.0
  %v4263 = vadd.f32 %v4261, %v4262
  %v4264 = vsel %vm926, %v2676, 0.0
  %v4265 = vadd.f32 %v4263, %v4264
  %v4266 = vsel %vm926, %v2677, 0.0
  %v4267 = vadd.f32 %v4265, %v4266
  %v4268 = vsel %vm926, %v2678, 0.0
  %v4269 = vadd.f32 %v4267, %v4268
  %v4270 = vsel %vm926, %v2679, 0.0
  %v4271 = vadd.f32 %v4269, %v4270
  %v4272 = vsel %vm926, %v2680, 0.0
  %v4273 = vadd.f32 %v4271, %v4272
  %v4274 = vsel %vm926, %v2681, 0.0
  %v4275 = vadd.f32 %v4273, %v4274
  %v4276 = vsel %vm926, %v2682, 0.0
  %v4277 = vadd.f32 %v4275, %v4276
  %v4278 = vsel %vm926, %v2683, 0.0
  %v4279 = vadd.f32 %v4277, %v4278
  %v4280 = vsel %vm926, %v2684, 0.0
  %v4281 = vadd.f32 %v4279, %v4280
  %v4282 = vsel %vm926, %v2685, 0.0
  %v4283 = vadd.f32 %v4281, %v4282
  %v4284 = vsel %vm926, %v2686, 0.0
  %v4285 = vadd.f32 %v4283, %v4284
  %v4286 = vsel %vm926, %v2687, 0.0
  %v4287 = vadd.f32 %v4285, %v4286
  %v4288 = vsel %vm926, %v2688, 0.0
  %v4289 = vadd.f32 %v4287, %v4288
  %v4290 = vsel %vm926, %v2689, 0.0
  %v4291 = vadd.f32 %v4289, %v4290
  %v4292 = vsel %vm926, %v2690, 0.0
  %v4293 = vadd.f32 %v4291, %v4292
  %v4294 = vsel %vm926, %v2691, 0.0
  %v4295 = vadd.f32 %v4293, %v4294
  %v4296 = vsel %vm926, %v2692, 0.0
  %v4297 = vadd.f32 %v4295, %v4296
  %v4298 = vsel %vm926, %v2693, 0.0
  %v4299 = vadd.f32 %v4297, %v4298
  %v4300 = vsel %vm926, %v2694, 0.0
  %v4301 = vadd.f32 %v4299, %v4300
  %v4302 = vsel %vm926, %v2695, 0.0
  %v4303 = vadd.f32 %v4301, %v4302
  %v4304 = vsel %vm926, %v2696, 0.0
  %v4305 = vadd.f32 %v4303, %v4304
  %v4306 = vsel %vm926, %v2697, 0.0
  %v4307 = vadd.f32 %v4305, %v4306
  %v4308 = vsel %vm926, %v2698, 0.0
  %v4309 = vadd.f32 %v4307, %v4308
  %v4310 = vsel %vm926, %v2699, 0.0
  %v4311 = vadd.f32 %v4309, %v4310
  %v4312 = vsel %vm926, %v2700, 0.0
  %v4313 = vadd.f32 %v4311, %v4312
  %v4314 = vsel %vm926, %v2701, 0.0
  %v4315 = vadd.f32 %v4313, %v4314
  %v4316 = vsel %vm926, %v2702, 0.0
  %v4317 = vadd.f32 %v4315, %v4316
  %v4318 = vsel %vm926, %v2703, 0.0
  %v4319 = vadd.f32 %v4317, %v4318
  %v4320 = vsel %vm926, %v2704, 0.0
  %v4321 = vadd.f32 %v4319, %v4320
  %v4322 = vsel %vm926, %v2705, 0.0
  %v4323 = vadd.f32 %v4321, %v4322
  %v4324 = vsel %vm926, %v2706, 0.0
  %v4325 = vadd.f32 %v4323, %v4324
  %v4326 = vsel %vm926, %v2707, 0.0
  %v4327 = vadd.f32 %v4325, %v4326
  %v4328 = vsel %vm926, %v2708, 0.0
  %v4329 = vadd.f32 %v4327, %v4328
  %v4330 = vsel %vm926, %v2709, 0.0
  %v4331 = vadd.f32 %v4329, %v4330
  %v4332 = vsel %vm926, %v2710, 0.0
  %v4333 = vadd.f32 %v4331, %v4332
  %v4334 = vsel %vm926, %v2711, 0.0
  %v4335 = vadd.f32 %v4333, %v4334
  %v4336 = vsel %vm926, %v2712, 0.0
  %v4337 = vadd.f32 %v4335, %v4336
  %v4338 = vsel %vm926, %v2713, 0.0
  %v4339 = vadd.f32 %v4337, %v4338
  %v4340 = vsel %vm926, %v2714, 0.0
  %v4341 = vadd.f32 %v4339, %v4340
  %v4342 = vsel %vm926, %v2715, 0.0
  %v4343 = vadd.f32 %v4341, %v4342
  %v4344 = vsel %vm926, %v2716, 0.0
  %v4345 = vadd.f32 %v4343, %v4344
  %v4346 = vsel %vm926, %v2717, 0.0
  %v4347 = vadd.f32 %v4345, %v4346
  %v4348 = vsel %vm926, %v2718, 0.0
  %v4349 = vadd.f32 %v4347, %v4348
  %v4350 = vsel %vm926, %v2719, 0.0
  %v4351 = vadd.f32 %v4349, %v4350
  %v4352 = vsel %vm926, %v2720, 0.0
  %v4353 = vadd.f32 %v4351, %v4352
  %v4354 = vsel %vm926, %v2721, 0.0
  %v4355 = vadd.f32 %v4353, %v4354
  %v4356 = vsel %vm926, %v2722, 0.0
  %v4357 = vadd.f32 %v4355, %v4356
  %v4358 = vsel %vm926, %v2723, 0.0
  %v4359 = vadd.f32 %v4357, %v4358
  %v4360 = vsel %vm926, %v2724, 0.0
  %v4361 = vadd.f32 %v4359, %v4360
  %v4362 = vsel %vm926, %v2725, 0.0
  %v4363 = vadd.f32 %v4361, %v4362
  %v4364 = vsel %vm926, %v2726, 0.0
  %v4365 = vadd.f32 %v4363, %v4364
  %v4366 = vsel %vm926, %v2727, 0.0
  %v4367 = vadd.f32 %v4365, %v4366
  %v4368 = vsel %vm926, %v2728, 0.0
  %v4369 = vadd.f32 %v4367, %v4368
  %v4370 = vsel %vm926, %v2729, 0.0
  %v4371 = vadd.f32 %v4369, %v4370
  %v4372 = vsel %vm926, %v2730, 0.0
  %v4373 = vadd.f32 %v4371, %v4372
  %v4374 = vsel %vm926, %v2731, 0.0
  %v4375 = vadd.f32 %v4373, %v4374
  %v4376 = vsel %vm926, %v2732, 0.0
  %v4377 = vadd.f32 %v4375, %v4376
  %v4378 = vsel %vm926, %v2733, 0.0
  %v4379 = vadd.f32 %v4377, %v4378
  %v4380 = vsel %vm926, %v2734, 0.0
  %v4381 = vadd.f32 %v4379, %v4380
  %v4382 = vsel %vm926, %v2735, 0.0
  %v4383 = vadd.f32 %v4381, %v4382
  %v4384 = vsel %vm926, %v2736, 0.0
  %v4385 = vadd.f32 %v4383, %v4384
  %v4386 = vsel %vm926, %v2737, 0.0
  %v4387 = vadd.f32 %v4385, %v4386
  %v4388 = vsel %vm926, %v2738, 0.0
  %v4389 = vadd.f32 %v4387, %v4388
  %v4390 = vsel %vm926, %v2739, 0.0
  %v4391 = vadd.f32 %v4389, %v4390
  %v4392 = vsel %vm926, %v2740, 0.0
  %v4393 = vadd.f32 %v4391, %v4392
  %v4394 = vsel %vm926, %v2741, 0.0
  %v4395 = vadd.f32 %v4393, %v4394
  %v4396 = vsel %vm926, %v2742, 0.0
  %v4397 = vadd.f32 %v4395, %v4396
  %v4398 = vsel %vm926, %v2743, 0.0
  %v4399 = vadd.f32 %v4397, %v4398
  %v4400 = vsel %vm926, %v2744, 0.0
  %v4401 = vadd.f32 %v4399, %v4400
  %v4402 = vsel %vm926, %v2745, 0.0
  %v4403 = vadd.f32 %v4401, %v4402
  %v4404 = vsel %vm926, %v2746, 0.0
  %v4405 = vadd.f32 %v4403, %v4404
  %v4406 = vsel %vm926, %v2747, 0.0
  %v4407 = vadd.f32 %v4405, %v4406
  %v4408 = vsel %vm926, %v2748, 0.0
  %v4409 = vadd.f32 %v4407, %v4408
  %v4410 = vsel %vm926, %v2749, 0.0
  %v4411 = vadd.f32 %v4409, %v4410
  %v4412 = vsel %vm926, %v2750, 0.0
  %v4413 = vadd.f32 %v4411, %v4412
  %v4414 = vsel %vm926, %v2751, 0.0
  %v4415 = vadd.f32 %v4413, %v4414
  %v4416 = vsel %vm926, %v2752, 0.0
  %v4417 = vadd.f32 %v4415, %v4416
  %v4418 = vsel %vm926, %v2753, 0.0
  %v4419 = vadd.f32 %v4417, %v4418
  %v4420 = vsel %vm926, %v2754, 0.0
  %v4421 = vadd.f32 %v4419, %v4420
  %v4422 = vsel %vm926, %v2755, 0.0
  %v4423 = vadd.f32 %v4421, %v4422
  %v4424 = vsel %vm926, %v2756, 0.0
  %v4425 = vadd.f32 %v4423, %v4424
  %v4426 = vsel %vm926, %v2757, 0.0
  %v4427 = vadd.f32 %v4425, %v4426
  %v4428 = vsel %vm926, %v2758, 0.0
  %v4429 = vadd.f32 %v4427, %v4428
  %v4430 = vsel %vm926, %v2759, 0.0
  %v4431 = vadd.f32 %v4429, %v4430
  %v4432 = vsel %vm926, %v2760, 0.0
  %v4433 = vadd.f32 %v4431, %v4432
  %v4434 = vsel %vm926, %v2761, 0.0
  %v4435 = vadd.f32 %v4433, %v4434
  %v4436 = vsel %vm926, %v2762, 0.0
  %v4437 = vadd.f32 %v4435, %v4436
  %v4438 = vsel %vm926, %v2763, 0.0
  %v4439 = vadd.f32 %v4437, %v4438
  %v4440 = vsel %vm926, %v2764, 0.0
  %v4441 = vadd.f32 %v4439, %v4440
  %v4442 = vsel %vm926, %v2765, 0.0
  %v4443 = vadd.f32 %v4441, %v4442
  %v4444 = vsel %vm926, %v2766, 0.0
  %v4445 = vadd.f32 %v4443, %v4444
  %v4446 = vsel %vm926, %v2767, 0.0
  %v4447 = vadd.f32 %v4445, %v4446
  %v4448 = vsel %vm926, %v2768, 0.0
  %v4449 = vadd.f32 %v4447, %v4448
  %v4450 = vsel %vm926, %v2769, 0.0
  %v4451 = vadd.f32 %v4449, %v4450
  %v4452 = vsel %vm926, %v2770, 0.0
  %v4453 = vadd.f32 %v4451, %v4452
  %v4454 = vsel %vm926, %v2771, 0.0
  %v4455 = vadd.f32 %v4453, %v4454
  %v4456 = vsel %vm926, %v2772, 0.0
  %v4457 = vadd.f32 %v4455, %v4456
  %v4458 = vsel %vm926, %v2773, 0.0
  %v4459 = vadd.f32 %v4457, %v4458
  %v4460 = vsel %vm926, %v2774, 0.0
  %v4461 = vadd.f32 %v4459, %v4460
  %v4462 = vsel %vm926, %v2775, 0.0
  %v4463 = vadd.f32 %v4461, %v4462
  %v4464 = vsel %vm926, %v2776, 0.0
  %v4465 = vadd.f32 %v4463, %v4464
  %v4466 = vsel %vm926, %v2777, 0.0
  %v4467 = vadd.f32 %v4465, %v4466
  %v4468 = vsel %vm926, %v2778, 0.0
  %v4469 = vadd.f32 %v4467, %v4468
  %v4470 = vsel %vm926, %v2779, 0.0
  %v4471 = vadd.f32 %v4469, %v4470
  %v4472 = vsel %vm926, %v2780, 0.0
  %v4473 = vadd.f32 %v4471, %v4472
  %v4474 = vsel %vm926, %v2781, 0.0
  %v4475 = vadd.f32 %v4473, %v4474
  %v4476 = vsel %vm926, %v2782, 0.0
  %v4477 = vadd.f32 %v4475, %v4476
  %v4478 = vsel %vm926, %v2783, 0.0
  %v4479 = vadd.f32 %v4477, %v4478
  %v4480 = vsel %vm926, %v2784, 0.0
  %v4481 = vadd.f32 %v4479, %v4480
  %v4482 = vsel %vm926, %v2785, 0.0
  %v4483 = vadd.f32 %v4481, %v4482
  %v4484 = vsel %vm926, %v2786, 0.0
  %v4485 = vadd.f32 %v4483, %v4484
  %v4486 = vsel %vm926, %v2787, 0.0
  %v4487 = vadd.f32 %v4485, %v4486
  %v4488 = vsel %vm926, %v2788, 0.0
  %v4489 = vadd.f32 %v4487, %v4488
  %v4490 = vsel %vm926, %v2789, 0.0
  %v4491 = vadd.f32 %v4489, %v4490
  %v4492 = vsel %vm926, %v2790, 0.0
  %v4493 = vadd.f32 %v4491, %v4492
  %v4494 = vsel %vm926, %v2791, 0.0
  %v4495 = vadd.f32 %v4493, %v4494
  %v4496 = vsel %vm926, %v2792, 0.0
  %v4497 = vadd.f32 %v4495, %v4496
  %v4498 = vsel %vm926, %v2793, 0.0
  %v4499 = vadd.f32 %v4497, %v4498
  %v4500 = vsel %vm926, %v2794, 0.0
  %v4501 = vadd.f32 %v4499, %v4500
  %v4502 = vsel %vm926, %v2795, 0.0
  %v4503 = vadd.f32 %v4501, %v4502
  %v4504 = vsel %vm926, %v2796, 0.0
  %v4505 = vadd.f32 %v4503, %v4504
  %v4506 = vsel %vm926, %v2797, 0.0
  %v4507 = vadd.f32 %v4505, %v4506
  %v4508 = vsel %vm926, %v2798, 0.0
  %v4509 = vadd.f32 %v4507, %v4508
  %v4510 = vsel %vm926, %v2799, 0.0
  %v4511 = vadd.f32 %v4509, %v4510
  %v4512 = vsel %vm926, %v2800, 0.0
  %v4513 = vadd.f32 %v4511, %v4512
  %v4514 = vsel %vm926, %v2801, 0.0
  %v4515 = vadd.f32 %v4513, %v4514
  %v4516 = vsel %vm926, %v2802, 0.0
  %v4517 = vadd.f32 %v4515, %v4516
  %v4518 = vsel %vm926, %v2803, 0.0
  %v4519 = vadd.f32 %v4517, %v4518
  %v4520 = vsel %vm926, %v2804, 0.0
  %v4521 = vadd.f32 %v4519, %v4520
  %v4522 = vsel %vm926, %v2805, 0.0
  %v4523 = vadd.f32 %v4521, %v4522
  %v4524 = vsel %vm926, %v2806, 0.0
  %v4525 = vadd.f32 %v4523, %v4524
  %v4526 = vsel %vm926, %v2807, 0.0
  %v4527 = vadd.f32 %v4525, %v4526
  %v4528 = vsel %vm926, %v2808, 0.0
  %v4529 = vadd.f32 %v4527, %v4528
  %v4530 = vsel %vm926, %v2809, 0.0
  %v4531 = vadd.f32 %v4529, %v4530
  %v4532 = vsel %vm926, %v2810, 0.0
  %v4533 = vadd.f32 %v4531, %v4532
  %v4534 = vsel %vm926, %v2811, 0.0
  %v4535 = vadd.f32 %v4533, %v4534
  %v4536 = vsel %vm926, %v2812, 0.0
  %v4537 = vadd.f32 %v4535, %v4536
  %v4538 = vsel %vm926, %v2813, 0.0
  %v4539 = vadd.f32 %v4537, %v4538
  %v4540 = vsel %vm926, %v2814, 0.0
  %v4541 = vadd.f32 %v4539, %v4540
  %v4542 = vsel %vm926, %v2815, 0.0
  %v4543 = vadd.f32 %v4541, %v4542
  %v4544 = vsel %vm926, %v2816, 0.0
  %v4545 = vadd.f32 %v4543, %v4544
  %v4546 = vsel %vm926, %v2817, 0.0
  %v4547 = vadd.f32 %v4545, %v4546
  %v4548 = vsel %vm926, %v2818, 0.0
  %v4549 = vadd.f32 %v4547, %v4548
  %v4550 = vsel %vm926, %v2819, 0.0
  %v4551 = vadd.f32 %v4549, %v4550
  %v4552 = vsel %vm926, %v2820, 0.0
  %v4553 = vadd.f32 %v4551, %v4552
  %v4554 = vsel %vm926, %v2821, 0.0
  %v4555 = vadd.f32 %v4553, %v4554
  %v4556 = vsel %vm926, %v2822, 0.0
  %v4557 = vadd.f32 %v4555, %v4556
  %v4558 = vsel %vm926, %v2823, 0.0
  %v4559 = vadd.f32 %v4557, %v4558
  %v4560 = vsel %vm926, %v2824, 0.0
  %v4561 = vadd.f32 %v4559, %v4560
  %v4562 = vsel %vm926, %v2825, 0.0
  %v4563 = vadd.f32 %v4561, %v4562
  %v4564 = vsel %vm926, %v2826, 0.0
  %v4565 = vadd.f32 %v4563, %v4564
  %v4566 = vsel %vm926, %v2827, 0.0
  %v4567 = vadd.f32 %v4565, %v4566
  %v4568 = vsel %vm926, %v2828, 0.0
  %v4569 = vadd.f32 %v4567, %v4568
  %v4570 = vsel %vm926, %v2829, 0.0
  %v4571 = vadd.f32 %v4569, %v4570
  %v4572 = vsel %vm926, %v2830, 0.0
  %v4573 = vadd.f32 %v4571, %v4572
  %v4574 = vsel %vm926, %v2831, 0.0
  %v4575 = vadd.f32 %v4573, %v4574
  %v4576 = vsel %vm926, %v2832, 0.0
  %v4577 = vadd.f32 %v4575, %v4576
  %v4578 = vsel %vm926, %v2833, 0.0
  %v4579 = vadd.f32 %v4577, %v4578
  %v4580 = vsel %vm926, %v2834, 0.0
  %v4581 = vadd.f32 %v4579, %v4580
  %v4582 = vsel %vm926, %v2835, 0.0
  %v4583 = vadd.f32 %v4581, %v4582
  %v4584 = vsel %vm926, %v2836, 0.0
  %v4585 = vadd.f32 %v4583, %v4584
  %v4586 = vsel %vm926, %v2837, 0.0
  %v4587 = vadd.f32 %v4585, %v4586
  %v4588 = vsel %vm926, %v2838, 0.0
  %v4589 = vadd.f32 %v4587, %v4588
  %v4590 = vsel %vm926, %v2839, 0.0
  %v4591 = vadd.f32 %v4589, %v4590
  %v4592 = vsel %vm926, %v2840, 0.0
  %v4593 = vadd.f32 %v4591, %v4592
  %v4594 = vsel %vm926, %v2841, 0.0
  %v4595 = vadd.f32 %v4593, %v4594
  %v4596 = vsel %vm926, %v2842, 0.0
  %v4597 = vadd.f32 %v4595, %v4596
  %v4598 = vsel %vm926, %v2843, 0.0
  %v4599 = vadd.f32 %v4597, %v4598
  %v4600 = vsel %vm926, %v2844, 0.0
  %v4601 = vadd.f32 %v4599, %v4600
  %v4602 = vsel %vm926, %v2845, 0.0
  %v4603 = vadd.f32 %v4601, %v4602
  %v4604 = vsel %vm926, %v2846, 0.0
  %v4605 = vadd.f32 %v4603, %v4604
  %v4606 = vsel %vm926, %v2847, 0.0
  %v4607 = vadd.f32 %v4605, %v4606
  %v4608 = vsel %vm926, %v2848, 0.0
  %v4609 = vadd.f32 %v4607, %v4608
  %v4610 = vsel %vm926, %v2849, 0.0
  %v4611 = vadd.f32 %v4609, %v4610
  %v4612 = vsel %vm926, %v2850, 0.0
  %v4613 = vadd.f32 %v4611, %v4612
  %v4614 = vsel %vm926, %v2851, 0.0
  %v4615 = vadd.f32 %v4613, %v4614
  %v4616 = vsel %vm926, %v2852, 0.0
  %v4617 = vadd.f32 %v4615, %v4616
  %v4618 = vsel %vm926, %v2853, 0.0
  %v4619 = vadd.f32 %v4617, %v4618
  %v4620 = vsel %vm926, %v2854, 0.0
  %v4621 = vadd.f32 %v4619, %v4620
  %v4622 = vsel %vm926, %v2855, 0.0
  %v4623 = vadd.f32 %v4621, %v4622
  %v4624 = vsel %vm926, %v2856, 0.0
  %v4625 = vadd.f32 %v4623, %v4624
  %v4626 = vsel %vm926, %v2857, 0.0
  %v4627 = vadd.f32 %v4625, %v4626
  %v4628 = vsel %vm926, %v2858, 0.0
  %v4629 = vadd.f32 %v4627, %v4628
  %v4630 = vsel %vm926, %v2859, 0.0
  %v4631 = vadd.f32 %v4629, %v4630
  %v4632 = vsel %vm926, %v2860, 0.0
  %v4633 = vadd.f32 %v4631, %v4632
  %v4634 = vsel %vm926, %v2861, 0.0
  %v4635 = vadd.f32 %v4633, %v4634
  %v4636 = vsel %vm926, %v2862, 0.0
  %v4637 = vadd.f32 %v4635, %v4636
  %v4638 = vsel %vm926, %v2863, 0.0
  %v4639 = vadd.f32 %v4637, %v4638
  %v4640 = vsel %vm926, %v2864, 0.0
  %v4641 = vadd.f32 %v4639, %v4640
  %v4642 = vsel %vm926, %v2865, 0.0
  %v4643 = vadd.f32 %v4641, %v4642
  %v4644 = vsel %vm926, %v2866, 0.0
  %v4645 = vadd.f32 %v4643, %v4644
  %v4646 = vsel %vm926, %v2867, 0.0
  %v4647 = vadd.f32 %v4645, %v4646
  %v4648 = vsel %vm926, %v2868, 0.0
  %v4649 = vadd.f32 %v4647, %v4648
  %v4650 = vsel %vm926, %v2869, 0.0
  %v4651 = vadd.f32 %v4649, %v4650
  %v4652 = vsel %vm926, %v2870, 0.0
  %v4653 = vadd.f32 %v4651, %v4652
  %v4654 = vsel %vm926, %v2871, 0.0
  %v4655 = vadd.f32 %v4653, %v4654
  %v4656 = vsel %vm926, %v2872, 0.0
  %v4657 = vadd.f32 %v4655, %v4656
  %v4658 = vsel %vm926, %v2873, 0.0
  %v4659 = vadd.f32 %v4657, %v4658
  %v4660 = vsel %vm926, %v2874, 0.0
  %v4661 = vadd.f32 %v4659, %v4660
  %v4662 = vsel %vm926, %v2875, 0.0
  %v4663 = vadd.f32 %v4661, %v4662
  %v4664 = vsel %vm926, %v2876, 0.0
  %v4665 = vadd.f32 %v4663, %v4664
  %v4666 = vsel %vm926, %v2877, 0.0
  %v4667 = vadd.f32 %v4665, %v4666
  %v4668 = vsel %vm926, %v2878, 0.0
  %v4669 = vadd.f32 %v4667, %v4668
  %v4670 = vsel %vm926, %v2879, 0.0
  %v4671 = vadd.f32 %v4669, %v4670
  %v4672 = vrot.slane %v4671, 4
  %v4673 = vadd.f32 %v4671, %v4672
  %v4674 = vrot.slane %v4673, 2
  %v4675 = vadd.f32 %v4673, %v4674
  %v4676 = vrot.slane %v4675, 1
  %v4677 = vadd.f32 %v4675, %v4676
  %v4678 = vmul.f32 %v2624, %v2624
  %v4679 = vmul.f32 %v2625, %v2625
  %v4680 = vmul.f32 %v2626, %v2626
  %v4681 = vmul.f32 %v2627, %v2627
  %v4682 = vmul.f32 %v2628, %v2628
  %v4683 = vmul.f32 %v2629, %v2629
  %v4684 = vmul.f32 %v2630, %v2630
  %v4685 = vmul.f32 %v2631, %v2631
  %v4686 = vmul.f32 %v2632, %v2632
  %v4687 = vmul.f32 %v2633, %v2633
  %v4688 = vmul.f32 %v2634, %v2634
  %v4689 = vmul.f32 %v2635, %v2635
  %v4690 = vmul.f32 %v2636, %v2636
  %v4691 = vmul.f32 %v2637, %v2637
  %v4692 = vmul.f32 %v2638, %v2638
  %v4693 = vmul.f32 %v2639, %v2639
  %v4694 = vmul.f32 %v2640, %v2640
  %v4695 = vmul.f32 %v2641, %v2641
  %v4696 = vmul.f32 %v2642, %v2642
  %v4697 = vmul.f32 %v2643, %v2643
  %v4698 = vmul.f32 %v2644, %v2644
  %v4699 = vmul.f32 %v2645, %v2645
  %v4700 = vmul.f32 %v2646, %v2646
  %v4701 = vmul.f32 %v2647, %v2647
  %v4702 = vmul.f32 %v2648, %v2648
  %v4703 = vmul.f32 %v2649, %v2649
  %v4704 = vmul.f32 %v2650, %v2650
  %v4705 = vmul.f32 %v2651, %v2651
  %v4706 = vmul.f32 %v2652, %v2652
  %v4707 = vmul.f32 %v2653, %v2653
  %v4708 = vmul.f32 %v2654, %v2654
  %v4709 = vmul.f32 %v2655, %v2655
  %v4710 = vmul.f32 %v2656, %v2656
  %v4711 = vmul.f32 %v2657, %v2657
  %v4712 = vmul.f32 %v2658, %v2658
  %v4713 = vmul.f32 %v2659, %v2659
  %v4714 = vmul.f32 %v2660, %v2660
  %v4715 = vmul.f32 %v2661, %v2661
  %v4716 = vmul.f32 %v2662, %v2662
  %v4717 = vmul.f32 %v2663, %v2663
  %v4718 = vmul.f32 %v2664, %v2664
  %v4719 = vmul.f32 %v2665, %v2665
  %v4720 = vmul.f32 %v2666, %v2666
  %v4721 = vmul.f32 %v2667, %v2667
  %v4722 = vmul.f32 %v2668, %v2668
  %v4723 = vmul.f32 %v2669, %v2669
  %v4724 = vmul.f32 %v2670, %v2670
  %v4725 = vmul.f32 %v2671, %v2671
  %v4726 = vmul.f32 %v2672, %v2672
  %v4727 = vmul.f32 %v2673, %v2673
  %v4728 = vmul.f32 %v2674, %v2674
  %v4729 = vmul.f32 %v2675, %v2675
  %v4730 = vmul.f32 %v2676, %v2676
  %v4731 = vmul.f32 %v2677, %v2677
  %v4732 = vmul.f32 %v2678, %v2678
  %v4733 = vmul.f32 %v2679, %v2679
  %v4734 = vmul.f32 %v2680, %v2680
  %v4735 = vmul.f32 %v2681, %v2681
  %v4736 = vmul.f32 %v2682, %v2682
  %v4737 = vmul.f32 %v2683, %v2683
  %v4738 = vmul.f32 %v2684, %v2684
  %v4739 = vmul.f32 %v2685, %v2685
  %v4740 = vmul.f32 %v2686, %v2686
  %v4741 = vmul.f32 %v2687, %v2687
  %v4742 = vmul.f32 %v2688, %v2688
  %v4743 = vmul.f32 %v2689, %v2689
  %v4744 = vmul.f32 %v2690, %v2690
  %v4745 = vmul.f32 %v2691, %v2691
  %v4746 = vmul.f32 %v2692, %v2692
  %v4747 = vmul.f32 %v2693, %v2693
  %v4748 = vmul.f32 %v2694, %v2694
  %v4749 = vmul.f32 %v2695, %v2695
  %v4750 = vmul.f32 %v2696, %v2696
  %v4751 = vmul.f32 %v2697, %v2697
  %v4752 = vmul.f32 %v2698, %v2698
  %v4753 = vmul.f32 %v2699, %v2699
  %v4754 = vmul.f32 %v2700, %v2700
  %v4755 = vmul.f32 %v2701, %v2701
  %v4756 = vmul.f32 %v2702, %v2702
  %v4757 = vmul.f32 %v2703, %v2703
  %v4758 = vmul.f32 %v2704, %v2704
  %v4759 = vmul.f32 %v2705, %v2705
  %v4760 = vmul.f32 %v2706, %v2706
  %v4761 = vmul.f32 %v2707, %v2707
  %v4762 = vmul.f32 %v2708, %v2708
  %v4763 = vmul.f32 %v2709, %v2709
  %v4764 = vmul.f32 %v2710, %v2710
  %v4765 = vmul.f32 %v2711, %v2711
  %v4766 = vmul.f32 %v2712, %v2712
  %v4767 = vmul.f32 %v2713, %v2713
  %v4768 = vmul.f32 %v2714, %v2714
  %v4769 = vmul.f32 %v2715, %v2715
  %v4770 = vmul.f32 %v2716, %v2716
  %v4771 = vmul.f32 %v2717, %v2717
  %v4772 = vmul.f32 %v2718, %v2718
  %v4773 = vmul.f32 %v2719, %v2719
  %v4774 = vmul.f32 %v2720, %v2720
  %v4775 = vmul.f32 %v2721, %v2721
  %v4776 = vmul.f32 %v2722, %v2722
  %v4777 = vmul.f32 %v2723, %v2723
  %v4778 = vmul.f32 %v2724, %v2724
  %v4779 = vmul.f32 %v2725, %v2725
  %v4780 = vmul.f32 %v2726, %v2726
  %v4781 = vmul.f32 %v2727, %v2727
  %v4782 = vmul.f32 %v2728, %v2728
  %v4783 = vmul.f32 %v2729, %v2729
  %v4784 = vmul.f32 %v2730, %v2730
  %v4785 = vmul.f32 %v2731, %v2731
  %v4786 = vmul.f32 %v2732, %v2732
  %v4787 = vmul.f32 %v2733, %v2733
  %v4788 = vmul.f32 %v2734, %v2734
  %v4789 = vmul.f32 %v2735, %v2735
  %v4790 = vmul.f32 %v2736, %v2736
  %v4791 = vmul.f32 %v2737, %v2737
  %v4792 = vmul.f32 %v2738, %v2738
  %v4793 = vmul.f32 %v2739, %v2739
  %v4794 = vmul.f32 %v2740, %v2740
  %v4795 = vmul.f32 %v2741, %v2741
  %v4796 = vmul.f32 %v2742, %v2742
  %v4797 = vmul.f32 %v2743, %v2743
  %v4798 = vmul.f32 %v2744, %v2744
  %v4799 = vmul.f32 %v2745, %v2745
  %v4800 = vmul.f32 %v2746, %v2746
  %v4801 = vmul.f32 %v2747, %v2747
  %v4802 = vmul.f32 %v2748, %v2748
  %v4803 = vmul.f32 %v2749, %v2749
  %v4804 = vmul.f32 %v2750, %v2750
  %v4805 = vmul.f32 %v2751, %v2751
  %v4806 = vmul.f32 %v2752, %v2752
  %v4807 = vmul.f32 %v2753, %v2753
  %v4808 = vmul.f32 %v2754, %v2754
  %v4809 = vmul.f32 %v2755, %v2755
  %v4810 = vmul.f32 %v2756, %v2756
  %v4811 = vmul.f32 %v2757, %v2757
  %v4812 = vmul.f32 %v2758, %v2758
  %v4813 = vmul.f32 %v2759, %v2759
  %v4814 = vmul.f32 %v2760, %v2760
  %v4815 = vmul.f32 %v2761, %v2761
  %v4816 = vmul.f32 %v2762, %v2762
  %v4817 = vmul.f32 %v2763, %v2763
  %v4818 = vmul.f32 %v2764, %v2764
  %v4819 = vmul.f32 %v2765, %v2765
  %v4820 = vmul.f32 %v2766, %v2766
  %v4821 = vmul.f32 %v2767, %v2767
  %v4822 = vmul.f32 %v2768, %v2768
  %v4823 = vmul.f32 %v2769, %v2769
  %v4824 = vmul.f32 %v2770, %v2770
  %v4825 = vmul.f32 %v2771, %v2771
  %v4826 = vmul.f32 %v2772, %v2772
  %v4827 = vmul.f32 %v2773, %v2773
  %v4828 = vmul.f32 %v2774, %v2774
  %v4829 = vmul.f32 %v2775, %v2775
  %v4830 = vmul.f32 %v2776, %v2776
  %v4831 = vmul.f32 %v2777, %v2777
  %v4832 = vmul.f32 %v2778, %v2778
  %v4833 = vmul.f32 %v2779, %v2779
  %v4834 = vmul.f32 %v2780, %v2780
  %v4835 = vmul.f32 %v2781, %v2781
  %v4836 = vmul.f32 %v2782, %v2782
  %v4837 = vmul.f32 %v2783, %v2783
  %v4838 = vmul.f32 %v2784, %v2784
  %v4839 = vmul.f32 %v2785, %v2785
  %v4840 = vmul.f32 %v2786, %v2786
  %v4841 = vmul.f32 %v2787, %v2787
  %v4842 = vmul.f32 %v2788, %v2788
  %v4843 = vmul.f32 %v2789, %v2789
  %v4844 = vmul.f32 %v2790, %v2790
  %v4845 = vmul.f32 %v2791, %v2791
  %v4846 = vmul.f32 %v2792, %v2792
  %v4847 = vmul.f32 %v2793, %v2793
  %v4848 = vmul.f32 %v2794, %v2794
  %v4849 = vmul.f32 %v2795, %v2795
  %v4850 = vmul.f32 %v2796, %v2796
  %v4851 = vmul.f32 %v2797, %v2797
  %v4852 = vmul.f32 %v2798, %v2798
  %v4853 = vmul.f32 %v2799, %v2799
  %v4854 = vmul.f32 %v2800, %v2800
  %v4855 = vmul.f32 %v2801, %v2801
  %v4856 = vmul.f32 %v2802, %v2802
  %v4857 = vmul.f32 %v2803, %v2803
  %v4858 = vmul.f32 %v2804, %v2804
  %v4859 = vmul.f32 %v2805, %v2805
  %v4860 = vmul.f32 %v2806, %v2806
  %v4861 = vmul.f32 %v2807, %v2807
  %v4862 = vmul.f32 %v2808, %v2808
  %v4863 = vmul.f32 %v2809, %v2809
  %v4864 = vmul.f32 %v2810, %v2810
  %v4865 = vmul.f32 %v2811, %v2811
  %v4866 = vmul.f32 %v2812, %v2812
  %v4867 = vmul.f32 %v2813, %v2813
  %v4868 = vmul.f32 %v2814, %v2814
  %v4869 = vmul.f32 %v2815, %v2815
  %v4870 = vmul.f32 %v2816, %v2816
  %v4871 = vmul.f32 %v2817, %v2817
  %v4872 = vmul.f32 %v2818, %v2818
  %v4873 = vmul.f32 %v2819, %v2819
  %v4874 = vmul.f32 %v2820, %v2820
  %v4875 = vmul.f32 %v2821, %v2821
  %v4876 = vmul.f32 %v2822, %v2822
  %v4877 = vmul.f32 %v2823, %v2823
  %v4878 = vmul.f32 %v2824, %v2824
  %v4879 = vmul.f32 %v2825, %v2825
  %v4880 = vmul.f32 %v2826, %v2826
  %v4881 = vmul.f32 %v2827, %v2827
  %v4882 = vmul.f32 %v2828, %v2828
  %v4883 = vmul.f32 %v2829, %v2829
  %v4884 = vmul.f32 %v2830, %v2830
  %v4885 = vmul.f32 %v2831, %v2831
  %v4886 = vmul.f32 %v2832, %v2832
  %v4887 = vmul.f32 %v2833, %v2833
  %v4888 = vmul.f32 %v2834, %v2834
  %v4889 = vmul.f32 %v2835, %v2835
  %v4890 = vmul.f32 %v2836, %v2836
  %v4891 = vmul.f32 %v2837, %v2837
  %v4892 = vmul.f32 %v2838, %v2838
  %v4893 = vmul.f32 %v2839, %v2839
  %v4894 = vmul.f32 %v2840, %v2840
  %v4895 = vmul.f32 %v2841, %v2841
  %v4896 = vmul.f32 %v2842, %v2842
  %v4897 = vmul.f32 %v2843, %v2843
  %v4898 = vmul.f32 %v2844, %v2844
  %v4899 = vmul.f32 %v2845, %v2845
  %v4900 = vmul.f32 %v2846, %v2846
  %v4901 = vmul.f32 %v2847, %v2847
  %v4902 = vmul.f32 %v2848, %v2848
  %v4903 = vmul.f32 %v2849, %v2849
  %v4904 = vmul.f32 %v2850, %v2850
  %v4905 = vmul.f32 %v2851, %v2851
  %v4906 = vmul.f32 %v2852, %v2852
  %v4907 = vmul.f32 %v2853, %v2853
  %v4908 = vmul.f32 %v2854, %v2854
  %v4909 = vmul.f32 %v2855, %v2855
  %v4910 = vmul.f32 %v2856, %v2856
  %v4911 = vmul.f32 %v2857, %v2857
  %v4912 = vmul.f32 %v2858, %v2858
  %v4913 = vmul.f32 %v2859, %v2859
  %v4914 = vmul.f32 %v2860, %v2860
  %v4915 = vmul.f32 %v2861, %v2861
  %v4916 = vmul.f32 %v2862, %v2862
  %v4917 = vmul.f32 %v2863, %v2863
  %v4918 = vmul.f32 %v2864, %v2864
  %v4919 = vmul.f32 %v2865, %v2865
  %v4920 = vmul.f32 %v2866, %v2866
  %v4921 = vmul.f32 %v2867, %v2867
  %v4922 = vmul.f32 %v2868, %v2868
  %v4923 = vmul.f32 %v2869, %v2869
  %v4924 = vmul.f32 %v2870, %v2870
  %v4925 = vmul.f32 %v2871, %v2871
  %v4926 = vmul.f32 %v2872, %v2872
  %v4927 = vmul.f32 %v2873, %v2873
  %v4928 = vmul.f32 %v2874, %v2874
  %v4929 = vmul.f32 %v2875, %v2875
  %v4930 = vmul.f32 %v2876, %v2876
  %v4931 = vmul.f32 %v2877, %v2877
  %v4932 = vmul.f32 %v2878, %v2878
  %v4933 = vmul.f32 %v2879, %v2879
  %v4934 = vsel %vm926, %v4678, 0.0
  %v4935 = vsel %vm926, %v4679, 0.0
  %v4936 = vadd.f32 %v4934, %v4935
  %v4937 = vsel %vm926, %v4680, 0.0
  %v4938 = vadd.f32 %v4936, %v4937
  %v4939 = vsel %vm926, %v4681, 0.0
  %v4940 = vadd.f32 %v4938, %v4939
  %v4941 = vsel %vm926, %v4682, 0.0
  %v4942 = vadd.f32 %v4940, %v4941
  %v4943 = vsel %vm926, %v4683, 0.0
  %v4944 = vadd.f32 %v4942, %v4943
  %v4945 = vsel %vm926, %v4684, 0.0
  %v4946 = vadd.f32 %v4944, %v4945
  %v4947 = vsel %vm926, %v4685, 0.0
  %v4948 = vadd.f32 %v4946, %v4947
  %v4949 = vsel %vm926, %v4686, 0.0
  %v4950 = vadd.f32 %v4948, %v4949
  %v4951 = vsel %vm926, %v4687, 0.0
  %v4952 = vadd.f32 %v4950, %v4951
  %v4953 = vsel %vm926, %v4688, 0.0
  %v4954 = vadd.f32 %v4952, %v4953
  %v4955 = vsel %vm926, %v4689, 0.0
  %v4956 = vadd.f32 %v4954, %v4955
  %v4957 = vsel %vm926, %v4690, 0.0
  %v4958 = vadd.f32 %v4956, %v4957
  %v4959 = vsel %vm926, %v4691, 0.0
  %v4960 = vadd.f32 %v4958, %v4959
  %v4961 = vsel %vm926, %v4692, 0.0
  %v4962 = vadd.f32 %v4960, %v4961
  %v4963 = vsel %vm926, %v4693, 0.0
  %v4964 = vadd.f32 %v4962, %v4963
  %v4965 = vsel %vm926, %v4694, 0.0
  %v4966 = vadd.f32 %v4964, %v4965
  %v4967 = vsel %vm926, %v4695, 0.0
  %v4968 = vadd.f32 %v4966, %v4967
  %v4969 = vsel %vm926, %v4696, 0.0
  %v4970 = vadd.f32 %v4968, %v4969
  %v4971 = vsel %vm926, %v4697, 0.0
  %v4972 = vadd.f32 %v4970, %v4971
  %v4973 = vsel %vm926, %v4698, 0.0
  %v4974 = vadd.f32 %v4972, %v4973
  %v4975 = vsel %vm926, %v4699, 0.0
  %v4976 = vadd.f32 %v4974, %v4975
  %v4977 = vsel %vm926, %v4700, 0.0
  %v4978 = vadd.f32 %v4976, %v4977
  %v4979 = vsel %vm926, %v4701, 0.0
  %v4980 = vadd.f32 %v4978, %v4979
  %v4981 = vsel %vm926, %v4702, 0.0
  %v4982 = vadd.f32 %v4980, %v4981
  %v4983 = vsel %vm926, %v4703, 0.0
  %v4984 = vadd.f32 %v4982, %v4983
  %v4985 = vsel %vm926, %v4704, 0.0
  %v4986 = vadd.f32 %v4984, %v4985
  %v4987 = vsel %vm926, %v4705, 0.0
  %v4988 = vadd.f32 %v4986, %v4987
  %v4989 = vsel %vm926, %v4706, 0.0
  %v4990 = vadd.f32 %v4988, %v4989
  %v4991 = vsel %vm926, %v4707, 0.0
  %v4992 = vadd.f32 %v4990, %v4991
  %v4993 = vsel %vm926, %v4708, 0.0
  %v4994 = vadd.f32 %v4992, %v4993
  %v4995 = vsel %vm926, %v4709, 0.0
  %v4996 = vadd.f32 %v4994, %v4995
  %v4997 = vsel %vm926, %v4710, 0.0
  %v4998 = vadd.f32 %v4996, %v4997
  %v4999 = vsel %vm926, %v4711, 0.0
  %v5000 = vadd.f32 %v4998, %v4999
  %v5001 = vsel %vm926, %v4712, 0.0
  %v5002 = vadd.f32 %v5000, %v5001
  %v5003 = vsel %vm926, %v4713, 0.0
  %v5004 = vadd.f32 %v5002, %v5003
  %v5005 = vsel %vm926, %v4714, 0.0
  %v5006 = vadd.f32 %v5004, %v5005
  %v5007 = vsel %vm926, %v4715, 0.0
  %v5008 = vadd.f32 %v5006, %v5007
  %v5009 = vsel %vm926, %v4716, 0.0
  %v5010 = vadd.f32 %v5008, %v5009
  %v5011 = vsel %vm926, %v4717, 0.0
  %v5012 = vadd.f32 %v5010, %v5011
  %v5013 = vsel %vm926, %v4718, 0.0
  %v5014 = vadd.f32 %v5012, %v5013
  %v5015 = vsel %vm926, %v4719, 0.0
  %v5016 = vadd.f32 %v5014, %v5015
  %v5017 = vsel %vm926, %v4720, 0.0
  %v5018 = vadd.f32 %v5016, %v5017
  %v5019 = vsel %vm926, %v4721, 0.0
  %v5020 = vadd.f32 %v5018, %v5019
  %v5021 = vsel %vm926, %v4722, 0.0
  %v5022 = vadd.f32 %v5020, %v5021
  %v5023 = vsel %vm926, %v4723, 0.0
  %v5024 = vadd.f32 %v5022, %v5023
  %v5025 = vsel %vm926, %v4724, 0.0
  %v5026 = vadd.f32 %v5024, %v5025
  %v5027 = vsel %vm926, %v4725, 0.0
  %v5028 = vadd.f32 %v5026, %v5027
  %v5029 = vsel %vm926, %v4726, 0.0
  %v5030 = vadd.f32 %v5028, %v5029
  %v5031 = vsel %vm926, %v4727, 0.0
  %v5032 = vadd.f32 %v5030, %v5031
  %v5033 = vsel %vm926, %v4728, 0.0
  %v5034 = vadd.f32 %v5032, %v5033
  %v5035 = vsel %vm926, %v4729, 0.0
  %v5036 = vadd.f32 %v5034, %v5035
  %v5037 = vsel %vm926, %v4730, 0.0
  %v5038 = vadd.f32 %v5036, %v5037
  %v5039 = vsel %vm926, %v4731, 0.0
  %v5040 = vadd.f32 %v5038, %v5039
  %v5041 = vsel %vm926, %v4732, 0.0
  %v5042 = vadd.f32 %v5040, %v5041
  %v5043 = vsel %vm926, %v4733, 0.0
  %v5044 = vadd.f32 %v5042, %v5043
  %v5045 = vsel %vm926, %v4734, 0.0
  %v5046 = vadd.f32 %v5044, %v5045
  %v5047 = vsel %vm926, %v4735, 0.0
  %v5048 = vadd.f32 %v5046, %v5047
  %v5049 = vsel %vm926, %v4736, 0.0
  %v5050 = vadd.f32 %v5048, %v5049
  %v5051 = vsel %vm926, %v4737, 0.0
  %v5052 = vadd.f32 %v5050, %v5051
  %v5053 = vsel %vm926, %v4738, 0.0
  %v5054 = vadd.f32 %v5052, %v5053
  %v5055 = vsel %vm926, %v4739, 0.0
  %v5056 = vadd.f32 %v5054, %v5055
  %v5057 = vsel %vm926, %v4740, 0.0
  %v5058 = vadd.f32 %v5056, %v5057
  %v5059 = vsel %vm926, %v4741, 0.0
  %v5060 = vadd.f32 %v5058, %v5059
  %v5061 = vsel %vm926, %v4742, 0.0
  %v5062 = vadd.f32 %v5060, %v5061
  %v5063 = vsel %vm926, %v4743, 0.0
  %v5064 = vadd.f32 %v5062, %v5063
  %v5065 = vsel %vm926, %v4744, 0.0
  %v5066 = vadd.f32 %v5064, %v5065
  %v5067 = vsel %vm926, %v4745, 0.0
  %v5068 = vadd.f32 %v5066, %v5067
  %v5069 = vsel %vm926, %v4746, 0.0
  %v5070 = vadd.f32 %v5068, %v5069
  %v5071 = vsel %vm926, %v4747, 0.0
  %v5072 = vadd.f32 %v5070, %v5071
  %v5073 = vsel %vm926, %v4748, 0.0
  %v5074 = vadd.f32 %v5072, %v5073
  %v5075 = vsel %vm926, %v4749, 0.0
  %v5076 = vadd.f32 %v5074, %v5075
  %v5077 = vsel %vm926, %v4750, 0.0
  %v5078 = vadd.f32 %v5076, %v5077
  %v5079 = vsel %vm926, %v4751, 0.0
  %v5080 = vadd.f32 %v5078, %v5079
  %v5081 = vsel %vm926, %v4752, 0.0
  %v5082 = vadd.f32 %v5080, %v5081
  %v5083 = vsel %vm926, %v4753, 0.0
  %v5084 = vadd.f32 %v5082, %v5083
  %v5085 = vsel %vm926, %v4754, 0.0
  %v5086 = vadd.f32 %v5084, %v5085
  %v5087 = vsel %vm926, %v4755, 0.0
  %v5088 = vadd.f32 %v5086, %v5087
  %v5089 = vsel %vm926, %v4756, 0.0
  %v5090 = vadd.f32 %v5088, %v5089
  %v5091 = vsel %vm926, %v4757, 0.0
  %v5092 = vadd.f32 %v5090, %v5091
  %v5093 = vsel %vm926, %v4758, 0.0
  %v5094 = vadd.f32 %v5092, %v5093
  %v5095 = vsel %vm926, %v4759, 0.0
  %v5096 = vadd.f32 %v5094, %v5095
  %v5097 = vsel %vm926, %v4760, 0.0
  %v5098 = vadd.f32 %v5096, %v5097
  %v5099 = vsel %vm926, %v4761, 0.0
  %v5100 = vadd.f32 %v5098, %v5099
  %v5101 = vsel %vm926, %v4762, 0.0
  %v5102 = vadd.f32 %v5100, %v5101
  %v5103 = vsel %vm926, %v4763, 0.0
  %v5104 = vadd.f32 %v5102, %v5103
  %v5105 = vsel %vm926, %v4764, 0.0
  %v5106 = vadd.f32 %v5104, %v5105
  %v5107 = vsel %vm926, %v4765, 0.0
  %v5108 = vadd.f32 %v5106, %v5107
  %v5109 = vsel %vm926, %v4766, 0.0
  %v5110 = vadd.f32 %v5108, %v5109
  %v5111 = vsel %vm926, %v4767, 0.0
  %v5112 = vadd.f32 %v5110, %v5111
  %v5113 = vsel %vm926, %v4768, 0.0
  %v5114 = vadd.f32 %v5112, %v5113
  %v5115 = vsel %vm926, %v4769, 0.0
  %v5116 = vadd.f32 %v5114, %v5115
  %v5117 = vsel %vm926, %v4770, 0.0
  %v5118 = vadd.f32 %v5116, %v5117
  %v5119 = vsel %vm926, %v4771, 0.0
  %v5120 = vadd.f32 %v5118, %v5119
  %v5121 = vsel %vm926, %v4772, 0.0
  %v5122 = vadd.f32 %v5120, %v5121
  %v5123 = vsel %vm926, %v4773, 0.0
  %v5124 = vadd.f32 %v5122, %v5123
  %v5125 = vsel %vm926, %v4774, 0.0
  %v5126 = vadd.f32 %v5124, %v5125
  %v5127 = vsel %vm926, %v4775, 0.0
  %v5128 = vadd.f32 %v5126, %v5127
  %v5129 = vsel %vm926, %v4776, 0.0
  %v5130 = vadd.f32 %v5128, %v5129
  %v5131 = vsel %vm926, %v4777, 0.0
  %v5132 = vadd.f32 %v5130, %v5131
  %v5133 = vsel %vm926, %v4778, 0.0
  %v5134 = vadd.f32 %v5132, %v5133
  %v5135 = vsel %vm926, %v4779, 0.0
  %v5136 = vadd.f32 %v5134, %v5135
  %v5137 = vsel %vm926, %v4780, 0.0
  %v5138 = vadd.f32 %v5136, %v5137
  %v5139 = vsel %vm926, %v4781, 0.0
  %v5140 = vadd.f32 %v5138, %v5139
  %v5141 = vsel %vm926, %v4782, 0.0
  %v5142 = vadd.f32 %v5140, %v5141
  %v5143 = vsel %vm926, %v4783, 0.0
  %v5144 = vadd.f32 %v5142, %v5143
  %v5145 = vsel %vm926, %v4784, 0.0
  %v5146 = vadd.f32 %v5144, %v5145
  %v5147 = vsel %vm926, %v4785, 0.0
  %v5148 = vadd.f32 %v5146, %v5147
  %v5149 = vsel %vm926, %v4786, 0.0
  %v5150 = vadd.f32 %v5148, %v5149
  %v5151 = vsel %vm926, %v4787, 0.0
  %v5152 = vadd.f32 %v5150, %v5151
  %v5153 = vsel %vm926, %v4788, 0.0
  %v5154 = vadd.f32 %v5152, %v5153
  %v5155 = vsel %vm926, %v4789, 0.0
  %v5156 = vadd.f32 %v5154, %v5155
  %v5157 = vsel %vm926, %v4790, 0.0
  %v5158 = vadd.f32 %v5156, %v5157
  %v5159 = vsel %vm926, %v4791, 0.0
  %v5160 = vadd.f32 %v5158, %v5159
  %v5161 = vsel %vm926, %v4792, 0.0
  %v5162 = vadd.f32 %v5160, %v5161
  %v5163 = vsel %vm926, %v4793, 0.0
  %v5164 = vadd.f32 %v5162, %v5163
  %v5165 = vsel %vm926, %v4794, 0.0
  %v5166 = vadd.f32 %v5164, %v5165
  %v5167 = vsel %vm926, %v4795, 0.0
  %v5168 = vadd.f32 %v5166, %v5167
  %v5169 = vsel %vm926, %v4796, 0.0
  %v5170 = vadd.f32 %v5168, %v5169
  %v5171 = vsel %vm926, %v4797, 0.0
  %v5172 = vadd.f32 %v5170, %v5171
  %v5173 = vsel %vm926, %v4798, 0.0
  %v5174 = vadd.f32 %v5172, %v5173
  %v5175 = vsel %vm926, %v4799, 0.0
  %v5176 = vadd.f32 %v5174, %v5175
  %v5177 = vsel %vm926, %v4800, 0.0
  %v5178 = vadd.f32 %v5176, %v5177
  %v5179 = vsel %vm926, %v4801, 0.0
  %v5180 = vadd.f32 %v5178, %v5179
  %v5181 = vsel %vm926, %v4802, 0.0
  %v5182 = vadd.f32 %v5180, %v5181
  %v5183 = vsel %vm926, %v4803, 0.0
  %v5184 = vadd.f32 %v5182, %v5183
  %v5185 = vsel %vm926, %v4804, 0.0
  %v5186 = vadd.f32 %v5184, %v5185
  %v5187 = vsel %vm926, %v4805, 0.0
  %v5188 = vadd.f32 %v5186, %v5187
  %v5189 = vsel %vm926, %v4806, 0.0
  %v5190 = vadd.f32 %v5188, %v5189
  %v5191 = vsel %vm926, %v4807, 0.0
  %v5192 = vadd.f32 %v5190, %v5191
  %v5193 = vsel %vm926, %v4808, 0.0
  %v5194 = vadd.f32 %v5192, %v5193
  %v5195 = vsel %vm926, %v4809, 0.0
  %v5196 = vadd.f32 %v5194, %v5195
  %v5197 = vsel %vm926, %v4810, 0.0
  %v5198 = vadd.f32 %v5196, %v5197
  %v5199 = vsel %vm926, %v4811, 0.0
  %v5200 = vadd.f32 %v5198, %v5199
  %v5201 = vsel %vm926, %v4812, 0.0
  %v5202 = vadd.f32 %v5200, %v5201
  %v5203 = vsel %vm926, %v4813, 0.0
  %v5204 = vadd.f32 %v5202, %v5203
  %v5205 = vsel %vm926, %v4814, 0.0
  %v5206 = vadd.f32 %v5204, %v5205
  %v5207 = vsel %vm926, %v4815, 0.0
  %v5208 = vadd.f32 %v5206, %v5207
  %v5209 = vsel %vm926, %v4816, 0.0
  %v5210 = vadd.f32 %v5208, %v5209
  %v5211 = vsel %vm926, %v4817, 0.0
  %v5212 = vadd.f32 %v5210, %v5211
  %v5213 = vsel %vm926, %v4818, 0.0
  %v5214 = vadd.f32 %v5212, %v5213
  %v5215 = vsel %vm926, %v4819, 0.0
  %v5216 = vadd.f32 %v5214, %v5215
  %v5217 = vsel %vm926, %v4820, 0.0
  %v5218 = vadd.f32 %v5216, %v5217
  %v5219 = vsel %vm926, %v4821, 0.0
  %v5220 = vadd.f32 %v5218, %v5219
  %v5221 = vsel %vm926, %v4822, 0.0
  %v5222 = vadd.f32 %v5220, %v5221
  %v5223 = vsel %vm926, %v4823, 0.0
  %v5224 = vadd.f32 %v5222, %v5223
  %v5225 = vsel %vm926, %v4824, 0.0
  %v5226 = vadd.f32 %v5224, %v5225
  %v5227 = vsel %vm926, %v4825, 0.0
  %v5228 = vadd.f32 %v5226, %v5227
  %v5229 = vsel %vm926, %v4826, 0.0
  %v5230 = vadd.f32 %v5228, %v5229
  %v5231 = vsel %vm926, %v4827, 0.0
  %v5232 = vadd.f32 %v5230, %v5231
  %v5233 = vsel %vm926, %v4828, 0.0
  %v5234 = vadd.f32 %v5232, %v5233
  %v5235 = vsel %vm926, %v4829, 0.0
  %v5236 = vadd.f32 %v5234, %v5235
  %v5237 = vsel %vm926, %v4830, 0.0
  %v5238 = vadd.f32 %v5236, %v5237
  %v5239 = vsel %vm926, %v4831, 0.0
  %v5240 = vadd.f32 %v5238, %v5239
  %v5241 = vsel %vm926, %v4832, 0.0
  %v5242 = vadd.f32 %v5240, %v5241
  %v5243 = vsel %vm926, %v4833, 0.0
  %v5244 = vadd.f32 %v5242, %v5243
  %v5245 = vsel %vm926, %v4834, 0.0
  %v5246 = vadd.f32 %v5244, %v5245
  %v5247 = vsel %vm926, %v4835, 0.0
  %v5248 = vadd.f32 %v5246, %v5247
  %v5249 = vsel %vm926, %v4836, 0.0
  %v5250 = vadd.f32 %v5248, %v5249
  %v5251 = vsel %vm926, %v4837, 0.0
  %v5252 = vadd.f32 %v5250, %v5251
  %v5253 = vsel %vm926, %v4838, 0.0
  %v5254 = vadd.f32 %v5252, %v5253
  %v5255 = vsel %vm926, %v4839, 0.0
  %v5256 = vadd.f32 %v5254, %v5255
  %v5257 = vsel %vm926, %v4840, 0.0
  %v5258 = vadd.f32 %v5256, %v5257
  %v5259 = vsel %vm926, %v4841, 0.0
  %v5260 = vadd.f32 %v5258, %v5259
  %v5261 = vsel %vm926, %v4842, 0.0
  %v5262 = vadd.f32 %v5260, %v5261
  %v5263 = vsel %vm926, %v4843, 0.0
  %v5264 = vadd.f32 %v5262, %v5263
  %v5265 = vsel %vm926, %v4844, 0.0
  %v5266 = vadd.f32 %v5264, %v5265
  %v5267 = vsel %vm926, %v4845, 0.0
  %v5268 = vadd.f32 %v5266, %v5267
  %v5269 = vsel %vm926, %v4846, 0.0
  %v5270 = vadd.f32 %v5268, %v5269
  %v5271 = vsel %vm926, %v4847, 0.0
  %v5272 = vadd.f32 %v5270, %v5271
  %v5273 = vsel %vm926, %v4848, 0.0
  %v5274 = vadd.f32 %v5272, %v5273
  %v5275 = vsel %vm926, %v4849, 0.0
  %v5276 = vadd.f32 %v5274, %v5275
  %v5277 = vsel %vm926, %v4850, 0.0
  %v5278 = vadd.f32 %v5276, %v5277
  %v5279 = vsel %vm926, %v4851, 0.0
  %v5280 = vadd.f32 %v5278, %v5279
  %v5281 = vsel %vm926, %v4852, 0.0
  %v5282 = vadd.f32 %v5280, %v5281
  %v5283 = vsel %vm926, %v4853, 0.0
  %v5284 = vadd.f32 %v5282, %v5283
  %v5285 = vsel %vm926, %v4854, 0.0
  %v5286 = vadd.f32 %v5284, %v5285
  %v5287 = vsel %vm926, %v4855, 0.0
  %v5288 = vadd.f32 %v5286, %v5287
  %v5289 = vsel %vm926, %v4856, 0.0
  %v5290 = vadd.f32 %v5288, %v5289
  %v5291 = vsel %vm926, %v4857, 0.0
  %v5292 = vadd.f32 %v5290, %v5291
  %v5293 = vsel %vm926, %v4858, 0.0
  %v5294 = vadd.f32 %v5292, %v5293
  %v5295 = vsel %vm926, %v4859, 0.0
  %v5296 = vadd.f32 %v5294, %v5295
  %v5297 = vsel %vm926, %v4860, 0.0
  %v5298 = vadd.f32 %v5296, %v5297
  %v5299 = vsel %vm926, %v4861, 0.0
  %v5300 = vadd.f32 %v5298, %v5299
  %v5301 = vsel %vm926, %v4862, 0.0
  %v5302 = vadd.f32 %v5300, %v5301
  %v5303 = vsel %vm926, %v4863, 0.0
  %v5304 = vadd.f32 %v5302, %v5303
  %v5305 = vsel %vm926, %v4864, 0.0
  %v5306 = vadd.f32 %v5304, %v5305
  %v5307 = vsel %vm926, %v4865, 0.0
  %v5308 = vadd.f32 %v5306, %v5307
  %v5309 = vsel %vm926, %v4866, 0.0
  %v5310 = vadd.f32 %v5308, %v5309
  %v5311 = vsel %vm926, %v4867, 0.0
  %v5312 = vadd.f32 %v5310, %v5311
  %v5313 = vsel %vm926, %v4868, 0.0
  %v5314 = vadd.f32 %v5312, %v5313
  %v5315 = vsel %vm926, %v4869, 0.0
  %v5316 = vadd.f32 %v5314, %v5315
  %v5317 = vsel %vm926, %v4870, 0.0
  %v5318 = vadd.f32 %v5316, %v5317
  %v5319 = vsel %vm926, %v4871, 0.0
  %v5320 = vadd.f32 %v5318, %v5319
  %v5321 = vsel %vm926, %v4872, 0.0
  %v5322 = vadd.f32 %v5320, %v5321
  %v5323 = vsel %vm926, %v4873, 0.0
  %v5324 = vadd.f32 %v5322, %v5323
  %v5325 = vsel %vm926, %v4874, 0.0
  %v5326 = vadd.f32 %v5324, %v5325
  %v5327 = vsel %vm926, %v4875, 0.0
  %v5328 = vadd.f32 %v5326, %v5327
  %v5329 = vsel %vm926, %v4876, 0.0
  %v5330 = vadd.f32 %v5328, %v5329
  %v5331 = vsel %vm926, %v4877, 0.0
  %v5332 = vadd.f32 %v5330, %v5331
  %v5333 = vsel %vm926, %v4878, 0.0
  %v5334 = vadd.f32 %v5332, %v5333
  %v5335 = vsel %vm926, %v4879, 0.0
  %v5336 = vadd.f32 %v5334, %v5335
  %v5337 = vsel %vm926, %v4880, 0.0
  %v5338 = vadd.f32 %v5336, %v5337
  %v5339 = vsel %vm926, %v4881, 0.0
  %v5340 = vadd.f32 %v5338, %v5339
  %v5341 = vsel %vm926, %v4882, 0.0
  %v5342 = vadd.f32 %v5340, %v5341
  %v5343 = vsel %vm926, %v4883, 0.0
  %v5344 = vadd.f32 %v5342, %v5343
  %v5345 = vsel %vm926, %v4884, 0.0
  %v5346 = vadd.f32 %v5344, %v5345
  %v5347 = vsel %vm926, %v4885, 0.0
  %v5348 = vadd.f32 %v5346, %v5347
  %v5349 = vsel %vm926, %v4886, 0.0
  %v5350 = vadd.f32 %v5348, %v5349
  %v5351 = vsel %vm926, %v4887, 0.0
  %v5352 = vadd.f32 %v5350, %v5351
  %v5353 = vsel %vm926, %v4888, 0.0
  %v5354 = vadd.f32 %v5352, %v5353
  %v5355 = vsel %vm926, %v4889, 0.0
  %v5356 = vadd.f32 %v5354, %v5355
  %v5357 = vsel %vm926, %v4890, 0.0
  %v5358 = vadd.f32 %v5356, %v5357
  %v5359 = vsel %vm926, %v4891, 0.0
  %v5360 = vadd.f32 %v5358, %v5359
  %v5361 = vsel %vm926, %v4892, 0.0
  %v5362 = vadd.f32 %v5360, %v5361
  %v5363 = vsel %vm926, %v4893, 0.0
  %v5364 = vadd.f32 %v5362, %v5363
  %v5365 = vsel %vm926, %v4894, 0.0
  %v5366 = vadd.f32 %v5364, %v5365
  %v5367 = vsel %vm926, %v4895, 0.0
  %v5368 = vadd.f32 %v5366, %v5367
  %v5369 = vsel %vm926, %v4896, 0.0
  %v5370 = vadd.f32 %v5368, %v5369
  %v5371 = vsel %vm926, %v4897, 0.0
  %v5372 = vadd.f32 %v5370, %v5371
  %v5373 = vsel %vm926, %v4898, 0.0
  %v5374 = vadd.f32 %v5372, %v5373
  %v5375 = vsel %vm926, %v4899, 0.0
  %v5376 = vadd.f32 %v5374, %v5375
  %v5377 = vsel %vm926, %v4900, 0.0
  %v5378 = vadd.f32 %v5376, %v5377
  %v5379 = vsel %vm926, %v4901, 0.0
  %v5380 = vadd.f32 %v5378, %v5379
  %v5381 = vsel %vm926, %v4902, 0.0
  %v5382 = vadd.f32 %v5380, %v5381
  %v5383 = vsel %vm926, %v4903, 0.0
  %v5384 = vadd.f32 %v5382, %v5383
  %v5385 = vsel %vm926, %v4904, 0.0
  %v5386 = vadd.f32 %v5384, %v5385
  %v5387 = vsel %vm926, %v4905, 0.0
  %v5388 = vadd.f32 %v5386, %v5387
  %v5389 = vsel %vm926, %v4906, 0.0
  %v5390 = vadd.f32 %v5388, %v5389
  %v5391 = vsel %vm926, %v4907, 0.0
  %v5392 = vadd.f32 %v5390, %v5391
  %v5393 = vsel %vm926, %v4908, 0.0
  %v5394 = vadd.f32 %v5392, %v5393
  %v5395 = vsel %vm926, %v4909, 0.0
  %v5396 = vadd.f32 %v5394, %v5395
  %v5397 = vsel %vm926, %v4910, 0.0
  %v5398 = vadd.f32 %v5396, %v5397
  %v5399 = vsel %vm926, %v4911, 0.0
  %v5400 = vadd.f32 %v5398, %v5399
  %v5401 = vsel %vm926, %v4912, 0.0
  %v5402 = vadd.f32 %v5400, %v5401
  %v5403 = vsel %vm926, %v4913, 0.0
  %v5404 = vadd.f32 %v5402, %v5403
  %v5405 = vsel %vm926, %v4914, 0.0
  %v5406 = vadd.f32 %v5404, %v5405
  %v5407 = vsel %vm926, %v4915, 0.0
  %v5408 = vadd.f32 %v5406, %v5407
  %v5409 = vsel %vm926, %v4916, 0.0
  %v5410 = vadd.f32 %v5408, %v5409
  %v5411 = vsel %vm926, %v4917, 0.0
  %v5412 = vadd.f32 %v5410, %v5411
  %v5413 = vsel %vm926, %v4918, 0.0
  %v5414 = vadd.f32 %v5412, %v5413
  %v5415 = vsel %vm926, %v4919, 0.0
  %v5416 = vadd.f32 %v5414, %v5415
  %v5417 = vsel %vm926, %v4920, 0.0
  %v5418 = vadd.f32 %v5416, %v5417
  %v5419 = vsel %vm926, %v4921, 0.0
  %v5420 = vadd.f32 %v5418, %v5419
  %v5421 = vsel %vm926, %v4922, 0.0
  %v5422 = vadd.f32 %v5420, %v5421
  %v5423 = vsel %vm926, %v4923, 0.0
  %v5424 = vadd.f32 %v5422, %v5423
  %v5425 = vsel %vm926, %v4924, 0.0
  %v5426 = vadd.f32 %v5424, %v5425
  %v5427 = vsel %vm926, %v4925, 0.0
  %v5428 = vadd.f32 %v5426, %v5427
  %v5429 = vsel %vm926, %v4926, 0.0
  %v5430 = vadd.f32 %v5428, %v5429
  %v5431 = vsel %vm926, %v4927, 0.0
  %v5432 = vadd.f32 %v5430, %v5431
  %v5433 = vsel %vm926, %v4928, 0.0
  %v5434 = vadd.f32 %v5432, %v5433
  %v5435 = vsel %vm926, %v4929, 0.0
  %v5436 = vadd.f32 %v5434, %v5435
  %v5437 = vsel %vm926, %v4930, 0.0
  %v5438 = vadd.f32 %v5436, %v5437
  %v5439 = vsel %vm926, %v4931, 0.0
  %v5440 = vadd.f32 %v5438, %v5439
  %v5441 = vsel %vm926, %v4932, 0.0
  %v5442 = vadd.f32 %v5440, %v5441
  %v5443 = vsel %vm926, %v4933, 0.0
  %v5444 = vadd.f32 %v5442, %v5443
  %v5445 = vrot.slane %v5444, 4
  %v5446 = vadd.f32 %v5444, %v5445
  %v5447 = vrot.slane %v5446, 2
  %v5448 = vadd.f32 %v5446, %v5447
  %v5449 = vrot.slane %v5448, 1
  %v5450 = vadd.f32 %v5448, %v5449
  %v5451 = vlaneseq
  %v5452 = vshrl.u32 %v5451, 7
  %vm5453 = vcmp.eq.s32.totalorder %v5452, 0
  %vm5454 = vcmp.eq.s32.totalorder %v5452, 1
  %v5455 = vsel %vm5454, %v5450, 0.0
  %v5456 = vsel %vm5453, %v4677, %v5455
  %5457 = vst.msk [vmem:[%s3] sm:$0xff] %vm926, %v5456
  // Predicated region
  $region10: #{conv_bn_leaky.2} parent=0 // pred_check
    _
  $region11: #{conv_bn_leaky.2} parent=0 // pred_check_branch
    %5459 = sbr.rel (0) target = $region13
  $region12: #{conv_bn_leaky.2} parent=0 // pred_region
    _
  $region13: #{conv_bn_leaky.2} parent=0 // pred_fallthru
    _
  // Predicated region
  $region14: #{conv_bn_leaky.2} parent=0 // pred_check
    _
  $region15: #{conv_bn_leaky.2} parent=0 // pred_check_branch
    %5461 = sbr.rel (0) target = $region17
  $region16: #{conv_bn_leaky.2} parent=0 // pred_region
    _
  $region17: #{conv_bn_leaky.2} parent=0 // pred_fallthru
    _
  // Predicated region
  $region18: #{conv_bn_leaky.2} parent=0 // pred_check
    _
  $region19: #{conv_bn_leaky.2} parent=0 // pred_check_branch
    %5463 = sbr.rel (0) target = $region21
  $region20: #{conv_bn_leaky.2} parent=0 // pred_region
    _
  $region21: #{conv_bn_leaky.2} parent=0 // pred_fallthru
    _
  // Predicated region
  $region22: #{conv_bn_leaky.2} parent=0 // pred_check
    _
  $region23: #{conv_bn_leaky.2} parent=0 // pred_check_branch
    %5465 = sbr.rel (0) target = $region25
  $region24: #{conv_bn_leaky.2} parent=0 // pred_region
    _
  $region25: #{conv_bn_leaky.2} parent=0 // pred_fallthru
    _

</llo_original>
